<compile_context>
chip_gen: v7x
topology: tpu7x:2x2x1
jax: 0.10.0
libtpu: 0.0.40
codegen_flags: <defaults>
</compile_context>

<pallas_src>
import jax
import jax.numpy as jnp
from jax.experimental import pallas as pl
from jax.experimental.pallas import tpu as pltpu

EPS = 1e-5
NEG_SLOPE = 0.01


# ----------------------------------------------------------------------------
# Pallas kernel: one 3x3/pad=1 conv over a block of pre-padded images,
# via a single fat MXU matmul with a lane-dense im2col, plus per-block
# partial BatchNorm statistics (sum, sum of squares) per channel.
# ----------------------------------------------------------------------------
def _conv_stats_kernel(x_ref, w_ref, b_ref, z_ref, ssum_ref, ssq_ref, im_ref):
    # x_ref:   (Nb, Cin, H+2, W+2)   pre-padded images
    # w_ref:   (Cout, 9*Cin)         columns ordered (dy, dx, cin)
    # b_ref:   (Cout, 1)
    # z_ref:   (Nb, Cout, H*W)       lane-dense conv output
    # ssum/ssq:(Nb, Cout, 1)         per-block partial BN statistics
    # im_ref:  (9*Cin, Nb*H*W)       im2col scratch (pixels on lanes)
    Nb, C, Hp, Wp = x_ref.shape
    H, W = Hp - 2, Wp - 2
    HW = H * W

    # Build im2col: 9 shifted taps become contiguous K-rows; each write is a
    # full-HW-lane row block (dense vst).  The tap slice/flatten relayouts run
    # on the XLU, which has slack at these sizes.
    for n in range(Nb):                              # static, small
        img = x_ref[n]                               # (C, Hp, Wp)
        for dy in range(3):
            for dx in range(3):
                t = dy * 3 + dx
                im_ref[t * C:(t + 1) * C, n * HW:(n + 1) * HW] = (
                    img[:, dy:dy + H, dx:dx + W].reshape(C, HW))

    # One fat matmul: (Cout, 9*Cin) @ (9*Cin, Nb*H*W), f32 accumulate.
    z = jnp.dot(w_ref[...], im_ref[...],
                preferred_element_type=jnp.float32) + b_ref[...]

    for n in range(Nb):
        zn = z[:, n * HW:(n + 1) * HW]               # lane-aligned 256-wide slice
        z_ref[n] = zn
        ssum_ref[n] = jnp.sum(zn, axis=1, keepdims=True)
        ssq_ref[n] = jnp.sum(zn * zn, axis=1, keepdims=True)


# ----------------------------------------------------------------------------
# wrapper helpers
# ----------------------------------------------------------------------------
def _round_up(x, m):
    return (x + m - 1) // m * m


def _pick_block_n(n_imgs, c_max, h, w):
    """Images per grid step: amortize per-step overhead while keeping the
    padded VMEM footprint modest and >= 2 grid steps (both v7x TensorCores)."""
    hw = h * w
    per_img = 4 * (c_max * _round_up(h + 2, 8) * _round_up(w + 2, 128)  # input tile
                   + 9 * c_max * hw                                     # im2col cols
                   + 2 * c_max * hw)                                    # dbl-buf output
    budget = 8 << 20  # well under default scoped VMEM on v5e/v6e/v7x
    nb = max(1, min(n_imgs, budget // max(per_img, 1)))
    while nb > 1 and (n_imgs % nb != 0 or n_imgs // nb < 2):
        nb -= 1
    return nb


def _conv3x3_pallas(x_padded, w_mat, bias, nb):
    """x_padded: (N, Cin, H+2, W+2) -> (z, ssum, ssq) with z (N, Cout, H*W)."""
    N, Cin, Hp, Wp = x_padded.shape
    H, W = Hp - 2, Wp - 2
    HW = H * W
    Cout = w_mat.shape[0]

    return pl.pallas_call(
        _conv_stats_kernel,
        out_shape=(jax.ShapeDtypeStruct((N, Cout, HW), jnp.float32),
                   jax.ShapeDtypeStruct((N, Cout, 1), jnp.float32),
                   jax.ShapeDtypeStruct((N, Cout, 1), jnp.float32)),
        grid_spec=pltpu.PrefetchScalarGridSpec(
            num_scalar_prefetch=0, grid=(N // nb,),
            in_specs=[pl.BlockSpec((nb, Cin, Hp, Wp), lambda i: (i, 0, 0, 0)),
                      pl.BlockSpec((Cout, 9 * Cin), lambda i: (0, 0)),
                      pl.BlockSpec((Cout, 1), lambda i: (0, 0))],
            out_specs=(pl.BlockSpec((nb, Cout, HW), lambda i: (i, 0, 0)),
                       pl.BlockSpec((nb, Cout, 1), lambda i: (i, 0, 0)),
                       pl.BlockSpec((nb, Cout, 1), lambda i: (i, 0, 0))),
            scratch_shapes=[pltpu.VMEM((9 * Cin, nb * HW), jnp.float32)]),
        compiler_params=pltpu.CompilerParams(
            dimension_semantics=("parallel",)),
    )(x_padded, w_mat, bias.reshape(Cout, 1))


def _bn_scale_shift(ssum, ssq, gamma, beta, m):
    """Per-image partial sums -> full-batch fused BN scale/shift (training mode)."""
    s = jnp.sum(ssum, axis=0)                 # (Cout, 1)
    q = jnp.sum(ssq, axis=0)                  # (Cout, 1)
    mean = s / m
    var = q / m - mean * mean                 # biased variance (PyTorch training)
    scale = gamma.reshape(-1, 1) * jax.lax.rsqrt(var + EPS)
    shift = beta.reshape(-1, 1) - mean * scale
    return scale, shift                       # (Cout, 1) each


def _lrelu(x):
    return jnp.where(x >= 0.0, x, NEG_SLOPE * x)


def double_conv(x_nchw, params):
    """x_nchw: (N, Cin, H, W) float32 -> (N, Cout, H, W) float32."""
    w1, b1, g1, be1, w2, b2, g2, be2 = params
    N, Cin, H, W = x_nchw.shape
    Cout = w1.shape[-1]
    M = N * H * W

    # weights as (Cout, 9*Cin), column order (dy, dx, cin) matching im2col rows
    w1m = w1.reshape(9 * Cin, Cout).T
    w2m = w2.reshape(9 * Cout, Cout).T

    nb = _pick_block_n(N, max(Cin, Cout), H, W)

    # ---- stage 1: conv1 + per-image BN partial stats (Pallas) ----------------
    xp = jnp.pad(x_nchw, ((0, 0), (0, 0), (1, 1), (1, 1)))
    z1, s1, q1 = _conv3x3_pallas(xp, w1m, b1, nb)

    # ---- BN1 + LeakyReLU + pad for conv2 (trivial mem-bound XLA, fuses) ------
    sc1, sh1 = _bn_scale_shift(s1, q1, g1, be1, M)
    y1 = _lrelu(z1 * sc1[None] + sh1[None])
    y1p = jnp.pad(y1.reshape(N, Cout, H, W), ((0, 0), (0, 0), (1, 1), (1, 1)))

    # ---- stage 2: conv2 + per-image BN partial stats (Pallas) ----------------
    z2, s2, q2 = _conv3x3_pallas(y1p, w2m, b2, nb)

    # ---- BN2 + LeakyReLU (XLA; output is already channel-major) --------------
    sc2, sh2 = _bn_scale_shift(s2, q2, g2, be2, M)
    out = _lrelu(z2 * sc2[None] + sh2[None])
    return out.reshape(N, Cout, H, W)          # free reshape, no transpose


# ----------------------------------------------------------------------------
# pure-JAX reference (XLA convs) for the correctness check
# ----------------------------------------------------------------------------
def _reference(x_nchw, params):
    w1, b1, g1, be1, w2, b2, g2, be2 = params

    def conv(x, w, b):
        w_oihw = jnp.transpose(w, (3, 2, 0, 1))
        y = jax.lax.conv_general_dilated(
            x, w_oihw, window_strides=(1, 1), padding=((1, 1), (1, 1)),
            dimension_numbers=("NCHW", "OIHW", "NCHW"))
        return y + b[None, :, None, None]

    def bn_lrelu(x, g, be):
        mu = jnp.mean(x, axis=(0, 2, 3), keepdims=True)
        var = jnp.mean((x - mu) ** 2, axis=(0, 2, 3), keepdims=True)
        y = (x - mu) * jax.lax.rsqrt(var + EPS)
        y = y * g[None, :, None, None] + be[None, :, None, None]
        return jnp.where(y >= 0, y, NEG_SLOPE * y)

    y = bn_lrelu(conv(x_nchw, w1, b1), g1, be1)
    y = bn_lrelu(conv(y, w2, b2), g2, be2)
    return y


if __name__ == "__main__":
    N, Cin, Cout, H, W = 2, 4, 8, 16, 16

    key = jax.random.PRNGKey(0)
    k_x, k_w1, k_b1, k_w2, k_b2 = jax.random.split(key, 5)

    x = jax.random.normal(k_x, (N, Cin, H, W), jnp.float32)

    # deterministic parameter init (kaiming-ish scale; BN affine = defaults)
    w1 = jax.random.normal(k_w1, (3, 3, Cin, Cout), jnp.float32) * (1.0 / (9 * Cin)) ** 0.5
    b1 = jax.random.normal(k_b1, (Cout,), jnp.float32) * 0.01
    g1 = jnp.ones((Cout,), jnp.float32)
    be1 = jnp.zeros((Cout,), jnp.float32)
    w2 = jax.random.normal(k_w2, (3, 3, Cout, Cout), jnp.float32) * (1.0 / (9 * Cout)) ** 0.5
    b2 = jax.random.normal(k_b2, (Cout,), jnp.float32) * 0.01
    g2 = jnp.ones((Cout,), jnp.float32)
    be2 = jnp.zeros((Cout,), jnp.float32)

    params = (w1, b1, g1, be1, w2, b2, g2, be2)

    fn = jax.jit(double_conv)
    out = jax.block_until_ready(fn(x, params))
    ref = jax.block_until_ready(_reference(x, params))

    assert out.shape == (N, Cout, H, W), out.shape
    err = float(jnp.max(jnp.abs(out - ref)))
    assert jnp.allclose(out, ref, atol=2e-4, rtol=2e-4), err
    print("KERNEL_OK")
</pallas_src>

<mosaic_0001>
module attributes {stable_mosaic.version = 11 : i64} {
  func.func @_conv_stats_kernel(%arg0: i32, %arg1: memref<1x4x18x18xf32, #tpu.memory_space<vmem>>, %arg2: memref<8x36xf32, #tpu.memory_space<vmem>>, %arg3: memref<8x1xf32, #tpu.memory_space<vmem>>, %arg4: memref<1x8x256xf32, #tpu.memory_space<vmem>>, %arg5: memref<1x8x1xf32, #tpu.memory_space<vmem>>, %arg6: memref<1x8x1xf32, #tpu.memory_space<vmem>>, %arg7: memref<36x256xf32, #tpu.memory_space<vmem>>) attributes {dimension_semantics = [#tpu.dimension_semantics<parallel>], iteration_bounds = array<i64: 2>, scalar_prefetch = 0 : i64, scratch_operands = 1 : i64, tpu.core_type = #tpu.core_type<tc>, window_params = [{transform_indices = @transform_0, window_bounds = array<i64: 1, 4, 18, 18>}, {pipeline_mode = #tpu.pipeline_mode<synchronous>, transform_indices = @transform_1, window_bounds = array<i64: 8, 36>}, {pipeline_mode = #tpu.pipeline_mode<synchronous>, transform_indices = @transform_2, window_bounds = array<i64: 8, 1>}, {transform_indices = @transform_3, window_bounds = array<i64: 1, 8, 256>}, {transform_indices = @transform_4, window_bounds = array<i64: 1, 8, 1>}, {transform_indices = @transform_5, window_bounds = array<i64: 1, 8, 1>}]} {
    %c0 = arith.constant 0 : index
    %c0_0 = arith.constant 0 : index
    %c0_1 = arith.constant 0 : index
    %c0_2 = arith.constant 0 : index
    %0 = vector.load %arg1[%c0, %c0_0, %c0_1, %c0_2] : memref<1x4x18x18xf32, #tpu.memory_space<vmem>>, vector<1x4x18x18xf32>
    %1 = vector.shape_cast %0 : vector<1x4x18x18xf32> to vector<4x18x18xf32>
    %2 = vector.extract_strided_slice %1 {offsets = [0, 0, 0], sizes = [4, 16, 16], strides = [1, 1, 1]} : vector<4x18x18xf32> to vector<4x16x16xf32>
    %3 = vector.shape_cast %2 : vector<4x16x16xf32> to vector<4x256xf32>
    %c0_3 = arith.constant 0 : index
    %c0_4 = arith.constant 0 : index
    %4 = vector.load %arg7[%c0_3, %c0_4] : memref<36x256xf32, #tpu.memory_space<vmem>>, vector<4x256xf32>
    tpu.vector_store %arg7[%c0_3, %c0_4], %3 {strides = array<i32>} : memref<36x256xf32, #tpu.memory_space<vmem>>, vector<4x256xf32>,
    %5 = vector.extract_strided_slice %1 {offsets = [0, 0, 1], sizes = [4, 16, 16], strides = [1, 1, 1]} : vector<4x18x18xf32> to vector<4x16x16xf32>
    %6 = vector.shape_cast %5 : vector<4x16x16xf32> to vector<4x256xf32>
    %c4 = arith.constant 4 : index
    %c0_5 = arith.constant 0 : index
    %7 = vector.load %arg7[%c4, %c0_5] : memref<36x256xf32, #tpu.memory_space<vmem>>, vector<4x256xf32>
    tpu.vector_store %arg7[%c4, %c0_5], %6 {strides = array<i32>} : memref<36x256xf32, #tpu.memory_space<vmem>>, vector<4x256xf32>,
    %8 = vector.extract_strided_slice %1 {offsets = [0, 0, 2], sizes = [4, 16, 16], strides = [1, 1, 1]} : vector<4x18x18xf32> to vector<4x16x16xf32>
    %9 = vector.shape_cast %8 : vector<4x16x16xf32> to vector<4x256xf32>
    %c8 = arith.constant 8 : index
    %c0_6 = arith.constant 0 : index
    %10 = vector.load %arg7[%c8, %c0_6] : memref<36x256xf32, #tpu.memory_space<vmem>>, vector<4x256xf32>
    tpu.vector_store %arg7[%c8, %c0_6], %9 {strides = array<i32>} : memref<36x256xf32, #tpu.memory_space<vmem>>, vector<4x256xf32>,
    %11 = vector.extract_strided_slice %1 {offsets = [0, 1, 0], sizes = [4, 16, 16], strides = [1, 1, 1]} : vector<4x18x18xf32> to vector<4x16x16xf32>
    %12 = vector.shape_cast %11 : vector<4x16x16xf32> to vector<4x256xf32>
    %c12 = arith.constant 12 : index
    %c0_7 = arith.constant 0 : index
    %13 = vector.load %arg7[%c12, %c0_7] : memref<36x256xf32, #tpu.memory_space<vmem>>, vector<4x256xf32>
    tpu.vector_store %arg7[%c12, %c0_7], %12 {strides = array<i32>} : memref<36x256xf32, #tpu.memory_space<vmem>>, vector<4x256xf32>,
    %14 = vector.extract_strided_slice %1 {offsets = [0, 1, 1], sizes = [4, 16, 16], strides = [1, 1, 1]} : vector<4x18x18xf32> to vector<4x16x16xf32>
    %15 = vector.shape_cast %14 : vector<4x16x16xf32> to vector<4x256xf32>
    %c16 = arith.constant 16 : index
    %c0_8 = arith.constant 0 : index
    %16 = vector.load %arg7[%c16, %c0_8] : memref<36x256xf32, #tpu.memory_space<vmem>>, vector<4x256xf32>
    tpu.vector_store %arg7[%c16, %c0_8], %15 {strides = array<i32>} : memref<36x256xf32, #tpu.memory_space<vmem>>, vector<4x256xf32>,
    %17 = vector.extract_strided_slice %1 {offsets = [0, 1, 2], sizes = [4, 16, 16], strides = [1, 1, 1]} : vector<4x18x18xf32> to vector<4x16x16xf32>
    %18 = vector.shape_cast %17 : vector<4x16x16xf32> to vector<4x256xf32>
    %c20 = arith.constant 20 : index
    %c0_9 = arith.constant 0 : index
    %19 = vector.load %arg7[%c20, %c0_9] : memref<36x256xf32, #tpu.memory_space<vmem>>, vector<4x256xf32>
    tpu.vector_store %arg7[%c20, %c0_9], %18 {strides = array<i32>} : memref<36x256xf32, #tpu.memory_space<vmem>>, vector<4x256xf32>,
    %20 = vector.extract_strided_slice %1 {offsets = [0, 2, 0], sizes = [4, 16, 16], strides = [1, 1, 1]} : vector<4x18x18xf32> to vector<4x16x16xf32>
    %21 = vector.shape_cast %20 : vector<4x16x16xf32> to vector<4x256xf32>
    %c24 = arith.constant 24 : index
    %c0_10 = arith.constant 0 : index
    %22 = vector.load %arg7[%c24, %c0_10] : memref<36x256xf32, #tpu.memory_space<vmem>>, vector<4x256xf32>
    tpu.vector_store %arg7[%c24, %c0_10], %21 {strides = array<i32>} : memref<36x256xf32, #tpu.memory_space<vmem>>, vector<4x256xf32>,
    %23 = vector.extract_strided_slice %1 {offsets = [0, 2, 1], sizes = [4, 16, 16], strides = [1, 1, 1]} : vector<4x18x18xf32> to vector<4x16x16xf32>
    %24 = vector.shape_cast %23 : vector<4x16x16xf32> to vector<4x256xf32>
    %c28 = arith.constant 28 : index
    %c0_11 = arith.constant 0 : index
    %25 = vector.load %arg7[%c28, %c0_11] : memref<36x256xf32, #tpu.memory_space<vmem>>, vector<4x256xf32>
    tpu.vector_store %arg7[%c28, %c0_11], %24 {strides = array<i32>} : memref<36x256xf32, #tpu.memory_space<vmem>>, vector<4x256xf32>,
    %26 = vector.extract_strided_slice %1 {offsets = [0, 2, 2], sizes = [4, 16, 16], strides = [1, 1, 1]} : vector<4x18x18xf32> to vector<4x16x16xf32>
    %27 = vector.shape_cast %26 : vector<4x16x16xf32> to vector<4x256xf32>
    %c32 = arith.constant 32 : index
    %c0_12 = arith.constant 0 : index
    %28 = vector.load %arg7[%c32, %c0_12] : memref<36x256xf32, #tpu.memory_space<vmem>>, vector<4x256xf32>
    tpu.vector_store %arg7[%c32, %c0_12], %27 {strides = array<i32>} : memref<36x256xf32, #tpu.memory_space<vmem>>, vector<4x256xf32>,
    %c0_13 = arith.constant 0 : index
    %c0_14 = arith.constant 0 : index
    %29 = vector.load %arg2[%c0_13, %c0_14] : memref<8x36xf32, #tpu.memory_space<vmem>>, vector<8x36xf32>
    %c0_15 = arith.constant 0 : index
    %c0_16 = arith.constant 0 : index
    %30 = vector.load %arg7[%c0_15, %c0_16] : memref<36x256xf32, #tpu.memory_space<vmem>>, vector<36x256xf32>
    %cst = arith.constant dense<0.000000e+00> : vector<8x256xf32>
    %31 = tpu.matmul %29, %30, %cst {dimension_numbers = #tpu.dot_dimension_numbers<[1], [0], [0], [1], [0, 0, 1, 1], [], []>} : vector<8x36xf32>, vector<36x256xf32>, vector<8x256xf32> -> vector<8x256xf32>
    %c0_17 = arith.constant 0 : index
    %c0_18 = arith.constant 0 : index
    %32 = vector.load %arg3[%c0_17, %c0_18] : memref<8x1xf32, #tpu.memory_space<vmem>>, vector<8x1xf32>
    %33 = vector.broadcast %32 : vector<8x1xf32> to vector<8x256xf32>
    %34 = arith.addf %31, %33 : vector<8x256xf32>
    %c0_19 = arith.constant 0 : index
    %c0_20 = arith.constant 0 : index
    %c0_21 = arith.constant 0 : index
    %35 = vector.load %arg4[%c0_19, %c0_20, %c0_21] : memref<1x8x256xf32, #tpu.memory_space<vmem>>, vector<1x8x256xf32>
    %36 = vector.shape_cast %35 : vector<1x8x256xf32> to vector<8x256xf32>
    %37 = vector.shape_cast %34 : vector<8x256xf32> to vector<1x8x256xf32>
    tpu.vector_store %arg4[%c0_19, %c0_20, %c0_21], %37 {strides = array<i32>} : memref<1x8x256xf32, #tpu.memory_space<vmem>>, vector<1x8x256xf32>,
    %cst_22 = arith.constant dense<0.000000e+00> : vector<8xf32>
    %38 = vector.multi_reduction <add>, %34, %cst_22 [1] : vector<8x256xf32> to vector<8xf32>
    %39 = vector.shape_cast %38 : vector<8xf32> to vector<8x1xf32>
    %c0_23 = arith.constant 0 : index
    %c0_24 = arith.constant 0 : index
    %c0_25 = arith.constant 0 : index
    %40 = vector.load %arg5[%c0_23, %c0_24, %c0_25] : memref<1x8x1xf32, #tpu.memory_space<vmem>>, vector<1x8x1xf32>
    %41 = vector.shape_cast %40 : vector<1x8x1xf32> to vector<8x1xf32>
    %42 = vector.shape_cast %39 : vector<8x1xf32> to vector<1x8x1xf32>
    tpu.vector_store %arg5[%c0_23, %c0_24, %c0_25], %42 {strides = array<i32>} : memref<1x8x1xf32, #tpu.memory_space<vmem>>, vector<1x8x1xf32>,
    %43 = arith.mulf %34, %34 : vector<8x256xf32>
    %cst_26 = arith.constant dense<0.000000e+00> : vector<8xf32>
    %44 = vector.multi_reduction <add>, %43, %cst_26 [1] : vector<8x256xf32> to vector<8xf32>
    %45 = vector.shape_cast %44 : vector<8xf32> to vector<8x1xf32>
    %c0_27 = arith.constant 0 : index
    %c0_28 = arith.constant 0 : index
    %c0_29 = arith.constant 0 : index
    %46 = vector.load %arg6[%c0_27, %c0_28, %c0_29] : memref<1x8x1xf32, #tpu.memory_space<vmem>>, vector<1x8x1xf32>
    %47 = vector.shape_cast %46 : vector<1x8x1xf32> to vector<8x1xf32>
    %48 = vector.shape_cast %45 : vector<8x1xf32> to vector<1x8x1xf32>
    tpu.vector_store %arg6[%c0_27, %c0_28, %c0_29], %48 {strides = array<i32>} : memref<1x8x1xf32, #tpu.memory_space<vmem>>, vector<1x8x1xf32>,
    return
  }
  func.func @transform_0(%arg0: i32) -> (i32, i32, i32, i32) {
    %c0_i32 = arith.constant 0 : i32
    %c0_i32_0 = arith.constant 0 : i32
    %c0_i32_1 = arith.constant 0 : i32
    %c0_i32_2 = arith.constant 0 : i32
    return %arg0, %c0_i32, %c0_i32_0, %c0_i32_1 : i32, i32, i32, i32
  }
  func.func @transform_1(%arg0: i32) -> (i32, i32) {
    %c0_i32 = arith.constant 0 : i32
    %c0_i32_0 = arith.constant 0 : i32
    %c0_i32_1 = arith.constant 0 : i32
    return %c0_i32, %c0_i32_0 : i32, i32
  }
  func.func @transform_2(%arg0: i32) -> (i32, i32) {
    %c0_i32 = arith.constant 0 : i32
    %c0_i32_0 = arith.constant 0 : i32
    %c0_i32_1 = arith.constant 0 : i32
    return %c0_i32, %c0_i32_0 : i32, i32
  }
  func.func @transform_3(%arg0: i32) -> (i32, i32, i32) {
    %c0_i32 = arith.constant 0 : i32
    %c0_i32_0 = arith.constant 0 : i32
    %c0_i32_1 = arith.constant 0 : i32
    return %arg0, %c0_i32, %c0_i32_0 : i32, i32, i32
  }
  func.func @transform_4(%arg0: i32) -> (i32, i32, i32) {
    %c0_i32 = arith.constant 0 : i32
    %c0_i32_0 = arith.constant 0 : i32
    %c0_i32_1 = arith.constant 0 : i32
    return %arg0, %c0_i32, %c0_i32_0 : i32, i32, i32
  }
  func.func @transform_5(%arg0: i32) -> (i32, i32, i32) {
    %c0_i32 = arith.constant 0 : i32
    %c0_i32_0 = arith.constant 0 : i32
    %c0_i32_1 = arith.constant 0 : i32
    return %arg0, %c0_i32, %c0_i32_0 : i32, i32, i32
  }
}

module attributes {stable_mosaic.version = 11 : i64} {
  func.func @_conv_stats_kernel(%arg0: i32, %arg1: memref<1x8x18x18xf32, #tpu.memory_space<vmem>>, %arg2: memref<8x72xf32, #tpu.memory_space<vmem>>, %arg3: memref<8x1xf32, #tpu.memory_space<vmem>>, %arg4: memref<1x8x256xf32, #tpu.memory_space<vmem>>, %arg5: memref<1x8x1xf32, #tpu.memory_space<vmem>>, %arg6: memref<1x8x1xf32, #tpu.memory_space<vmem>>, %arg7: memref<72x256xf32, #tpu.memory_space<vmem>>) attributes {dimension_semantics = [#tpu.dimension_semantics<parallel>], iteration_bounds = array<i64: 2>, scalar_prefetch = 0 : i64, scratch_operands = 1 : i64, tpu.core_type = #tpu.core_type<tc>, window_params = [{transform_indices = @transform_0, window_bounds = array<i64: 1, 8, 18, 18>}, {pipeline_mode = #tpu.pipeline_mode<synchronous>, transform_indices = @transform_1, window_bounds = array<i64: 8, 72>}, {pipeline_mode = #tpu.pipeline_mode<synchronous>, transform_indices = @transform_2, window_bounds = array<i64: 8, 1>}, {transform_indices = @transform_3, window_bounds = array<i64: 1, 8, 256>}, {transform_indices = @transform_4, window_bounds = array<i64: 1, 8, 1>}, {transform_indices = @transform_5, window_bounds = array<i64: 1, 8, 1>}]} {
    %c0 = arith.constant 0 : index
    %c0_0 = arith.constant 0 : index
    %c0_1 = arith.constant 0 : index
    %c0_2 = arith.constant 0 : index
    %0 = vector.load %arg1[%c0, %c0_0, %c0_1, %c0_2] : memref<1x8x18x18xf32, #tpu.memory_space<vmem>>, vector<1x8x18x18xf32>
    %1 = vector.shape_cast %0 : vector<1x8x18x18xf32> to vector<8x18x18xf32>
    %2 = vector.extract_strided_slice %1 {offsets = [0, 0, 0], sizes = [8, 16, 16], strides = [1, 1, 1]} : vector<8x18x18xf32> to vector<8x16x16xf32>
    %3 = vector.shape_cast %2 : vector<8x16x16xf32> to vector<8x256xf32>
    %c0_3 = arith.constant 0 : index
    %c0_4 = arith.constant 0 : index
    %4 = vector.load %arg7[%c0_3, %c0_4] : memref<72x256xf32, #tpu.memory_space<vmem>>, vector<8x256xf32>
    tpu.vector_store %arg7[%c0_3, %c0_4], %3 {strides = array<i32>} : memref<72x256xf32, #tpu.memory_space<vmem>>, vector<8x256xf32>,
    %5 = vector.extract_strided_slice %1 {offsets = [0, 0, 1], sizes = [8, 16, 16], strides = [1, 1, 1]} : vector<8x18x18xf32> to vector<8x16x16xf32>
    %6 = vector.shape_cast %5 : vector<8x16x16xf32> to vector<8x256xf32>
    %c8 = arith.constant 8 : index
    %c0_5 = arith.constant 0 : index
    %7 = vector.load %arg7[%c8, %c0_5] : memref<72x256xf32, #tpu.memory_space<vmem>>, vector<8x256xf32>
    tpu.vector_store %arg7[%c8, %c0_5], %6 {strides = array<i32>} : memref<72x256xf32, #tpu.memory_space<vmem>>, vector<8x256xf32>,
    %8 = vector.extract_strided_slice %1 {offsets = [0, 0, 2], sizes = [8, 16, 16], strides = [1, 1, 1]} : vector<8x18x18xf32> to vector<8x16x16xf32>
    %9 = vector.shape_cast %8 : vector<8x16x16xf32> to vector<8x256xf32>
    %c16 = arith.constant 16 : index
    %c0_6 = arith.constant 0 : index
    %10 = vector.load %arg7[%c16, %c0_6] : memref<72x256xf32, #tpu.memory_space<vmem>>, vector<8x256xf32>
    tpu.vector_store %arg7[%c16, %c0_6], %9 {strides = array<i32>} : memref<72x256xf32, #tpu.memory_space<vmem>>, vector<8x256xf32>,
    %11 = vector.extract_strided_slice %1 {offsets = [0, 1, 0], sizes = [8, 16, 16], strides = [1, 1, 1]} : vector<8x18x18xf32> to vector<8x16x16xf32>
    %12 = vector.shape_cast %11 : vector<8x16x16xf32> to vector<8x256xf32>
    %c24 = arith.constant 24 : index
    %c0_7 = arith.constant 0 : index
    %13 = vector.load %arg7[%c24, %c0_7] : memref<72x256xf32, #tpu.memory_space<vmem>>, vector<8x256xf32>
    tpu.vector_store %arg7[%c24, %c0_7], %12 {strides = array<i32>} : memref<72x256xf32, #tpu.memory_space<vmem>>, vector<8x256xf32>,
    %14 = vector.extract_strided_slice %1 {offsets = [0, 1, 1], sizes = [8, 16, 16], strides = [1, 1, 1]} : vector<8x18x18xf32> to vector<8x16x16xf32>
    %15 = vector.shape_cast %14 : vector<8x16x16xf32> to vector<8x256xf32>
    %c32 = arith.constant 32 : index
    %c0_8 = arith.constant 0 : index
    %16 = vector.load %arg7[%c32, %c0_8] : memref<72x256xf32, #tpu.memory_space<vmem>>, vector<8x256xf32>
    tpu.vector_store %arg7[%c32, %c0_8], %15 {strides = array<i32>} : memref<72x256xf32, #tpu.memory_space<vmem>>, vector<8x256xf32>,
    %17 = vector.extract_strided_slice %1 {offsets = [0, 1, 2], sizes = [8, 16, 16], strides = [1, 1, 1]} : vector<8x18x18xf32> to vector<8x16x16xf32>
    %18 = vector.shape_cast %17 : vector<8x16x16xf32> to vector<8x256xf32>
    %c40 = arith.constant 40 : index
    %c0_9 = arith.constant 0 : index
    %19 = vector.load %arg7[%c40, %c0_9] : memref<72x256xf32, #tpu.memory_space<vmem>>, vector<8x256xf32>
    tpu.vector_store %arg7[%c40, %c0_9], %18 {strides = array<i32>} : memref<72x256xf32, #tpu.memory_space<vmem>>, vector<8x256xf32>,
    %20 = vector.extract_strided_slice %1 {offsets = [0, 2, 0], sizes = [8, 16, 16], strides = [1, 1, 1]} : vector<8x18x18xf32> to vector<8x16x16xf32>
    %21 = vector.shape_cast %20 : vector<8x16x16xf32> to vector<8x256xf32>
    %c48 = arith.constant 48 : index
    %c0_10 = arith.constant 0 : index
    %22 = vector.load %arg7[%c48, %c0_10] : memref<72x256xf32, #tpu.memory_space<vmem>>, vector<8x256xf32>
    tpu.vector_store %arg7[%c48, %c0_10], %21 {strides = array<i32>} : memref<72x256xf32, #tpu.memory_space<vmem>>, vector<8x256xf32>,
    %23 = vector.extract_strided_slice %1 {offsets = [0, 2, 1], sizes = [8, 16, 16], strides = [1, 1, 1]} : vector<8x18x18xf32> to vector<8x16x16xf32>
    %24 = vector.shape_cast %23 : vector<8x16x16xf32> to vector<8x256xf32>
    %c56 = arith.constant 56 : index
    %c0_11 = arith.constant 0 : index
    %25 = vector.load %arg7[%c56, %c0_11] : memref<72x256xf32, #tpu.memory_space<vmem>>, vector<8x256xf32>
    tpu.vector_store %arg7[%c56, %c0_11], %24 {strides = array<i32>} : memref<72x256xf32, #tpu.memory_space<vmem>>, vector<8x256xf32>,
    %26 = vector.extract_strided_slice %1 {offsets = [0, 2, 2], sizes = [8, 16, 16], strides = [1, 1, 1]} : vector<8x18x18xf32> to vector<8x16x16xf32>
    %27 = vector.shape_cast %26 : vector<8x16x16xf32> to vector<8x256xf32>
    %c64 = arith.constant 64 : index
    %c0_12 = arith.constant 0 : index
    %28 = vector.load %arg7[%c64, %c0_12] : memref<72x256xf32, #tpu.memory_space<vmem>>, vector<8x256xf32>
    tpu.vector_store %arg7[%c64, %c0_12], %27 {strides = array<i32>} : memref<72x256xf32, #tpu.memory_space<vmem>>, vector<8x256xf32>,
    %c0_13 = arith.constant 0 : index
    %c0_14 = arith.constant 0 : index
    %29 = vector.load %arg2[%c0_13, %c0_14] : memref<8x72xf32, #tpu.memory_space<vmem>>, vector<8x72xf32>
    %c0_15 = arith.constant 0 : index
    %c0_16 = arith.constant 0 : index
    %30 = vector.load %arg7[%c0_15, %c0_16] : memref<72x256xf32, #tpu.memory_space<vmem>>, vector<72x256xf32>
    %cst = arith.constant dense<0.000000e+00> : vector<8x256xf32>
    %31 = tpu.matmul %29, %30, %cst {dimension_numbers = #tpu.dot_dimension_numbers<[1], [0], [0], [1], [0, 0, 1, 1], [], []>} : vector<8x72xf32>, vector<72x256xf32>, vector<8x256xf32> -> vector<8x256xf32>
    %c0_17 = arith.constant 0 : index
    %c0_18 = arith.constant 0 : index
    %32 = vector.load %arg3[%c0_17, %c0_18] : memref<8x1xf32, #tpu.memory_space<vmem>>, vector<8x1xf32>
    %33 = vector.broadcast %32 : vector<8x1xf32> to vector<8x256xf32>
    %34 = arith.addf %31, %33 : vector<8x256xf32>
    %c0_19 = arith.constant 0 : index
    %c0_20 = arith.constant 0 : index
    %c0_21 = arith.constant 0 : index
    %35 = vector.load %arg4[%c0_19, %c0_20, %c0_21] : memref<1x8x256xf32, #tpu.memory_space<vmem>>, vector<1x8x256xf32>
    %36 = vector.shape_cast %35 : vector<1x8x256xf32> to vector<8x256xf32>
    %37 = vector.shape_cast %34 : vector<8x256xf32> to vector<1x8x256xf32>
    tpu.vector_store %arg4[%c0_19, %c0_20, %c0_21], %37 {strides = array<i32>} : memref<1x8x256xf32, #tpu.memory_space<vmem>>, vector<1x8x256xf32>,
    %cst_22 = arith.constant dense<0.000000e+00> : vector<8xf32>
    %38 = vector.multi_reduction <add>, %34, %cst_22 [1] : vector<8x256xf32> to vector<8xf32>
    %39 = vector.shape_cast %38 : vector<8xf32> to vector<8x1xf32>
    %c0_23 = arith.constant 0 : index
    %c0_24 = arith.constant 0 : index
    %c0_25 = arith.constant 0 : index
    %40 = vector.load %arg5[%c0_23, %c0_24, %c0_25] : memref<1x8x1xf32, #tpu.memory_space<vmem>>, vector<1x8x1xf32>
    %41 = vector.shape_cast %40 : vector<1x8x1xf32> to vector<8x1xf32>
    %42 = vector.shape_cast %39 : vector<8x1xf32> to vector<1x8x1xf32>
    tpu.vector_store %arg5[%c0_23, %c0_24, %c0_25], %42 {strides = array<i32>} : memref<1x8x1xf32, #tpu.memory_space<vmem>>, vector<1x8x1xf32>,
    %43 = arith.mulf %34, %34 : vector<8x256xf32>
    %cst_26 = arith.constant dense<0.000000e+00> : vector<8xf32>
    %44 = vector.multi_reduction <add>, %43, %cst_26 [1] : vector<8x256xf32> to vector<8xf32>
    %45 = vector.shape_cast %44 : vector<8xf32> to vector<8x1xf32>
    %c0_27 = arith.constant 0 : index
    %c0_28 = arith.constant 0 : index
    %c0_29 = arith.constant 0 : index
    %46 = vector.load %arg6[%c0_27, %c0_28, %c0_29] : memref<1x8x1xf32, #tpu.memory_space<vmem>>, vector<1x8x1xf32>
    %47 = vector.shape_cast %46 : vector<1x8x1xf32> to vector<8x1xf32>
    %48 = vector.shape_cast %45 : vector<8x1xf32> to vector<1x8x1xf32>
    tpu.vector_store %arg6[%c0_27, %c0_28, %c0_29], %48 {strides = array<i32>} : memref<1x8x1xf32, #tpu.memory_space<vmem>>, vector<1x8x1xf32>,
    return
  }
  func.func @transform_0(%arg0: i32) -> (i32, i32, i32, i32) {
    %c0_i32 = arith.constant 0 : i32
    %c0_i32_0 = arith.constant 0 : i32
    %c0_i32_1 = arith.constant 0 : i32
    %c0_i32_2 = arith.constant 0 : i32
    return %arg0, %c0_i32, %c0_i32_0, %c0_i32_1 : i32, i32, i32, i32
  }
  func.func @transform_1(%arg0: i32) -> (i32, i32) {
    %c0_i32 = arith.constant 0 : i32
    %c0_i32_0 = arith.constant 0 : i32
    %c0_i32_1 = arith.constant 0 : i32
    return %c0_i32, %c0_i32_0 : i32, i32
  }
  func.func @transform_2(%arg0: i32) -> (i32, i32) {
    %c0_i32 = arith.constant 0 : i32
    %c0_i32_0 = arith.constant 0 : i32
    %c0_i32_1 = arith.constant 0 : i32
    return %c0_i32, %c0_i32_0 : i32, i32
  }
  func.func @transform_3(%arg0: i32) -> (i32, i32, i32) {
    %c0_i32 = arith.constant 0 : i32
    %c0_i32_0 = arith.constant 0 : i32
    %c0_i32_1 = arith.constant 0 : i32
    return %arg0, %c0_i32, %c0_i32_0 : i32, i32, i32
  }
  func.func @transform_4(%arg0: i32) -> (i32, i32, i32) {
    %c0_i32 = arith.constant 0 : i32
    %c0_i32_0 = arith.constant 0 : i32
    %c0_i32_1 = arith.constant 0 : i32
    return %arg0, %c0_i32, %c0_i32_0 : i32, i32, i32
  }
  func.func @transform_5(%arg0: i32) -> (i32, i32, i32) {
    %c0_i32 = arith.constant 0 : i32
    %c0_i32_0 = arith.constant 0 : i32
    %c0_i32_1 = arith.constant 0 : i32
    return %arg0, %c0_i32, %c0_i32_0 : i32, i32, i32
  }
}

</mosaic_0001>

<llo_original>
// kernel: double_conv.3
$region0: #{double_conv.3}
  #allocation0 [shape = 'u32[]', space=smem, size = 0x4, offset = 0x4, fixed_abs, tag = 'smem constant byte address 0x4 - core index']
  #allocation1 [shape = 'u32[144,128]{1,0:T(1,128)}', space=vmem, size = 0x12000, scoped, tag = 'internal scratch']
  #allocation2 [shape = 'f32[72,256]{1,0:T(8,128)}', space=vmem, size = 0x12000, scoped, tag = 'scratch operand']
  %s0 = inlined_call_operand.vmem [shape: f32[2,8,18,18], index: 0, kind: input, shape index: {}]
  %s1 = inlined_call_operand.vmem [shape: f32[8,72], index: 1, kind: input, shape index: {}]
  %s2 = inlined_call_operand.vmem [shape: f32[8,1], index: 2, kind: input, shape index: {}]
  %s3 = inlined_call_operand.vmem [shape: f32[2,8,256], index: 3, kind: output, shape index: {0}]
  %s4 = inlined_call_operand.vmem [shape: f32[2,8,1], index: 4, kind: output, shape index: {1}]
  %s5 = inlined_call_operand.vmem [shape: f32[2,8,1], index: 5, kind: output, shape index: {2}]
  %6 = xla_tuple %s3, %s4, %s5
  %s7 = sld [smem:[#allocation0]]
  $region61: #{double_conv.3} parent=0
    _
  %s9 = ssub.s32 1, %s7
  %s10 = scalar_select 0, %s9, %s7
  loop: start=0, step=1, limit=4
  $region2: #{double_conv.3} parent=0 // loop_pre_header
    _
  $region3: #{double_conv.3} parent=0 // loop_header
    %s12 = sphi 0, %s16
    %p13 = scmp.ge.s32.totalorder %s12, 4
    %s22 = sphi 0, %s24
    %s25 = sphi 0, %s22
    %s26 = sphi 0, %s25
    %s42 = sphi 0, %s26
    %s46 = sphi 0, %s46
    %s48 = sphi 0, %s46
    %s49 = sphi 0, %s48
    %s63 = sphi 0, %s49
    %s67 = sphi 0, %s67
    %s69 = sphi 0, %s67
    %s70 = sphi 0, %s69
    %s84 = sphi 0, %s70
    %s90 = sphi 0, %s92
    %s93 = sphi 0, %s90
    %s94 = sphi 0, %s93
    %s110 = sphi 0, %s94
    %s116 = sphi 0, %s118
    %s119 = sphi 0, %s116
    %s120 = sphi 0, %s119
    %s136 = sphi 0, %s120
    %s142 = sphi 0, %s144
    %s145 = sphi 0, %s142
    %s146 = sphi 0, %s145
    %s162 = sphi 0, %s146
  $region4: #{double_conv.3} parent=0 // loop_header_branch
    %15 = sbr.rel (%p13) target = $region8
  $region5: #{double_conv.3} parent=0 // loop_body
    %s17 = ssub.s32 %s12, 1
    %s18 = ssub.s32 %s12, 2
    %s19 = sadd.s32 %s12, 1
    %s20 = ssub.s32 %s12, %s19
    %p21 = scmp.eq.s32.totalorder %s20, 0
    %s23 = sadd.s32 %s22, 1
    %s24 = scalar_select %p21, %s22, %s23
    %p27 = pneg %p21
    %p28 = scmp.eq.s32.totalorder %s12, 1
    %p29 = por %p27, %p28
    %p30 = scmp.ne.s32.totalorder %s22, %s25
    %p31 = scmp.eq.s32.totalorder %s12, 0
    %p32 = por %p30, %p31
    %p33 = scmp.ne.s32.totalorder %s22, %s25
    %p34 = scmp.eq.s32.totalorder %s17, 1
    %p35 = por %p33, %p34
    %p36 = scmp.ne.s32.totalorder %s25, %s26
    %p37 = scmp.eq.s32.totalorder %s17, 0
    %p38 = por %p36, %p37
    %p39 = scmp.ne.s32.totalorder %s25, %s26
    %p40 = scmp.eq.s32.totalorder %s18, 1
    %p41 = por %p39, %p40
    %p43 = scmp.ne.s32.totalorder %s26, %s42
    %p44 = scmp.eq.s32.totalorder %s18, 0
    %p45 = por %p43, %p44
    %s47 = sadd.s32 %s46, 1
    %p50 = scmp.eq.s32.totalorder %s12, 1
    %p51 = scmp.ne.s32.totalorder %s46, %s48
    %p52 = scmp.eq.s32.totalorder %s12, 0
    %p53 = por %p51, %p52
    %p54 = scmp.ne.s32.totalorder %s46, %s48
    %p55 = scmp.eq.s32.totalorder %s17, 1
    %p56 = por %p54, %p55
    %p57 = scmp.ne.s32.totalorder %s48, %s49
    %p58 = scmp.eq.s32.totalorder %s17, 0
    %p59 = por %p57, %p58
    %p60 = scmp.ne.s32.totalorder %s48, %s49
    %p61 = scmp.eq.s32.totalorder %s18, 1
    %p62 = por %p60, %p61
    %p64 = scmp.ne.s32.totalorder %s49, %s63
    %p65 = scmp.eq.s32.totalorder %s18, 0
    %p66 = por %p64, %p65
    %s68 = sadd.s32 %s67, 1
    %p71 = scmp.eq.s32.totalorder %s12, 1
    %p72 = scmp.ne.s32.totalorder %s67, %s69
    %p73 = scmp.eq.s32.totalorder %s12, 0
    %p74 = por %p72, %p73
    %p75 = scmp.ne.s32.totalorder %s67, %s69
    %p76 = scmp.eq.s32.totalorder %s17, 1
    %p77 = por %p75, %p76
    %p78 = scmp.ne.s32.totalorder %s69, %s70
    %p79 = scmp.eq.s32.totalorder %s17, 0
    %p80 = por %p78, %p79
    %p81 = scmp.ne.s32.totalorder %s69, %s70
    %p82 = scmp.eq.s32.totalorder %s18, 1
    %p83 = por %p81, %p82
    %p85 = scmp.ne.s32.totalorder %s70, %s84
    %p86 = scmp.eq.s32.totalorder %s18, 0
    %p87 = por %p85, %p86
    %s88 = ssub.s32 %s12, %s19
    %p89 = scmp.eq.s32.totalorder %s88, 0
    %s91 = sadd.s32 %s90, 1
    %s92 = scalar_select %p89, %s90, %s91
    %p95 = pneg %p89
    %p96 = scmp.eq.s32.totalorder %s12, 1
    %p97 = por %p95, %p96
    %p98 = scmp.ne.s32.totalorder %s90, %s93
    %p99 = scmp.eq.s32.totalorder %s12, 0
    %p100 = por %p98, %p99
    %p101 = scmp.ne.s32.totalorder %s90, %s93
    %p102 = scmp.eq.s32.totalorder %s17, 1
    %p103 = por %p101, %p102
    %p104 = scmp.ne.s32.totalorder %s93, %s94
    %p105 = scmp.eq.s32.totalorder %s17, 0
    %p106 = por %p104, %p105
    %p107 = scmp.ne.s32.totalorder %s93, %s94
    %p108 = scmp.eq.s32.totalorder %s18, 1
    %p109 = por %p107, %p108
    %p111 = scmp.ne.s32.totalorder %s94, %s110
    %p112 = scmp.eq.s32.totalorder %s18, 0
    %p113 = por %p111, %p112
    %s114 = ssub.s32 %s12, %s19
    %p115 = scmp.eq.s32.totalorder %s114, 0
    %s117 = sadd.s32 %s116, 1
    %s118 = scalar_select %p115, %s116, %s117
    %p121 = pneg %p115
    %p122 = scmp.eq.s32.totalorder %s12, 1
    %p123 = por %p121, %p122
    %p124 = scmp.ne.s32.totalorder %s116, %s119
    %p125 = scmp.eq.s32.totalorder %s12, 0
    %p126 = por %p124, %p125
    %p127 = scmp.ne.s32.totalorder %s116, %s119
    %p128 = scmp.eq.s32.totalorder %s17, 1
    %p129 = por %p127, %p128
    %p130 = scmp.ne.s32.totalorder %s119, %s120
    %p131 = scmp.eq.s32.totalorder %s17, 0
    %p132 = por %p130, %p131
    %p133 = scmp.ne.s32.totalorder %s119, %s120
    %p134 = scmp.eq.s32.totalorder %s18, 1
    %p135 = por %p133, %p134
    %p137 = scmp.ne.s32.totalorder %s120, %s136
    %p138 = scmp.eq.s32.totalorder %s18, 0
    %p139 = por %p137, %p138
    %s140 = ssub.s32 %s12, %s19
    %p141 = scmp.eq.s32.totalorder %s140, 0
    %s143 = sadd.s32 %s142, 1
    %s144 = scalar_select %p141, %s142, %s143
    %p147 = pneg %p141
    %p148 = scmp.eq.s32.totalorder %s12, 1
    %p149 = por %p147, %p148
    %p150 = scmp.ne.s32.totalorder %s142, %s145
    %p151 = scmp.eq.s32.totalorder %s12, 0
    %p152 = por %p150, %p151
    %p153 = scmp.ne.s32.totalorder %s142, %s145
    %p154 = scmp.eq.s32.totalorder %s17, 1
    %p155 = por %p153, %p154
    %p156 = scmp.ne.s32.totalorder %s145, %s146
    %p157 = scmp.eq.s32.totalorder %s17, 0
    %p158 = por %p156, %p157
    %p159 = scmp.ne.s32.totalorder %s145, %s146
    %p160 = scmp.eq.s32.totalorder %s18, 1
    %p161 = por %p159, %p160
    %p163 = scmp.ne.s32.totalorder %s146, %s162
    %p164 = scmp.eq.s32.totalorder %s18, 0
    %p165 = por %p163, %p164
    %p166 = scmp.le.s32.totalorder 1, %s12
    %p167 = scmp.lt.s32.totalorder %s12, 3
    %p168 = pnand %p166, %p167
    %p169 = pneg %p168
    // Predicated region
    $region9: #{double_conv.3} parent=5 // pred_check
      _
    $region10: #{double_conv.3} parent=5 // pred_check_branch
      %171 = sbr.rel (%p168) target = $region12
    $region11: #{double_conv.3} parent=5 // pred_region
      %s172 = ssub.s32 %s12, 1
      // Predicated region
      $region13: #{double_conv.3} parent=11 // pred_check
        %p173 = pneg %p59
      $region14: #{double_conv.3} parent=11 // pred_check_branch
        %175 = sbr.rel (%p173) target = $region16
      $region15: #{double_conv.3} parent=11 // pred_region
        _
      $region16: #{double_conv.3} parent=11 // pred_fallthru
        _
      // Predicated region
      $region17: #{double_conv.3} parent=11 // pred_check
        %p176 = pneg %p80
      $region18: #{double_conv.3} parent=11 // pred_check_branch
        %178 = sbr.rel (%p176) target = $region20
      $region19: #{double_conv.3} parent=11 // pred_region
        _
      $region20: #{double_conv.3} parent=11 // pred_fallthru
        _
    $region12: #{double_conv.3} parent=5 // pred_fallthru
      _
    %p179 = scmp.lt.s32.totalorder %s12, 2
    // Predicated region
    $region21: #{double_conv.3} parent=5 // pred_check
      %p180 = pneg %p179
    $region22: #{double_conv.3} parent=5 // pred_check_branch
      %182 = sbr.rel (%p180) target = $region24
    $region23: #{double_conv.3} parent=5 // pred_region
      // Predicated region
      $region25: #{double_conv.3} parent=23 // pred_check
        %p183 = pneg %p32
      $region26: #{double_conv.3} parent=23 // pred_check_branch
        %185 = sbr.rel (%p183) target = $region28
      $region27: #{double_conv.3} parent=23 // pred_region
        %p186 = scmp.lt.s32.totalorder %s12, 1
        %s187 = scalar_select %p186, %s12, 1
        %s188 = smul.addr %s187, 24
        %s189 = smul.addr %s188, 8
        %s190 = scalar_lea.vmem %s0, %s189
      $region28: #{double_conv.3} parent=23 // pred_fallthru
        _
    $region24: #{double_conv.3} parent=5 // pred_fallthru
      _
    %p191 = scmp.le.s32.totalorder 1, %s12
    %p192 = scmp.lt.s32.totalorder %s12, 3
    %p193 = pnand %p191, %p192
    %p194 = pneg %p193
    // Predicated region
    $region29: #{double_conv.3} parent=5 // pred_check
      _
    $region30: #{double_conv.3} parent=5 // pred_check_branch
      %196 = sbr.rel (%p193) target = $region32
    $region31: #{double_conv.3} parent=5 // pred_region
      %s197 = ssub.s32 %s12, 1
      %p198 = scmp.lt.s32.totalorder %s17, 1
      %s199 = scalar_select %p198, %s17, 1
      %s200 = smul.addr %s199, 24
      %s201 = smul.addr %s200, 8
      %s202 = scalar_lea.vmem %s0, %s201
      %p203 = pneg %p38
      %p204 = pneg %p35
      %p205 = pneg %p59
      %p206 = pneg %p56
      %p207 = pneg %p80
      %p208 = pneg %p77
      %p209 = pneg %p106
      %p210 = pneg %p103
      %p211 = scmp.lt.s32.totalorder %s17, 1
      %s212 = scalar_select %p211, %s17, 1
      %s213 = smul.addr %s212, 2
      %s214 = smul.addr %s213, 8
      %s215 = scalar_lea.vmem %s3, %s214
      %p216 = pneg %p132
      %p217 = pneg %p129
      %p218 = scmp.lt.s32.totalorder %s17, 1
      %s219 = scalar_select %p218, %s17, 1
      %s220 = smul.addr %s219, 8
      %s221 = scalar_lea.vmem %s4, %s220
      %p222 = pneg %p158
      %p223 = pneg %p155
      %p224 = scmp.lt.s32.totalorder %s17, 1
      %s225 = scalar_select %p224, %s17, 1
      %s226 = smul.addr %s225, 8
      %s227 = scalar_lea.vmem %s5, %s226
      %p228 = scmp.lt.s32.totalorder %s17, 1
      %s229 = scalar_select %p228, %s17, 1
      %s230 = smul.addr %s229, 24
      %s231 = smul.addr %s230, 8
      %s232 = scalar_lea.vmem %s0, %s231
      %p233 = scmp.lt.s32.totalorder %s17, 1
      %s234 = scalar_select %p233, %s17, 1
      %s235 = smul.addr %s234, 2
      %s236 = smul.addr %s235, 8
      %s237 = scalar_lea.vmem %s3, %s236
      %p238 = scmp.lt.s32.totalorder %s17, 1
      %s239 = scalar_select %p238, %s17, 1
      %s240 = smul.addr %s239, 8
      %s241 = scalar_lea.vmem %s4, %s240
      %p242 = scmp.lt.s32.totalorder %s17, 1
      %s243 = scalar_select %p242, %s17, 1
      %s244 = smul.addr %s243, 8
      %s245 = scalar_lea.vmem %s5, %s244
      %v246 = vld [vmem:[%s232] sm:$0xff]
      %v247 = vld [vmem:[%s232 + $0x8] sm:$0xff]
      %v248 = vld [vmem:[%s232 + $0x10] sm:$0x3]
      %v249 = vld [vmem:[%s232 + $0x18] sm:$0xff]
      %v250 = vld [vmem:[%s232 + $0x20] sm:$0xff]
      %v251 = vld [vmem:[%s232 + $0x28] sm:$0x3]
      %v252 = vld [vmem:[%s232 + $0x30] sm:$0xff]
      %v253 = vld [vmem:[%s232 + $0x38] sm:$0xff]
      %v254 = vld [vmem:[%s232 + $0x40] sm:$0x3]
      %v255 = vld [vmem:[%s232 + $0x48] sm:$0xff]
      %v256 = vld [vmem:[%s232 + $0x50] sm:$0xff]
      %v257 = vld [vmem:[%s232 + $0x58] sm:$0x3]
      %v258 = vld [vmem:[%s232 + $0x60] sm:$0xff]
      %v259 = vld [vmem:[%s232 + $0x68] sm:$0xff]
      %v260 = vld [vmem:[%s232 + $0x70] sm:$0x3]
      %v261 = vld [vmem:[%s232 + $0x78] sm:$0xff]
      %v262 = vld [vmem:[%s232 + $0x80] sm:$0xff]
      %v263 = vld [vmem:[%s232 + $0x88] sm:$0x3]
      %v264 = vld [vmem:[%s232 + $0x90] sm:$0xff]
      %v265 = vld [vmem:[%s232 + $0x98] sm:$0xff]
      %v266 = vld [vmem:[%s232 + $0xa0] sm:$0x3]
      %v267 = vld [vmem:[%s232 + $0xa8] sm:$0xff]
      %v268 = vld [vmem:[%s232 + $0xb0] sm:$0xff]
      %v269 = vld [vmem:[%s232 + $0xb8] sm:$0x3]
      %v270 = vcombine.low %v246, %v252
      %v271 = vcombine.high %v246, %v252
      %v273 = vunpack.c.l.s4 1983009808
      %v274 = vunpack.c.0.s8 %v273
      %v275 = vlaneseq
      %v276 = vshrl.u32 %v275, 7
      %v277 = vsub.s32 %v274, %v276
      %v278 = vrot.slane %v270, %v277
      %v280 = vunpack.c.l.s4 1983009808
      %v281 = vunpack.c.0.s8 %v280
      %v282 = vlaneseq
      %v283 = vshrl.u32 %v282, 7
      %v284 = vsub.s32 %v281, %v283
      %v285 = vrot.slane %v271, %v284
      %v286 = vcombine.low %v249, %v255
      %v287 = vcombine.high %v249, %v255
      %v289 = vunpack.c.l.s4 1983009808
      %v290 = vunpack.c.0.s8 %v289
      %v291 = vlaneseq
      %v292 = vshrl.u32 %v291, 7
      %v293 = vsub.s32 %v290, %v292
      %v294 = vrot.slane %v286, %v293
      %v296 = vunpack.c.l.s4 1983009808
      %v297 = vunpack.c.0.s8 %v296
      %v298 = vlaneseq
      %v299 = vshrl.u32 %v298, 7
      %v300 = vsub.s32 %v297, %v299
      %v301 = vrot.slane %v287, %v300
      %v302 = vcombine.low %v258, %v264
      %v303 = vcombine.high %v258, %v264
      %v305 = vunpack.c.l.s4 1983009808
      %v306 = vunpack.c.0.s8 %v305
      %v307 = vlaneseq
      %v308 = vshrl.u32 %v307, 7
      %v309 = vsub.s32 %v306, %v308
      %v310 = vrot.slane %v302, %v309
      %v312 = vunpack.c.l.s4 1983009808
      %v313 = vunpack.c.0.s8 %v312
      %v314 = vlaneseq
      %v315 = vshrl.u32 %v314, 7
      %v316 = vsub.s32 %v313, %v315
      %v317 = vrot.slane %v303, %v316
      %v318 = vcombine.low %v261, %v267
      %v319 = vcombine.high %v261, %v267
      %v321 = vunpack.c.l.s4 1983009808
      %v322 = vunpack.c.0.s8 %v321
      %v323 = vlaneseq
      %v324 = vshrl.u32 %v323, 7
      %v325 = vsub.s32 %v322, %v324
      %v326 = vrot.slane %v318, %v325
      %v328 = vunpack.c.l.s4 1983009808
      %v329 = vunpack.c.0.s8 %v328
      %v330 = vlaneseq
      %v331 = vshrl.u32 %v330, 7
      %v332 = vsub.s32 %v329, %v331
      %v333 = vrot.slane %v319, %v332
      %v334 = vcombine.low %v278, %v294
      %v335 = vcombine.high %v278, %v294
      %v337 = vunpack.c.l.s4 1934713408
      %v338 = vunpack.c.0.s8 %v337
      %v339 = vlaneseq
      %v340 = vshrl.u32 %v339, 7
      %v341 = vsub.s32 %v338, %v340
      %v342 = vrot.slane %v334, %v341
      %v344 = vunpack.c.l.s4 1934713408
      %v345 = vunpack.c.0.s8 %v344
      %v346 = vlaneseq
      %v347 = vshrl.u32 %v346, 7
      %v348 = vsub.s32 %v345, %v347
      %v349 = vrot.slane %v335, %v348
      %v350 = vcombine.low %v285, %v301
      %v351 = vcombine.high %v285, %v301
      %v353 = vunpack.c.l.s4 1934713408
      %v354 = vunpack.c.0.s8 %v353
      %v355 = vlaneseq
      %v356 = vshrl.u32 %v355, 7
      %v357 = vsub.s32 %v354, %v356
      %v358 = vrot.slane %v350, %v357
      %v360 = vunpack.c.l.s4 1934713408
      %v361 = vunpack.c.0.s8 %v360
      %v362 = vlaneseq
      %v363 = vshrl.u32 %v362, 7
      %v364 = vsub.s32 %v361, %v363
      %v365 = vrot.slane %v351, %v364
      %v366 = vcombine.low %v310, %v326
      %v367 = vcombine.high %v310, %v326
      %v369 = vunpack.c.l.s4 1934713408
      %v370 = vunpack.c.0.s8 %v369
      %v371 = vlaneseq
      %v372 = vshrl.u32 %v371, 7
      %v373 = vsub.s32 %v370, %v372
      %v374 = vrot.slane %v366, %v373
      %v376 = vunpack.c.l.s4 1934713408
      %v377 = vunpack.c.0.s8 %v376
      %v378 = vlaneseq
      %v379 = vshrl.u32 %v378, 7
      %v380 = vsub.s32 %v377, %v379
      %v381 = vrot.slane %v367, %v380
      %v382 = vcombine.low %v317, %v333
      %v383 = vcombine.high %v317, %v333
      %v385 = vunpack.c.l.s4 1934713408
      %v386 = vunpack.c.0.s8 %v385
      %v387 = vlaneseq
      %v388 = vshrl.u32 %v387, 7
      %v389 = vsub.s32 %v386, %v388
      %v390 = vrot.slane %v382, %v389
      %v392 = vunpack.c.l.s4 1934713408
      %v393 = vunpack.c.0.s8 %v392
      %v394 = vlaneseq
      %v395 = vshrl.u32 %v394, 7
      %v396 = vsub.s32 %v393, %v395
      %v397 = vrot.slane %v383, %v396
      %v398 = vcombine.low %v342, %v374
      %v399 = vcombine.high %v342, %v374
      %v400 = vcombine.low %v349, %v381
      %v401 = vcombine.high %v349, %v381
      %v402 = vcombine.low %v358, %v390
      %v403 = vcombine.high %v358, %v390
      %v404 = vcombine.low %v365, %v397
      %v405 = vcombine.high %v365, %v397
      %v406 = vcombine.low %v247, %v253
      %v407 = vcombine.high %v247, %v253
      %v409 = vunpack.c.l.s4 1983009808
      %v410 = vunpack.c.0.s8 %v409
      %v411 = vlaneseq
      %v412 = vshrl.u32 %v411, 7
      %v413 = vsub.s32 %v410, %v412
      %v414 = vrot.slane %v406, %v413
      %v416 = vunpack.c.l.s4 1983009808
      %v417 = vunpack.c.0.s8 %v416
      %v418 = vlaneseq
      %v419 = vshrl.u32 %v418, 7
      %v420 = vsub.s32 %v417, %v419
      %v421 = vrot.slane %v407, %v420
      %v422 = vcombine.low %v250, %v256
      %v423 = vcombine.high %v250, %v256
      %v425 = vunpack.c.l.s4 1983009808
      %v426 = vunpack.c.0.s8 %v425
      %v427 = vlaneseq
      %v428 = vshrl.u32 %v427, 7
      %v429 = vsub.s32 %v426, %v428
      %v430 = vrot.slane %v422, %v429
      %v432 = vunpack.c.l.s4 1983009808
      %v433 = vunpack.c.0.s8 %v432
      %v434 = vlaneseq
      %v435 = vshrl.u32 %v434, 7
      %v436 = vsub.s32 %v433, %v435
      %v437 = vrot.slane %v423, %v436
      %v438 = vcombine.low %v259, %v265
      %v439 = vcombine.high %v259, %v265
      %v441 = vunpack.c.l.s4 1983009808
      %v442 = vunpack.c.0.s8 %v441
      %v443 = vlaneseq
      %v444 = vshrl.u32 %v443, 7
      %v445 = vsub.s32 %v442, %v444
      %v446 = vrot.slane %v438, %v445
      %v448 = vunpack.c.l.s4 1983009808
      %v449 = vunpack.c.0.s8 %v448
      %v450 = vlaneseq
      %v451 = vshrl.u32 %v450, 7
      %v452 = vsub.s32 %v449, %v451
      %v453 = vrot.slane %v439, %v452
      %v454 = vcombine.low %v262, %v268
      %v455 = vcombine.high %v262, %v268
      %v457 = vunpack.c.l.s4 1983009808
      %v458 = vunpack.c.0.s8 %v457
      %v459 = vlaneseq
      %v460 = vshrl.u32 %v459, 7
      %v461 = vsub.s32 %v458, %v460
      %v462 = vrot.slane %v454, %v461
      %v464 = vunpack.c.l.s4 1983009808
      %v465 = vunpack.c.0.s8 %v464
      %v466 = vlaneseq
      %v467 = vshrl.u32 %v466, 7
      %v468 = vsub.s32 %v465, %v467
      %v469 = vrot.slane %v455, %v468
      %v470 = vcombine.low %v414, %v430
      %v471 = vcombine.high %v414, %v430
      %v473 = vunpack.c.l.s4 1934713408
      %v474 = vunpack.c.0.s8 %v473
      %v475 = vlaneseq
      %v476 = vshrl.u32 %v475, 7
      %v477 = vsub.s32 %v474, %v476
      %v478 = vrot.slane %v470, %v477
      %v480 = vunpack.c.l.s4 1934713408
      %v481 = vunpack.c.0.s8 %v480
      %v482 = vlaneseq
      %v483 = vshrl.u32 %v482, 7
      %v484 = vsub.s32 %v481, %v483
      %v485 = vrot.slane %v471, %v484
      %v486 = vcombine.low %v421, %v437
      %v487 = vcombine.high %v421, %v437
      %v489 = vunpack.c.l.s4 1934713408
      %v490 = vunpack.c.0.s8 %v489
      %v491 = vlaneseq
      %v492 = vshrl.u32 %v491, 7
      %v493 = vsub.s32 %v490, %v492
      %v494 = vrot.slane %v486, %v493
      %v496 = vunpack.c.l.s4 1934713408
      %v497 = vunpack.c.0.s8 %v496
      %v498 = vlaneseq
      %v499 = vshrl.u32 %v498, 7
      %v500 = vsub.s32 %v497, %v499
      %v501 = vrot.slane %v487, %v500
      %v502 = vcombine.low %v446, %v462
      %v503 = vcombine.high %v446, %v462
      %v505 = vunpack.c.l.s4 1934713408
      %v506 = vunpack.c.0.s8 %v505
      %v507 = vlaneseq
      %v508 = vshrl.u32 %v507, 7
      %v509 = vsub.s32 %v506, %v508
      %v510 = vrot.slane %v502, %v509
      %v512 = vunpack.c.l.s4 1934713408
      %v513 = vunpack.c.0.s8 %v512
      %v514 = vlaneseq
      %v515 = vshrl.u32 %v514, 7
      %v516 = vsub.s32 %v513, %v515
      %v517 = vrot.slane %v503, %v516
      %v518 = vcombine.low %v453, %v469
      %v519 = vcombine.high %v453, %v469
      %v521 = vunpack.c.l.s4 1934713408
      %v522 = vunpack.c.0.s8 %v521
      %v523 = vlaneseq
      %v524 = vshrl.u32 %v523, 7
      %v525 = vsub.s32 %v522, %v524
      %v526 = vrot.slane %v518, %v525
      %v528 = vunpack.c.l.s4 1934713408
      %v529 = vunpack.c.0.s8 %v528
      %v530 = vlaneseq
      %v531 = vshrl.u32 %v530, 7
      %v532 = vsub.s32 %v529, %v531
      %v533 = vrot.slane %v519, %v532
      %v534 = vcombine.low %v478, %v510
      %v535 = vcombine.high %v478, %v510
      %v536 = vcombine.low %v485, %v517
      %v537 = vcombine.high %v485, %v517
      %v538 = vcombine.low %v494, %v526
      %v539 = vcombine.high %v494, %v526
      %v540 = vcombine.low %v501, %v533
      %v541 = vcombine.high %v501, %v533
      %543 = vrot.lane.b32.xlu0 %v399, 16
      %v544 = vpop.permute.xlu0 %543
      %547 = vrot.lane.b32.xlu0 %v400, 32
      %v548 = vpop.permute.xlu0 %547
      %551 = vrot.lane.b32.xlu0 %v401, 48
      %v552 = vpop.permute.xlu0 %551
      %555 = vrot.lane.b32.xlu0 %v402, 64
      %v556 = vpop.permute.xlu0 %555
      %559 = vrot.lane.b32.xlu0 %v403, 80
      %v560 = vpop.permute.xlu0 %559
      %563 = vrot.lane.b32.xlu0 %v404, 96
      %v564 = vpop.permute.xlu0 %563
      %567 = vrot.lane.b32.xlu0 %v405, 112
      %v568 = vpop.permute.xlu0 %567
      %571 = vrot.lane.b32.xlu0 %v535, 16
      %v572 = vpop.permute.xlu0 %571
      %575 = vrot.lane.b32.xlu0 %v536, 32
      %v576 = vpop.permute.xlu0 %575
      %579 = vrot.lane.b32.xlu0 %v537, 48
      %v580 = vpop.permute.xlu0 %579
      %583 = vrot.lane.b32.xlu0 %v538, 64
      %v584 = vpop.permute.xlu0 %583
      %587 = vrot.lane.b32.xlu0 %v539, 80
      %v588 = vpop.permute.xlu0 %587
      %591 = vrot.lane.b32.xlu0 %v540, 96
      %v592 = vpop.permute.xlu0 %591
      %595 = vrot.lane.b32.xlu0 %v541, 112
      %v596 = vpop.permute.xlu0 %595
      %vm598 = vcmask 130048
      %v599 = vsel %vm598, %v398, %v544
      %vm600 = vcmask 261120
      %v601 = vsel %vm600, %v599, %v548
      %vm602 = vcmask 392192
      %v603 = vsel %vm602, %v601, %v552
      %vm604 = vcmask 523264
      %v605 = vsel %vm604, %v603, %v556
      %vm606 = vcmask 654336
      %v607 = vsel %vm606, %v605, %v560
      %vm608 = vcmask 785408
      %v609 = vsel %vm608, %v607, %v564
      %vm610 = vcmask 916480
      %v611 = vsel %vm610, %v609, %v568
      %v612 = vsel %vm598, %v534, %v572
      %v613 = vsel %vm600, %v612, %v576
      %v614 = vsel %vm602, %v613, %v580
      %v615 = vsel %vm604, %v614, %v584
      %v616 = vsel %vm606, %v615, %v588
      %v617 = vsel %vm608, %v616, %v592
      %v618 = vsel %vm610, %v617, %v596
      %619 = vst [vmem:[#allocation2] sm:$0xff] %v611
      %620 = vst [vmem:[#allocation2 + $0x8] sm:$0xff] %v618
      %637 = vrot.lane.b32.xlu0 %v246, 127
      %v638 = vpop.permute.xlu0 %637
      %639 = vrot.lane.b32.xlu0 %v247, 127
      %v640 = vpop.permute.xlu0 %639
      %641 = vrot.lane.b32.xlu0 %v249, 127
      %v642 = vpop.permute.xlu0 %641
      %643 = vrot.lane.b32.xlu0 %v250, 127
      %v644 = vpop.permute.xlu0 %643
      %645 = vrot.lane.b32.xlu0 %v252, 127
      %v646 = vpop.permute.xlu0 %645
      %647 = vrot.lane.b32.xlu0 %v253, 127
      %v648 = vpop.permute.xlu0 %647
      %649 = vrot.lane.b32.xlu0 %v255, 127
      %v650 = vpop.permute.xlu0 %649
      %651 = vrot.lane.b32.xlu0 %v256, 127
      %v652 = vpop.permute.xlu0 %651
      %653 = vrot.lane.b32.xlu0 %v258, 127
      %v654 = vpop.permute.xlu0 %653
      %655 = vrot.lane.b32.xlu0 %v259, 127
      %v656 = vpop.permute.xlu0 %655
      %657 = vrot.lane.b32.xlu0 %v261, 127
      %v658 = vpop.permute.xlu0 %657
      %659 = vrot.lane.b32.xlu0 %v262, 127
      %v660 = vpop.permute.xlu0 %659
      %661 = vrot.lane.b32.xlu0 %v264, 127
      %v662 = vpop.permute.xlu0 %661
      %663 = vrot.lane.b32.xlu0 %v265, 127
      %v664 = vpop.permute.xlu0 %663
      %665 = vrot.lane.b32.xlu0 %v267, 127
      %v666 = vpop.permute.xlu0 %665
      %667 = vrot.lane.b32.xlu0 %v268, 127
      %v668 = vpop.permute.xlu0 %667
      %v685 = vcombine.low %v638, %v646
      %v686 = vcombine.high %v638, %v646
      %v688 = vunpack.c.l.s4 1983009808
      %v689 = vunpack.c.0.s8 %v688
      %v690 = vlaneseq
      %v691 = vshrl.u32 %v690, 7
      %v692 = vsub.s32 %v689, %v691
      %v693 = vrot.slane %v685, %v692
      %v695 = vunpack.c.l.s4 1983009808
      %v696 = vunpack.c.0.s8 %v695
      %v697 = vlaneseq
      %v698 = vshrl.u32 %v697, 7
      %v699 = vsub.s32 %v696, %v698
      %v700 = vrot.slane %v686, %v699
      %v701 = vcombine.low %v642, %v650
      %v702 = vcombine.high %v642, %v650
      %v704 = vunpack.c.l.s4 1983009808
      %v705 = vunpack.c.0.s8 %v704
      %v706 = vlaneseq
      %v707 = vshrl.u32 %v706, 7
      %v708 = vsub.s32 %v705, %v707
      %v709 = vrot.slane %v701, %v708
      %v711 = vunpack.c.l.s4 1983009808
      %v712 = vunpack.c.0.s8 %v711
      %v713 = vlaneseq
      %v714 = vshrl.u32 %v713, 7
      %v715 = vsub.s32 %v712, %v714
      %v716 = vrot.slane %v702, %v715
      %v717 = vcombine.low %v654, %v662
      %v718 = vcombine.high %v654, %v662
      %v720 = vunpack.c.l.s4 1983009808
      %v721 = vunpack.c.0.s8 %v720
      %v722 = vlaneseq
      %v723 = vshrl.u32 %v722, 7
      %v724 = vsub.s32 %v721, %v723
      %v725 = vrot.slane %v717, %v724
      %v727 = vunpack.c.l.s4 1983009808
      %v728 = vunpack.c.0.s8 %v727
      %v729 = vlaneseq
      %v730 = vshrl.u32 %v729, 7
      %v731 = vsub.s32 %v728, %v730
      %v732 = vrot.slane %v718, %v731
      %v733 = vcombine.low %v658, %v666
      %v734 = vcombine.high %v658, %v666
      %v736 = vunpack.c.l.s4 1983009808
      %v737 = vunpack.c.0.s8 %v736
      %v738 = vlaneseq
      %v739 = vshrl.u32 %v738, 7
      %v740 = vsub.s32 %v737, %v739
      %v741 = vrot.slane %v733, %v740
      %v743 = vunpack.c.l.s4 1983009808
      %v744 = vunpack.c.0.s8 %v743
      %v745 = vlaneseq
      %v746 = vshrl.u32 %v745, 7
      %v747 = vsub.s32 %v744, %v746
      %v748 = vrot.slane %v734, %v747
      %v749 = vcombine.low %v693, %v709
      %v750 = vcombine.high %v693, %v709
      %v752 = vunpack.c.l.s4 1934713408
      %v753 = vunpack.c.0.s8 %v752
      %v754 = vlaneseq
      %v755 = vshrl.u32 %v754, 7
      %v756 = vsub.s32 %v753, %v755
      %v757 = vrot.slane %v749, %v756
      %v759 = vunpack.c.l.s4 1934713408
      %v760 = vunpack.c.0.s8 %v759
      %v761 = vlaneseq
      %v762 = vshrl.u32 %v761, 7
      %v763 = vsub.s32 %v760, %v762
      %v764 = vrot.slane %v750, %v763
      %v765 = vcombine.low %v700, %v716
      %v766 = vcombine.high %v700, %v716
      %v768 = vunpack.c.l.s4 1934713408
      %v769 = vunpack.c.0.s8 %v768
      %v770 = vlaneseq
      %v771 = vshrl.u32 %v770, 7
      %v772 = vsub.s32 %v769, %v771
      %v773 = vrot.slane %v765, %v772
      %v775 = vunpack.c.l.s4 1934713408
      %v776 = vunpack.c.0.s8 %v775
      %v777 = vlaneseq
      %v778 = vshrl.u32 %v777, 7
      %v779 = vsub.s32 %v776, %v778
      %v780 = vrot.slane %v766, %v779
      %v781 = vcombine.low %v725, %v741
      %v782 = vcombine.high %v725, %v741
      %v784 = vunpack.c.l.s4 1934713408
      %v785 = vunpack.c.0.s8 %v784
      %v786 = vlaneseq
      %v787 = vshrl.u32 %v786, 7
      %v788 = vsub.s32 %v785, %v787
      %v789 = vrot.slane %v781, %v788
      %v791 = vunpack.c.l.s4 1934713408
      %v792 = vunpack.c.0.s8 %v791
      %v793 = vlaneseq
      %v794 = vshrl.u32 %v793, 7
      %v795 = vsub.s32 %v792, %v794
      %v796 = vrot.slane %v782, %v795
      %v797 = vcombine.low %v732, %v748
      %v798 = vcombine.high %v732, %v748
      %v800 = vunpack.c.l.s4 1934713408
      %v801 = vunpack.c.0.s8 %v800
      %v802 = vlaneseq
      %v803 = vshrl.u32 %v802, 7
      %v804 = vsub.s32 %v801, %v803
      %v805 = vrot.slane %v797, %v804
      %v807 = vunpack.c.l.s4 1934713408
      %v808 = vunpack.c.0.s8 %v807
      %v809 = vlaneseq
      %v810 = vshrl.u32 %v809, 7
      %v811 = vsub.s32 %v808, %v810
      %v812 = vrot.slane %v798, %v811
      %v813 = vcombine.low %v757, %v789
      %v814 = vcombine.high %v757, %v789
      %v815 = vcombine.low %v764, %v796
      %v816 = vcombine.high %v764, %v796
      %v817 = vcombine.low %v773, %v805
      %v818 = vcombine.high %v773, %v805
      %v819 = vcombine.low %v780, %v812
      %v820 = vcombine.high %v780, %v812
      %v821 = vcombine.low %v640, %v648
      %v822 = vcombine.high %v640, %v648
      %v824 = vunpack.c.l.s4 1983009808
      %v825 = vunpack.c.0.s8 %v824
      %v826 = vlaneseq
      %v827 = vshrl.u32 %v826, 7
      %v828 = vsub.s32 %v825, %v827
      %v829 = vrot.slane %v821, %v828
      %v831 = vunpack.c.l.s4 1983009808
      %v832 = vunpack.c.0.s8 %v831
      %v833 = vlaneseq
      %v834 = vshrl.u32 %v833, 7
      %v835 = vsub.s32 %v832, %v834
      %v836 = vrot.slane %v822, %v835
      %v837 = vcombine.low %v644, %v652
      %v838 = vcombine.high %v644, %v652
      %v840 = vunpack.c.l.s4 1983009808
      %v841 = vunpack.c.0.s8 %v840
      %v842 = vlaneseq
      %v843 = vshrl.u32 %v842, 7
      %v844 = vsub.s32 %v841, %v843
      %v845 = vrot.slane %v837, %v844
      %v847 = vunpack.c.l.s4 1983009808
      %v848 = vunpack.c.0.s8 %v847
      %v849 = vlaneseq
      %v850 = vshrl.u32 %v849, 7
      %v851 = vsub.s32 %v848, %v850
      %v852 = vrot.slane %v838, %v851
      %v853 = vcombine.low %v656, %v664
      %v854 = vcombine.high %v656, %v664
      %v856 = vunpack.c.l.s4 1983009808
      %v857 = vunpack.c.0.s8 %v856
      %v858 = vlaneseq
      %v859 = vshrl.u32 %v858, 7
      %v860 = vsub.s32 %v857, %v859
      %v861 = vrot.slane %v853, %v860
      %v863 = vunpack.c.l.s4 1983009808
      %v864 = vunpack.c.0.s8 %v863
      %v865 = vlaneseq
      %v866 = vshrl.u32 %v865, 7
      %v867 = vsub.s32 %v864, %v866
      %v868 = vrot.slane %v854, %v867
      %v869 = vcombine.low %v660, %v668
      %v870 = vcombine.high %v660, %v668
      %v872 = vunpack.c.l.s4 1983009808
      %v873 = vunpack.c.0.s8 %v872
      %v874 = vlaneseq
      %v875 = vshrl.u32 %v874, 7
      %v876 = vsub.s32 %v873, %v875
      %v877 = vrot.slane %v869, %v876
      %v879 = vunpack.c.l.s4 1983009808
      %v880 = vunpack.c.0.s8 %v879
      %v881 = vlaneseq
      %v882 = vshrl.u32 %v881, 7
      %v883 = vsub.s32 %v880, %v882
      %v884 = vrot.slane %v870, %v883
      %v885 = vcombine.low %v829, %v845
      %v886 = vcombine.high %v829, %v845
      %v888 = vunpack.c.l.s4 1934713408
      %v889 = vunpack.c.0.s8 %v888
      %v890 = vlaneseq
      %v891 = vshrl.u32 %v890, 7
      %v892 = vsub.s32 %v889, %v891
      %v893 = vrot.slane %v885, %v892
      %v895 = vunpack.c.l.s4 1934713408
      %v896 = vunpack.c.0.s8 %v895
      %v897 = vlaneseq
      %v898 = vshrl.u32 %v897, 7
      %v899 = vsub.s32 %v896, %v898
      %v900 = vrot.slane %v886, %v899
      %v901 = vcombine.low %v836, %v852
      %v902 = vcombine.high %v836, %v852
      %v904 = vunpack.c.l.s4 1934713408
      %v905 = vunpack.c.0.s8 %v904
      %v906 = vlaneseq
      %v907 = vshrl.u32 %v906, 7
      %v908 = vsub.s32 %v905, %v907
      %v909 = vrot.slane %v901, %v908
      %v911 = vunpack.c.l.s4 1934713408
      %v912 = vunpack.c.0.s8 %v911
      %v913 = vlaneseq
      %v914 = vshrl.u32 %v913, 7
      %v915 = vsub.s32 %v912, %v914
      %v916 = vrot.slane %v902, %v915
      %v917 = vcombine.low %v861, %v877
      %v918 = vcombine.high %v861, %v877
      %v920 = vunpack.c.l.s4 1934713408
      %v921 = vunpack.c.0.s8 %v920
      %v922 = vlaneseq
      %v923 = vshrl.u32 %v922, 7
      %v924 = vsub.s32 %v921, %v923
      %v925 = vrot.slane %v917, %v924
      %v927 = vunpack.c.l.s4 1934713408
      %v928 = vunpack.c.0.s8 %v927
      %v929 = vlaneseq
      %v930 = vshrl.u32 %v929, 7
      %v931 = vsub.s32 %v928, %v930
      %v932 = vrot.slane %v918, %v931
      %v933 = vcombine.low %v868, %v884
      %v934 = vcombine.high %v868, %v884
      %v936 = vunpack.c.l.s4 1934713408
      %v937 = vunpack.c.0.s8 %v936
      %v938 = vlaneseq
      %v939 = vshrl.u32 %v938, 7
      %v940 = vsub.s32 %v937, %v939
      %v941 = vrot.slane %v933, %v940
      %v943 = vunpack.c.l.s4 1934713408
      %v944 = vunpack.c.0.s8 %v943
      %v945 = vlaneseq
      %v946 = vshrl.u32 %v945, 7
      %v947 = vsub.s32 %v944, %v946
      %v948 = vrot.slane %v934, %v947
      %v949 = vcombine.low %v893, %v925
      %v950 = vcombine.high %v893, %v925
      %v951 = vcombine.low %v900, %v932
      %v952 = vcombine.high %v900, %v932
      %v953 = vcombine.low %v909, %v941
      %v954 = vcombine.high %v909, %v941
      %v955 = vcombine.low %v916, %v948
      %v956 = vcombine.high %v916, %v948
      %958 = vrot.lane.b32.xlu0 %v814, 16
      %v959 = vpop.permute.xlu0 %958
      %962 = vrot.lane.b32.xlu0 %v815, 32
      %v963 = vpop.permute.xlu0 %962
      %966 = vrot.lane.b32.xlu0 %v816, 48
      %v967 = vpop.permute.xlu0 %966
      %970 = vrot.lane.b32.xlu0 %v817, 64
      %v971 = vpop.permute.xlu0 %970
      %974 = vrot.lane.b32.xlu0 %v818, 80
      %v975 = vpop.permute.xlu0 %974
      %978 = vrot.lane.b32.xlu0 %v819, 96
      %v979 = vpop.permute.xlu0 %978
      %982 = vrot.lane.b32.xlu0 %v820, 112
      %v983 = vpop.permute.xlu0 %982
      %986 = vrot.lane.b32.xlu0 %v950, 16
      %v987 = vpop.permute.xlu0 %986
      %990 = vrot.lane.b32.xlu0 %v951, 32
      %v991 = vpop.permute.xlu0 %990
      %994 = vrot.lane.b32.xlu0 %v952, 48
      %v995 = vpop.permute.xlu0 %994
      %998 = vrot.lane.b32.xlu0 %v953, 64
      %v999 = vpop.permute.xlu0 %998
      %1002 = vrot.lane.b32.xlu0 %v954, 80
      %v1003 = vpop.permute.xlu0 %1002
      %1006 = vrot.lane.b32.xlu0 %v955, 96
      %v1007 = vpop.permute.xlu0 %1006
      %1010 = vrot.lane.b32.xlu0 %v956, 112
      %v1011 = vpop.permute.xlu0 %1010
      %v1013 = vsel %vm598, %v813, %v959
      %v1014 = vsel %vm600, %v1013, %v963
      %v1015 = vsel %vm602, %v1014, %v967
      %v1016 = vsel %vm604, %v1015, %v971
      %v1017 = vsel %vm606, %v1016, %v975
      %v1018 = vsel %vm608, %v1017, %v979
      %v1019 = vsel %vm610, %v1018, %v983
      %v1020 = vsel %vm598, %v949, %v987
      %v1021 = vsel %vm600, %v1020, %v991
      %v1022 = vsel %vm602, %v1021, %v995
      %v1023 = vsel %vm604, %v1022, %v999
      %v1024 = vsel %vm606, %v1023, %v1003
      %v1025 = vsel %vm608, %v1024, %v1007
      %v1026 = vsel %vm610, %v1025, %v1011
      %1027 = vst [vmem:[#allocation2 + $0x10] sm:$0xff] %v1019
      %1028 = vst [vmem:[#allocation2 + $0x18] sm:$0xff] %v1026
      %1029 = vrot.lane.b32.xlu0 %v246, 126
      %v1030 = vpop.permute.xlu0 %1029
      %1031 = vrot.lane.b32.xlu0 %v247, 126
      %v1032 = vpop.permute.xlu0 %1031
      %1033 = vrot.lane.b32.xlu0 %v249, 126
      %v1034 = vpop.permute.xlu0 %1033
      %1035 = vrot.lane.b32.xlu0 %v250, 126
      %v1036 = vpop.permute.xlu0 %1035
      %1037 = vrot.lane.b32.xlu0 %v252, 126
      %v1038 = vpop.permute.xlu0 %1037
      %1039 = vrot.lane.b32.xlu0 %v253, 126
      %v1040 = vpop.permute.xlu0 %1039
      %1041 = vrot.lane.b32.xlu0 %v255, 126
      %v1042 = vpop.permute.xlu0 %1041
      %1043 = vrot.lane.b32.xlu0 %v256, 126
      %v1044 = vpop.permute.xlu0 %1043
      %1045 = vrot.lane.b32.xlu0 %v258, 126
      %v1046 = vpop.permute.xlu0 %1045
      %1047 = vrot.lane.b32.xlu0 %v259, 126
      %v1048 = vpop.permute.xlu0 %1047
      %1049 = vrot.lane.b32.xlu0 %v261, 126
      %v1050 = vpop.permute.xlu0 %1049
      %1051 = vrot.lane.b32.xlu0 %v262, 126
      %v1052 = vpop.permute.xlu0 %1051
      %1053 = vrot.lane.b32.xlu0 %v264, 126
      %v1054 = vpop.permute.xlu0 %1053
      %1055 = vrot.lane.b32.xlu0 %v265, 126
      %v1056 = vpop.permute.xlu0 %1055
      %1057 = vrot.lane.b32.xlu0 %v267, 126
      %v1058 = vpop.permute.xlu0 %1057
      %1059 = vrot.lane.b32.xlu0 %v268, 126
      %v1060 = vpop.permute.xlu0 %1059
      %v1077 = vcombine.low %v1030, %v1038
      %v1078 = vcombine.high %v1030, %v1038
      %v1080 = vunpack.c.l.s4 1983009808
      %v1081 = vunpack.c.0.s8 %v1080
      %v1082 = vlaneseq
      %v1083 = vshrl.u32 %v1082, 7
      %v1084 = vsub.s32 %v1081, %v1083
      %v1085 = vrot.slane %v1077, %v1084
      %v1087 = vunpack.c.l.s4 1983009808
      %v1088 = vunpack.c.0.s8 %v1087
      %v1089 = vlaneseq
      %v1090 = vshrl.u32 %v1089, 7
      %v1091 = vsub.s32 %v1088, %v1090
      %v1092 = vrot.slane %v1078, %v1091
      %v1093 = vcombine.low %v1034, %v1042
      %v1094 = vcombine.high %v1034, %v1042
      %v1096 = vunpack.c.l.s4 1983009808
      %v1097 = vunpack.c.0.s8 %v1096
      %v1098 = vlaneseq
      %v1099 = vshrl.u32 %v1098, 7
      %v1100 = vsub.s32 %v1097, %v1099
      %v1101 = vrot.slane %v1093, %v1100
      %v1103 = vunpack.c.l.s4 1983009808
      %v1104 = vunpack.c.0.s8 %v1103
      %v1105 = vlaneseq
      %v1106 = vshrl.u32 %v1105, 7
      %v1107 = vsub.s32 %v1104, %v1106
      %v1108 = vrot.slane %v1094, %v1107
      %v1109 = vcombine.low %v1046, %v1054
      %v1110 = vcombine.high %v1046, %v1054
      %v1112 = vunpack.c.l.s4 1983009808
      %v1113 = vunpack.c.0.s8 %v1112
      %v1114 = vlaneseq
      %v1115 = vshrl.u32 %v1114, 7
      %v1116 = vsub.s32 %v1113, %v1115
      %v1117 = vrot.slane %v1109, %v1116
      %v1119 = vunpack.c.l.s4 1983009808
      %v1120 = vunpack.c.0.s8 %v1119
      %v1121 = vlaneseq
      %v1122 = vshrl.u32 %v1121, 7
      %v1123 = vsub.s32 %v1120, %v1122
      %v1124 = vrot.slane %v1110, %v1123
      %v1125 = vcombine.low %v1050, %v1058
      %v1126 = vcombine.high %v1050, %v1058
      %v1128 = vunpack.c.l.s4 1983009808
      %v1129 = vunpack.c.0.s8 %v1128
      %v1130 = vlaneseq
      %v1131 = vshrl.u32 %v1130, 7
      %v1132 = vsub.s32 %v1129, %v1131
      %v1133 = vrot.slane %v1125, %v1132
      %v1135 = vunpack.c.l.s4 1983009808
      %v1136 = vunpack.c.0.s8 %v1135
      %v1137 = vlaneseq
      %v1138 = vshrl.u32 %v1137, 7
      %v1139 = vsub.s32 %v1136, %v1138
      %v1140 = vrot.slane %v1126, %v1139
      %v1141 = vcombine.low %v1085, %v1101
      %v1142 = vcombine.high %v1085, %v1101
      %v1144 = vunpack.c.l.s4 1934713408
      %v1145 = vunpack.c.0.s8 %v1144
      %v1146 = vlaneseq
      %v1147 = vshrl.u32 %v1146, 7
      %v1148 = vsub.s32 %v1145, %v1147
      %v1149 = vrot.slane %v1141, %v1148
      %v1151 = vunpack.c.l.s4 1934713408
      %v1152 = vunpack.c.0.s8 %v1151
      %v1153 = vlaneseq
      %v1154 = vshrl.u32 %v1153, 7
      %v1155 = vsub.s32 %v1152, %v1154
      %v1156 = vrot.slane %v1142, %v1155
      %v1157 = vcombine.low %v1092, %v1108
      %v1158 = vcombine.high %v1092, %v1108
      %v1160 = vunpack.c.l.s4 1934713408
      %v1161 = vunpack.c.0.s8 %v1160
      %v1162 = vlaneseq
      %v1163 = vshrl.u32 %v1162, 7
      %v1164 = vsub.s32 %v1161, %v1163
      %v1165 = vrot.slane %v1157, %v1164
      %v1167 = vunpack.c.l.s4 1934713408
      %v1168 = vunpack.c.0.s8 %v1167
      %v1169 = vlaneseq
      %v1170 = vshrl.u32 %v1169, 7
      %v1171 = vsub.s32 %v1168, %v1170
      %v1172 = vrot.slane %v1158, %v1171
      %v1173 = vcombine.low %v1117, %v1133
      %v1174 = vcombine.high %v1117, %v1133
      %v1176 = vunpack.c.l.s4 1934713408
      %v1177 = vunpack.c.0.s8 %v1176
      %v1178 = vlaneseq
      %v1179 = vshrl.u32 %v1178, 7
      %v1180 = vsub.s32 %v1177, %v1179
      %v1181 = vrot.slane %v1173, %v1180
      %v1183 = vunpack.c.l.s4 1934713408
      %v1184 = vunpack.c.0.s8 %v1183
      %v1185 = vlaneseq
      %v1186 = vshrl.u32 %v1185, 7
      %v1187 = vsub.s32 %v1184, %v1186
      %v1188 = vrot.slane %v1174, %v1187
      %v1189 = vcombine.low %v1124, %v1140
      %v1190 = vcombine.high %v1124, %v1140
      %v1192 = vunpack.c.l.s4 1934713408
      %v1193 = vunpack.c.0.s8 %v1192
      %v1194 = vlaneseq
      %v1195 = vshrl.u32 %v1194, 7
      %v1196 = vsub.s32 %v1193, %v1195
      %v1197 = vrot.slane %v1189, %v1196
      %v1199 = vunpack.c.l.s4 1934713408
      %v1200 = vunpack.c.0.s8 %v1199
      %v1201 = vlaneseq
      %v1202 = vshrl.u32 %v1201, 7
      %v1203 = vsub.s32 %v1200, %v1202
      %v1204 = vrot.slane %v1190, %v1203
      %v1205 = vcombine.low %v1149, %v1181
      %v1206 = vcombine.high %v1149, %v1181
      %v1207 = vcombine.low %v1156, %v1188
      %v1208 = vcombine.high %v1156, %v1188
      %v1209 = vcombine.low %v1165, %v1197
      %v1210 = vcombine.high %v1165, %v1197
      %v1211 = vcombine.low %v1172, %v1204
      %v1212 = vcombine.high %v1172, %v1204
      %v1213 = vcombine.low %v1032, %v1040
      %v1214 = vcombine.high %v1032, %v1040
      %v1216 = vunpack.c.l.s4 1983009808
      %v1217 = vunpack.c.0.s8 %v1216
      %v1218 = vlaneseq
      %v1219 = vshrl.u32 %v1218, 7
      %v1220 = vsub.s32 %v1217, %v1219
      %v1221 = vrot.slane %v1213, %v1220
      %v1223 = vunpack.c.l.s4 1983009808
      %v1224 = vunpack.c.0.s8 %v1223
      %v1225 = vlaneseq
      %v1226 = vshrl.u32 %v1225, 7
      %v1227 = vsub.s32 %v1224, %v1226
      %v1228 = vrot.slane %v1214, %v1227
      %v1229 = vcombine.low %v1036, %v1044
      %v1230 = vcombine.high %v1036, %v1044
      %v1232 = vunpack.c.l.s4 1983009808
      %v1233 = vunpack.c.0.s8 %v1232
      %v1234 = vlaneseq
      %v1235 = vshrl.u32 %v1234, 7
      %v1236 = vsub.s32 %v1233, %v1235
      %v1237 = vrot.slane %v1229, %v1236
      %v1239 = vunpack.c.l.s4 1983009808
      %v1240 = vunpack.c.0.s8 %v1239
      %v1241 = vlaneseq
      %v1242 = vshrl.u32 %v1241, 7
      %v1243 = vsub.s32 %v1240, %v1242
      %v1244 = vrot.slane %v1230, %v1243
      %v1245 = vcombine.low %v1048, %v1056
      %v1246 = vcombine.high %v1048, %v1056
      %v1248 = vunpack.c.l.s4 1983009808
      %v1249 = vunpack.c.0.s8 %v1248
      %v1250 = vlaneseq
      %v1251 = vshrl.u32 %v1250, 7
      %v1252 = vsub.s32 %v1249, %v1251
      %v1253 = vrot.slane %v1245, %v1252
      %v1255 = vunpack.c.l.s4 1983009808
      %v1256 = vunpack.c.0.s8 %v1255
      %v1257 = vlaneseq
      %v1258 = vshrl.u32 %v1257, 7
      %v1259 = vsub.s32 %v1256, %v1258
      %v1260 = vrot.slane %v1246, %v1259
      %v1261 = vcombine.low %v1052, %v1060
      %v1262 = vcombine.high %v1052, %v1060
      %v1264 = vunpack.c.l.s4 1983009808
      %v1265 = vunpack.c.0.s8 %v1264
      %v1266 = vlaneseq
      %v1267 = vshrl.u32 %v1266, 7
      %v1268 = vsub.s32 %v1265, %v1267
      %v1269 = vrot.slane %v1261, %v1268
      %v1271 = vunpack.c.l.s4 1983009808
      %v1272 = vunpack.c.0.s8 %v1271
      %v1273 = vlaneseq
      %v1274 = vshrl.u32 %v1273, 7
      %v1275 = vsub.s32 %v1272, %v1274
      %v1276 = vrot.slane %v1262, %v1275
      %v1277 = vcombine.low %v1221, %v1237
      %v1278 = vcombine.high %v1221, %v1237
      %v1280 = vunpack.c.l.s4 1934713408
      %v1281 = vunpack.c.0.s8 %v1280
      %v1282 = vlaneseq
      %v1283 = vshrl.u32 %v1282, 7
      %v1284 = vsub.s32 %v1281, %v1283
      %v1285 = vrot.slane %v1277, %v1284
      %v1287 = vunpack.c.l.s4 1934713408
      %v1288 = vunpack.c.0.s8 %v1287
      %v1289 = vlaneseq
      %v1290 = vshrl.u32 %v1289, 7
      %v1291 = vsub.s32 %v1288, %v1290
      %v1292 = vrot.slane %v1278, %v1291
      %v1293 = vcombine.low %v1228, %v1244
      %v1294 = vcombine.high %v1228, %v1244
      %v1296 = vunpack.c.l.s4 1934713408
      %v1297 = vunpack.c.0.s8 %v1296
      %v1298 = vlaneseq
      %v1299 = vshrl.u32 %v1298, 7
      %v1300 = vsub.s32 %v1297, %v1299
      %v1301 = vrot.slane %v1293, %v1300
      %v1303 = vunpack.c.l.s4 1934713408
      %v1304 = vunpack.c.0.s8 %v1303
      %v1305 = vlaneseq
      %v1306 = vshrl.u32 %v1305, 7
      %v1307 = vsub.s32 %v1304, %v1306
      %v1308 = vrot.slane %v1294, %v1307
      %v1309 = vcombine.low %v1253, %v1269
      %v1310 = vcombine.high %v1253, %v1269
      %v1312 = vunpack.c.l.s4 1934713408
      %v1313 = vunpack.c.0.s8 %v1312
      %v1314 = vlaneseq
      %v1315 = vshrl.u32 %v1314, 7
      %v1316 = vsub.s32 %v1313, %v1315
      %v1317 = vrot.slane %v1309, %v1316
      %v1319 = vunpack.c.l.s4 1934713408
      %v1320 = vunpack.c.0.s8 %v1319
      %v1321 = vlaneseq
      %v1322 = vshrl.u32 %v1321, 7
      %v1323 = vsub.s32 %v1320, %v1322
      %v1324 = vrot.slane %v1310, %v1323
      %v1325 = vcombine.low %v1260, %v1276
      %v1326 = vcombine.high %v1260, %v1276
      %v1328 = vunpack.c.l.s4 1934713408
      %v1329 = vunpack.c.0.s8 %v1328
      %v1330 = vlaneseq
      %v1331 = vshrl.u32 %v1330, 7
      %v1332 = vsub.s32 %v1329, %v1331
      %v1333 = vrot.slane %v1325, %v1332
      %v1335 = vunpack.c.l.s4 1934713408
      %v1336 = vunpack.c.0.s8 %v1335
      %v1337 = vlaneseq
      %v1338 = vshrl.u32 %v1337, 7
      %v1339 = vsub.s32 %v1336, %v1338
      %v1340 = vrot.slane %v1326, %v1339
      %v1341 = vcombine.low %v1285, %v1317
      %v1342 = vcombine.high %v1285, %v1317
      %v1343 = vcombine.low %v1292, %v1324
      %v1344 = vcombine.high %v1292, %v1324
      %v1345 = vcombine.low %v1301, %v1333
      %v1346 = vcombine.high %v1301, %v1333
      %v1347 = vcombine.low %v1308, %v1340
      %v1348 = vcombine.high %v1308, %v1340
      %1350 = vrot.lane.b32.xlu0 %v1206, 16
      %v1351 = vpop.permute.xlu0 %1350
      %1354 = vrot.lane.b32.xlu0 %v1207, 32
      %v1355 = vpop.permute.xlu0 %1354
      %1358 = vrot.lane.b32.xlu0 %v1208, 48
      %v1359 = vpop.permute.xlu0 %1358
      %1362 = vrot.lane.b32.xlu0 %v1209, 64
      %v1363 = vpop.permute.xlu0 %1362
      %1366 = vrot.lane.b32.xlu0 %v1210, 80
      %v1367 = vpop.permute.xlu0 %1366
      %1370 = vrot.lane.b32.xlu0 %v1211, 96
      %v1371 = vpop.permute.xlu0 %1370
      %1374 = vrot.lane.b32.xlu0 %v1212, 112
      %v1375 = vpop.permute.xlu0 %1374
      %1378 = vrot.lane.b32.xlu0 %v1342, 16
      %v1379 = vpop.permute.xlu0 %1378
      %1382 = vrot.lane.b32.xlu0 %v1343, 32
      %v1383 = vpop.permute.xlu0 %1382
      %1386 = vrot.lane.b32.xlu0 %v1344, 48
      %v1387 = vpop.permute.xlu0 %1386
      %1390 = vrot.lane.b32.xlu0 %v1345, 64
      %v1391 = vpop.permute.xlu0 %1390
      %1394 = vrot.lane.b32.xlu0 %v1346, 80
      %v1395 = vpop.permute.xlu0 %1394
      %1398 = vrot.lane.b32.xlu0 %v1347, 96
      %v1399 = vpop.permute.xlu0 %1398
      %1402 = vrot.lane.b32.xlu0 %v1348, 112
      %v1403 = vpop.permute.xlu0 %1402
      %v1405 = vsel %vm598, %v1205, %v1351
      %v1406 = vsel %vm600, %v1405, %v1355
      %v1407 = vsel %vm602, %v1406, %v1359
      %v1408 = vsel %vm604, %v1407, %v1363
      %v1409 = vsel %vm606, %v1408, %v1367
      %v1410 = vsel %vm608, %v1409, %v1371
      %v1411 = vsel %vm610, %v1410, %v1375
      %v1412 = vsel %vm598, %v1341, %v1379
      %v1413 = vsel %vm600, %v1412, %v1383
      %v1414 = vsel %vm602, %v1413, %v1387
      %v1415 = vsel %vm604, %v1414, %v1391
      %v1416 = vsel %vm606, %v1415, %v1395
      %v1417 = vsel %vm608, %v1416, %v1399
      %v1418 = vsel %vm610, %v1417, %v1403
      %1419 = vst [vmem:[#allocation2 + $0x20] sm:$0xff] %v1411
      %1420 = vst [vmem:[#allocation2 + $0x28] sm:$0xff] %v1418
      %vm1429 = vcmask 1046528
      %v1430 = vrot.slane %v246, 1
      %v1431 = vrot.slane %v247, 1
      %v1432 = vsel %vm1429, %v1430, %v1431
      %v1433 = vrot.slane %v248, 1
      %v1434 = vsel %vm1429, %v1431, %v1433
      %v1435 = vrot.slane %v249, 1
      %v1436 = vrot.slane %v250, 1
      %v1437 = vsel %vm1429, %v1435, %v1436
      %v1438 = vrot.slane %v251, 1
      %v1439 = vsel %vm1429, %v1436, %v1438
      %v1440 = vrot.slane %v252, 1
      %v1441 = vrot.slane %v253, 1
      %v1442 = vsel %vm1429, %v1440, %v1441
      %v1443 = vrot.slane %v254, 1
      %v1444 = vsel %vm1429, %v1441, %v1443
      %v1445 = vrot.slane %v255, 1
      %v1446 = vrot.slane %v256, 1
      %v1447 = vsel %vm1429, %v1445, %v1446
      %v1448 = vrot.slane %v257, 1
      %v1449 = vsel %vm1429, %v1446, %v1448
      %v1450 = vrot.slane %v258, 1
      %v1451 = vrot.slane %v259, 1
      %v1452 = vsel %vm1429, %v1450, %v1451
      %v1453 = vrot.slane %v260, 1
      %v1454 = vsel %vm1429, %v1451, %v1453
      %v1455 = vrot.slane %v261, 1
      %v1456 = vrot.slane %v262, 1
      %v1457 = vsel %vm1429, %v1455, %v1456
      %v1458 = vrot.slane %v263, 1
      %v1459 = vsel %vm1429, %v1456, %v1458
      %v1460 = vrot.slane %v264, 1
      %v1461 = vrot.slane %v265, 1
      %v1462 = vsel %vm1429, %v1460, %v1461
      %v1463 = vrot.slane %v266, 1
      %v1464 = vsel %vm1429, %v1461, %v1463
      %v1465 = vrot.slane %v267, 1
      %v1466 = vrot.slane %v268, 1
      %v1467 = vsel %vm1429, %v1465, %v1466
      %v1468 = vrot.slane %v269, 1
      %v1469 = vsel %vm1429, %v1466, %v1468
      %v1486 = vcombine.low %v1432, %v1442
      %v1487 = vcombine.high %v1432, %v1442
      %v1489 = vunpack.c.l.s4 1983009808
      %v1490 = vunpack.c.0.s8 %v1489
      %v1491 = vlaneseq
      %v1492 = vshrl.u32 %v1491, 7
      %v1493 = vsub.s32 %v1490, %v1492
      %v1494 = vrot.slane %v1486, %v1493
      %v1496 = vunpack.c.l.s4 1983009808
      %v1497 = vunpack.c.0.s8 %v1496
      %v1498 = vlaneseq
      %v1499 = vshrl.u32 %v1498, 7
      %v1500 = vsub.s32 %v1497, %v1499
      %v1501 = vrot.slane %v1487, %v1500
      %v1502 = vcombine.low %v1437, %v1447
      %v1503 = vcombine.high %v1437, %v1447
      %v1505 = vunpack.c.l.s4 1983009808
      %v1506 = vunpack.c.0.s8 %v1505
      %v1507 = vlaneseq
      %v1508 = vshrl.u32 %v1507, 7
      %v1509 = vsub.s32 %v1506, %v1508
      %v1510 = vrot.slane %v1502, %v1509
      %v1512 = vunpack.c.l.s4 1983009808
      %v1513 = vunpack.c.0.s8 %v1512
      %v1514 = vlaneseq
      %v1515 = vshrl.u32 %v1514, 7
      %v1516 = vsub.s32 %v1513, %v1515
      %v1517 = vrot.slane %v1503, %v1516
      %v1518 = vcombine.low %v1452, %v1462
      %v1519 = vcombine.high %v1452, %v1462
      %v1521 = vunpack.c.l.s4 1983009808
      %v1522 = vunpack.c.0.s8 %v1521
      %v1523 = vlaneseq
      %v1524 = vshrl.u32 %v1523, 7
      %v1525 = vsub.s32 %v1522, %v1524
      %v1526 = vrot.slane %v1518, %v1525
      %v1528 = vunpack.c.l.s4 1983009808
      %v1529 = vunpack.c.0.s8 %v1528
      %v1530 = vlaneseq
      %v1531 = vshrl.u32 %v1530, 7
      %v1532 = vsub.s32 %v1529, %v1531
      %v1533 = vrot.slane %v1519, %v1532
      %v1534 = vcombine.low %v1457, %v1467
      %v1535 = vcombine.high %v1457, %v1467
      %v1537 = vunpack.c.l.s4 1983009808
      %v1538 = vunpack.c.0.s8 %v1537
      %v1539 = vlaneseq
      %v1540 = vshrl.u32 %v1539, 7
      %v1541 = vsub.s32 %v1538, %v1540
      %v1542 = vrot.slane %v1534, %v1541
      %v1544 = vunpack.c.l.s4 1983009808
      %v1545 = vunpack.c.0.s8 %v1544
      %v1546 = vlaneseq
      %v1547 = vshrl.u32 %v1546, 7
      %v1548 = vsub.s32 %v1545, %v1547
      %v1549 = vrot.slane %v1535, %v1548
      %v1550 = vcombine.low %v1494, %v1510
      %v1551 = vcombine.high %v1494, %v1510
      %v1553 = vunpack.c.l.s4 1934713408
      %v1554 = vunpack.c.0.s8 %v1553
      %v1555 = vlaneseq
      %v1556 = vshrl.u32 %v1555, 7
      %v1557 = vsub.s32 %v1554, %v1556
      %v1558 = vrot.slane %v1550, %v1557
      %v1560 = vunpack.c.l.s4 1934713408
      %v1561 = vunpack.c.0.s8 %v1560
      %v1562 = vlaneseq
      %v1563 = vshrl.u32 %v1562, 7
      %v1564 = vsub.s32 %v1561, %v1563
      %v1565 = vrot.slane %v1551, %v1564
      %v1566 = vcombine.low %v1501, %v1517
      %v1567 = vcombine.high %v1501, %v1517
      %v1569 = vunpack.c.l.s4 1934713408
      %v1570 = vunpack.c.0.s8 %v1569
      %v1571 = vlaneseq
      %v1572 = vshrl.u32 %v1571, 7
      %v1573 = vsub.s32 %v1570, %v1572
      %v1574 = vrot.slane %v1566, %v1573
      %v1576 = vunpack.c.l.s4 1934713408
      %v1577 = vunpack.c.0.s8 %v1576
      %v1578 = vlaneseq
      %v1579 = vshrl.u32 %v1578, 7
      %v1580 = vsub.s32 %v1577, %v1579
      %v1581 = vrot.slane %v1567, %v1580
      %v1582 = vcombine.low %v1526, %v1542
      %v1583 = vcombine.high %v1526, %v1542
      %v1585 = vunpack.c.l.s4 1934713408
      %v1586 = vunpack.c.0.s8 %v1585
      %v1587 = vlaneseq
      %v1588 = vshrl.u32 %v1587, 7
      %v1589 = vsub.s32 %v1586, %v1588
      %v1590 = vrot.slane %v1582, %v1589
      %v1592 = vunpack.c.l.s4 1934713408
      %v1593 = vunpack.c.0.s8 %v1592
      %v1594 = vlaneseq
      %v1595 = vshrl.u32 %v1594, 7
      %v1596 = vsub.s32 %v1593, %v1595
      %v1597 = vrot.slane %v1583, %v1596
      %v1598 = vcombine.low %v1533, %v1549
      %v1599 = vcombine.high %v1533, %v1549
      %v1601 = vunpack.c.l.s4 1934713408
      %v1602 = vunpack.c.0.s8 %v1601
      %v1603 = vlaneseq
      %v1604 = vshrl.u32 %v1603, 7
      %v1605 = vsub.s32 %v1602, %v1604
      %v1606 = vrot.slane %v1598, %v1605
      %v1608 = vunpack.c.l.s4 1934713408
      %v1609 = vunpack.c.0.s8 %v1608
      %v1610 = vlaneseq
      %v1611 = vshrl.u32 %v1610, 7
      %v1612 = vsub.s32 %v1609, %v1611
      %v1613 = vrot.slane %v1599, %v1612
      %v1614 = vcombine.low %v1558, %v1590
      %v1615 = vcombine.high %v1558, %v1590
      %v1616 = vcombine.low %v1565, %v1597
      %v1617 = vcombine.high %v1565, %v1597
      %v1618 = vcombine.low %v1574, %v1606
      %v1619 = vcombine.high %v1574, %v1606
      %v1620 = vcombine.low %v1581, %v1613
      %v1621 = vcombine.high %v1581, %v1613
      %v1622 = vcombine.low %v1434, %v1444
      %v1623 = vcombine.high %v1434, %v1444
      %v1625 = vunpack.c.l.s4 1983009808
      %v1626 = vunpack.c.0.s8 %v1625
      %v1627 = vlaneseq
      %v1628 = vshrl.u32 %v1627, 7
      %v1629 = vsub.s32 %v1626, %v1628
      %v1630 = vrot.slane %v1622, %v1629
      %v1632 = vunpack.c.l.s4 1983009808
      %v1633 = vunpack.c.0.s8 %v1632
      %v1634 = vlaneseq
      %v1635 = vshrl.u32 %v1634, 7
      %v1636 = vsub.s32 %v1633, %v1635
      %v1637 = vrot.slane %v1623, %v1636
      %v1638 = vcombine.low %v1439, %v1449
      %v1639 = vcombine.high %v1439, %v1449
      %v1641 = vunpack.c.l.s4 1983009808
      %v1642 = vunpack.c.0.s8 %v1641
      %v1643 = vlaneseq
      %v1644 = vshrl.u32 %v1643, 7
      %v1645 = vsub.s32 %v1642, %v1644
      %v1646 = vrot.slane %v1638, %v1645
      %v1648 = vunpack.c.l.s4 1983009808
      %v1649 = vunpack.c.0.s8 %v1648
      %v1650 = vlaneseq
      %v1651 = vshrl.u32 %v1650, 7
      %v1652 = vsub.s32 %v1649, %v1651
      %v1653 = vrot.slane %v1639, %v1652
      %v1654 = vcombine.low %v1454, %v1464
      %v1655 = vcombine.high %v1454, %v1464
      %v1657 = vunpack.c.l.s4 1983009808
      %v1658 = vunpack.c.0.s8 %v1657
      %v1659 = vlaneseq
      %v1660 = vshrl.u32 %v1659, 7
      %v1661 = vsub.s32 %v1658, %v1660
      %v1662 = vrot.slane %v1654, %v1661
      %v1664 = vunpack.c.l.s4 1983009808
      %v1665 = vunpack.c.0.s8 %v1664
      %v1666 = vlaneseq
      %v1667 = vshrl.u32 %v1666, 7
      %v1668 = vsub.s32 %v1665, %v1667
      %v1669 = vrot.slane %v1655, %v1668
      %v1670 = vcombine.low %v1459, %v1469
      %v1671 = vcombine.high %v1459, %v1469
      %v1673 = vunpack.c.l.s4 1983009808
      %v1674 = vunpack.c.0.s8 %v1673
      %v1675 = vlaneseq
      %v1676 = vshrl.u32 %v1675, 7
      %v1677 = vsub.s32 %v1674, %v1676
      %v1678 = vrot.slane %v1670, %v1677
      %v1680 = vunpack.c.l.s4 1983009808
      %v1681 = vunpack.c.0.s8 %v1680
      %v1682 = vlaneseq
      %v1683 = vshrl.u32 %v1682, 7
      %v1684 = vsub.s32 %v1681, %v1683
      %v1685 = vrot.slane %v1671, %v1684
      %v1686 = vcombine.low %v1630, %v1646
      %v1687 = vcombine.high %v1630, %v1646
      %v1689 = vunpack.c.l.s4 1934713408
      %v1690 = vunpack.c.0.s8 %v1689
      %v1691 = vlaneseq
      %v1692 = vshrl.u32 %v1691, 7
      %v1693 = vsub.s32 %v1690, %v1692
      %v1694 = vrot.slane %v1686, %v1693
      %v1696 = vunpack.c.l.s4 1934713408
      %v1697 = vunpack.c.0.s8 %v1696
      %v1698 = vlaneseq
      %v1699 = vshrl.u32 %v1698, 7
      %v1700 = vsub.s32 %v1697, %v1699
      %v1701 = vrot.slane %v1687, %v1700
      %v1702 = vcombine.low %v1637, %v1653
      %v1703 = vcombine.high %v1637, %v1653
      %v1705 = vunpack.c.l.s4 1934713408
      %v1706 = vunpack.c.0.s8 %v1705
      %v1707 = vlaneseq
      %v1708 = vshrl.u32 %v1707, 7
      %v1709 = vsub.s32 %v1706, %v1708
      %v1710 = vrot.slane %v1702, %v1709
      %v1712 = vunpack.c.l.s4 1934713408
      %v1713 = vunpack.c.0.s8 %v1712
      %v1714 = vlaneseq
      %v1715 = vshrl.u32 %v1714, 7
      %v1716 = vsub.s32 %v1713, %v1715
      %v1717 = vrot.slane %v1703, %v1716
      %v1718 = vcombine.low %v1662, %v1678
      %v1719 = vcombine.high %v1662, %v1678
      %v1721 = vunpack.c.l.s4 1934713408
      %v1722 = vunpack.c.0.s8 %v1721
      %v1723 = vlaneseq
      %v1724 = vshrl.u32 %v1723, 7
      %v1725 = vsub.s32 %v1722, %v1724
      %v1726 = vrot.slane %v1718, %v1725
      %v1728 = vunpack.c.l.s4 1934713408
      %v1729 = vunpack.c.0.s8 %v1728
      %v1730 = vlaneseq
      %v1731 = vshrl.u32 %v1730, 7
      %v1732 = vsub.s32 %v1729, %v1731
      %v1733 = vrot.slane %v1719, %v1732
      %v1734 = vcombine.low %v1669, %v1685
      %v1735 = vcombine.high %v1669, %v1685
      %v1737 = vunpack.c.l.s4 1934713408
      %v1738 = vunpack.c.0.s8 %v1737
      %v1739 = vlaneseq
      %v1740 = vshrl.u32 %v1739, 7
      %v1741 = vsub.s32 %v1738, %v1740
      %v1742 = vrot.slane %v1734, %v1741
      %v1744 = vunpack.c.l.s4 1934713408
      %v1745 = vunpack.c.0.s8 %v1744
      %v1746 = vlaneseq
      %v1747 = vshrl.u32 %v1746, 7
      %v1748 = vsub.s32 %v1745, %v1747
      %v1749 = vrot.slane %v1735, %v1748
      %v1750 = vcombine.low %v1694, %v1726
      %v1751 = vcombine.high %v1694, %v1726
      %v1752 = vcombine.low %v1701, %v1733
      %v1753 = vcombine.high %v1701, %v1733
      %v1754 = vcombine.low %v1710, %v1742
      %v1755 = vcombine.high %v1710, %v1742
      %v1756 = vcombine.low %v1717, %v1749
      %v1757 = vcombine.high %v1717, %v1749
      %1759 = vrot.lane.b32.xlu0 %v1615, 16
      %v1760 = vpop.permute.xlu0 %1759
      %1763 = vrot.lane.b32.xlu0 %v1616, 32
      %v1764 = vpop.permute.xlu0 %1763
      %1767 = vrot.lane.b32.xlu0 %v1617, 48
      %v1768 = vpop.permute.xlu0 %1767
      %1771 = vrot.lane.b32.xlu0 %v1618, 64
      %v1772 = vpop.permute.xlu0 %1771
      %1775 = vrot.lane.b32.xlu0 %v1619, 80
      %v1776 = vpop.permute.xlu0 %1775
      %1779 = vrot.lane.b32.xlu0 %v1620, 96
      %v1780 = vpop.permute.xlu0 %1779
      %1783 = vrot.lane.b32.xlu0 %v1621, 112
      %v1784 = vpop.permute.xlu0 %1783
      %1787 = vrot.lane.b32.xlu0 %v1751, 16
      %v1788 = vpop.permute.xlu0 %1787
      %1791 = vrot.lane.b32.xlu0 %v1752, 32
      %v1792 = vpop.permute.xlu0 %1791
      %1795 = vrot.lane.b32.xlu0 %v1753, 48
      %v1796 = vpop.permute.xlu0 %1795
      %1799 = vrot.lane.b32.xlu0 %v1754, 64
      %v1800 = vpop.permute.xlu0 %1799
      %1803 = vrot.lane.b32.xlu0 %v1755, 80
      %v1804 = vpop.permute.xlu0 %1803
      %1807 = vrot.lane.b32.xlu0 %v1756, 96
      %v1808 = vpop.permute.xlu0 %1807
      %1811 = vrot.lane.b32.xlu0 %v1757, 112
      %v1812 = vpop.permute.xlu0 %1811
      %v1814 = vsel %vm598, %v1614, %v1760
      %v1815 = vsel %vm600, %v1814, %v1764
      %v1816 = vsel %vm602, %v1815, %v1768
      %v1817 = vsel %vm604, %v1816, %v1772
      %v1818 = vsel %vm606, %v1817, %v1776
      %v1819 = vsel %vm608, %v1818, %v1780
      %v1820 = vsel %vm610, %v1819, %v1784
      %v1821 = vsel %vm598, %v1750, %v1788
      %v1822 = vsel %vm600, %v1821, %v1792
      %v1823 = vsel %vm602, %v1822, %v1796
      %v1824 = vsel %vm604, %v1823, %v1800
      %v1825 = vsel %vm606, %v1824, %v1804
      %v1826 = vsel %vm608, %v1825, %v1808
      %v1827 = vsel %vm610, %v1826, %v1812
      %1828 = vst [vmem:[#allocation2 + $0x30] sm:$0xff] %v1820
      %1829 = vst [vmem:[#allocation2 + $0x38] sm:$0xff] %v1827
      %1830 = vrot.lane.b32.xlu0 %v1432, 127
      %v1831 = vpop.permute.xlu0 %1830
      %1832 = vrot.lane.b32.xlu0 %v1434, 127
      %v1833 = vpop.permute.xlu0 %1832
      %1834 = vrot.lane.b32.xlu0 %v1437, 127
      %v1835 = vpop.permute.xlu0 %1834
      %1836 = vrot.lane.b32.xlu0 %v1439, 127
      %v1837 = vpop.permute.xlu0 %1836
      %1838 = vrot.lane.b32.xlu0 %v1442, 127
      %v1839 = vpop.permute.xlu0 %1838
      %1840 = vrot.lane.b32.xlu0 %v1444, 127
      %v1841 = vpop.permute.xlu0 %1840
      %1842 = vrot.lane.b32.xlu0 %v1447, 127
      %v1843 = vpop.permute.xlu0 %1842
      %1844 = vrot.lane.b32.xlu0 %v1449, 127
      %v1845 = vpop.permute.xlu0 %1844
      %1846 = vrot.lane.b32.xlu0 %v1452, 127
      %v1847 = vpop.permute.xlu0 %1846
      %1848 = vrot.lane.b32.xlu0 %v1454, 127
      %v1849 = vpop.permute.xlu0 %1848
      %1850 = vrot.lane.b32.xlu0 %v1457, 127
      %v1851 = vpop.permute.xlu0 %1850
      %1852 = vrot.lane.b32.xlu0 %v1459, 127
      %v1853 = vpop.permute.xlu0 %1852
      %1854 = vrot.lane.b32.xlu0 %v1462, 127
      %v1855 = vpop.permute.xlu0 %1854
      %1856 = vrot.lane.b32.xlu0 %v1464, 127
      %v1857 = vpop.permute.xlu0 %1856
      %1858 = vrot.lane.b32.xlu0 %v1467, 127
      %v1859 = vpop.permute.xlu0 %1858
      %1860 = vrot.lane.b32.xlu0 %v1469, 127
      %v1861 = vpop.permute.xlu0 %1860
      %v1878 = vcombine.low %v1831, %v1839
      %v1879 = vcombine.high %v1831, %v1839
      %v1881 = vunpack.c.l.s4 1983009808
      %v1882 = vunpack.c.0.s8 %v1881
      %v1883 = vlaneseq
      %v1884 = vshrl.u32 %v1883, 7
      %v1885 = vsub.s32 %v1882, %v1884
      %v1886 = vrot.slane %v1878, %v1885
      %v1888 = vunpack.c.l.s4 1983009808
      %v1889 = vunpack.c.0.s8 %v1888
      %v1890 = vlaneseq
      %v1891 = vshrl.u32 %v1890, 7
      %v1892 = vsub.s32 %v1889, %v1891
      %v1893 = vrot.slane %v1879, %v1892
      %v1894 = vcombine.low %v1835, %v1843
      %v1895 = vcombine.high %v1835, %v1843
      %v1897 = vunpack.c.l.s4 1983009808
      %v1898 = vunpack.c.0.s8 %v1897
      %v1899 = vlaneseq
      %v1900 = vshrl.u32 %v1899, 7
      %v1901 = vsub.s32 %v1898, %v1900
      %v1902 = vrot.slane %v1894, %v1901
      %v1904 = vunpack.c.l.s4 1983009808
      %v1905 = vunpack.c.0.s8 %v1904
      %v1906 = vlaneseq
      %v1907 = vshrl.u32 %v1906, 7
      %v1908 = vsub.s32 %v1905, %v1907
      %v1909 = vrot.slane %v1895, %v1908
      %v1910 = vcombine.low %v1847, %v1855
      %v1911 = vcombine.high %v1847, %v1855
      %v1913 = vunpack.c.l.s4 1983009808
      %v1914 = vunpack.c.0.s8 %v1913
      %v1915 = vlaneseq
      %v1916 = vshrl.u32 %v1915, 7
      %v1917 = vsub.s32 %v1914, %v1916
      %v1918 = vrot.slane %v1910, %v1917
      %v1920 = vunpack.c.l.s4 1983009808
      %v1921 = vunpack.c.0.s8 %v1920
      %v1922 = vlaneseq
      %v1923 = vshrl.u32 %v1922, 7
      %v1924 = vsub.s32 %v1921, %v1923
      %v1925 = vrot.slane %v1911, %v1924
      %v1926 = vcombine.low %v1851, %v1859
      %v1927 = vcombine.high %v1851, %v1859
      %v1929 = vunpack.c.l.s4 1983009808
      %v1930 = vunpack.c.0.s8 %v1929
      %v1931 = vlaneseq
      %v1932 = vshrl.u32 %v1931, 7
      %v1933 = vsub.s32 %v1930, %v1932
      %v1934 = vrot.slane %v1926, %v1933
      %v1936 = vunpack.c.l.s4 1983009808
      %v1937 = vunpack.c.0.s8 %v1936
      %v1938 = vlaneseq
      %v1939 = vshrl.u32 %v1938, 7
      %v1940 = vsub.s32 %v1937, %v1939
      %v1941 = vrot.slane %v1927, %v1940
      %v1942 = vcombine.low %v1886, %v1902
      %v1943 = vcombine.high %v1886, %v1902
      %v1945 = vunpack.c.l.s4 1934713408
      %v1946 = vunpack.c.0.s8 %v1945
      %v1947 = vlaneseq
      %v1948 = vshrl.u32 %v1947, 7
      %v1949 = vsub.s32 %v1946, %v1948
      %v1950 = vrot.slane %v1942, %v1949
      %v1952 = vunpack.c.l.s4 1934713408
      %v1953 = vunpack.c.0.s8 %v1952
      %v1954 = vlaneseq
      %v1955 = vshrl.u32 %v1954, 7
      %v1956 = vsub.s32 %v1953, %v1955
      %v1957 = vrot.slane %v1943, %v1956
      %v1958 = vcombine.low %v1893, %v1909
      %v1959 = vcombine.high %v1893, %v1909
      %v1961 = vunpack.c.l.s4 1934713408
      %v1962 = vunpack.c.0.s8 %v1961
      %v1963 = vlaneseq
      %v1964 = vshrl.u32 %v1963, 7
      %v1965 = vsub.s32 %v1962, %v1964
      %v1966 = vrot.slane %v1958, %v1965
      %v1968 = vunpack.c.l.s4 1934713408
      %v1969 = vunpack.c.0.s8 %v1968
      %v1970 = vlaneseq
      %v1971 = vshrl.u32 %v1970, 7
      %v1972 = vsub.s32 %v1969, %v1971
      %v1973 = vrot.slane %v1959, %v1972
      %v1974 = vcombine.low %v1918, %v1934
      %v1975 = vcombine.high %v1918, %v1934
      %v1977 = vunpack.c.l.s4 1934713408
      %v1978 = vunpack.c.0.s8 %v1977
      %v1979 = vlaneseq
      %v1980 = vshrl.u32 %v1979, 7
      %v1981 = vsub.s32 %v1978, %v1980
      %v1982 = vrot.slane %v1974, %v1981
      %v1984 = vunpack.c.l.s4 1934713408
      %v1985 = vunpack.c.0.s8 %v1984
      %v1986 = vlaneseq
      %v1987 = vshrl.u32 %v1986, 7
      %v1988 = vsub.s32 %v1985, %v1987
      %v1989 = vrot.slane %v1975, %v1988
      %v1990 = vcombine.low %v1925, %v1941
      %v1991 = vcombine.high %v1925, %v1941
      %v1993 = vunpack.c.l.s4 1934713408
      %v1994 = vunpack.c.0.s8 %v1993
      %v1995 = vlaneseq
      %v1996 = vshrl.u32 %v1995, 7
      %v1997 = vsub.s32 %v1994, %v1996
      %v1998 = vrot.slane %v1990, %v1997
      %v2000 = vunpack.c.l.s4 1934713408
      %v2001 = vunpack.c.0.s8 %v2000
      %v2002 = vlaneseq
      %v2003 = vshrl.u32 %v2002, 7
      %v2004 = vsub.s32 %v2001, %v2003
      %v2005 = vrot.slane %v1991, %v2004
      %v2006 = vcombine.low %v1950, %v1982
      %v2007 = vcombine.high %v1950, %v1982
      %v2008 = vcombine.low %v1957, %v1989
      %v2009 = vcombine.high %v1957, %v1989
      %v2010 = vcombine.low %v1966, %v1998
      %v2011 = vcombine.high %v1966, %v1998
      %v2012 = vcombine.low %v1973, %v2005
      %v2013 = vcombine.high %v1973, %v2005
      %v2014 = vcombine.low %v1833, %v1841
      %v2015 = vcombine.high %v1833, %v1841
      %v2017 = vunpack.c.l.s4 1983009808
      %v2018 = vunpack.c.0.s8 %v2017
      %v2019 = vlaneseq
      %v2020 = vshrl.u32 %v2019, 7
      %v2021 = vsub.s32 %v2018, %v2020
      %v2022 = vrot.slane %v2014, %v2021
      %v2024 = vunpack.c.l.s4 1983009808
      %v2025 = vunpack.c.0.s8 %v2024
      %v2026 = vlaneseq
      %v2027 = vshrl.u32 %v2026, 7
      %v2028 = vsub.s32 %v2025, %v2027
      %v2029 = vrot.slane %v2015, %v2028
      %v2030 = vcombine.low %v1837, %v1845
      %v2031 = vcombine.high %v1837, %v1845
      %v2033 = vunpack.c.l.s4 1983009808
      %v2034 = vunpack.c.0.s8 %v2033
      %v2035 = vlaneseq
      %v2036 = vshrl.u32 %v2035, 7
      %v2037 = vsub.s32 %v2034, %v2036
      %v2038 = vrot.slane %v2030, %v2037
      %v2040 = vunpack.c.l.s4 1983009808
      %v2041 = vunpack.c.0.s8 %v2040
      %v2042 = vlaneseq
      %v2043 = vshrl.u32 %v2042, 7
      %v2044 = vsub.s32 %v2041, %v2043
      %v2045 = vrot.slane %v2031, %v2044
      %v2046 = vcombine.low %v1849, %v1857
      %v2047 = vcombine.high %v1849, %v1857
      %v2049 = vunpack.c.l.s4 1983009808
      %v2050 = vunpack.c.0.s8 %v2049
      %v2051 = vlaneseq
      %v2052 = vshrl.u32 %v2051, 7
      %v2053 = vsub.s32 %v2050, %v2052
      %v2054 = vrot.slane %v2046, %v2053
      %v2056 = vunpack.c.l.s4 1983009808
      %v2057 = vunpack.c.0.s8 %v2056
      %v2058 = vlaneseq
      %v2059 = vshrl.u32 %v2058, 7
      %v2060 = vsub.s32 %v2057, %v2059
      %v2061 = vrot.slane %v2047, %v2060
      %v2062 = vcombine.low %v1853, %v1861
      %v2063 = vcombine.high %v1853, %v1861
      %v2065 = vunpack.c.l.s4 1983009808
      %v2066 = vunpack.c.0.s8 %v2065
      %v2067 = vlaneseq
      %v2068 = vshrl.u32 %v2067, 7
      %v2069 = vsub.s32 %v2066, %v2068
      %v2070 = vrot.slane %v2062, %v2069
      %v2072 = vunpack.c.l.s4 1983009808
      %v2073 = vunpack.c.0.s8 %v2072
      %v2074 = vlaneseq
      %v2075 = vshrl.u32 %v2074, 7
      %v2076 = vsub.s32 %v2073, %v2075
      %v2077 = vrot.slane %v2063, %v2076
      %v2078 = vcombine.low %v2022, %v2038
      %v2079 = vcombine.high %v2022, %v2038
      %v2081 = vunpack.c.l.s4 1934713408
      %v2082 = vunpack.c.0.s8 %v2081
      %v2083 = vlaneseq
      %v2084 = vshrl.u32 %v2083, 7
      %v2085 = vsub.s32 %v2082, %v2084
      %v2086 = vrot.slane %v2078, %v2085
      %v2088 = vunpack.c.l.s4 1934713408
      %v2089 = vunpack.c.0.s8 %v2088
      %v2090 = vlaneseq
      %v2091 = vshrl.u32 %v2090, 7
      %v2092 = vsub.s32 %v2089, %v2091
      %v2093 = vrot.slane %v2079, %v2092
      %v2094 = vcombine.low %v2029, %v2045
      %v2095 = vcombine.high %v2029, %v2045
      %v2097 = vunpack.c.l.s4 1934713408
      %v2098 = vunpack.c.0.s8 %v2097
      %v2099 = vlaneseq
      %v2100 = vshrl.u32 %v2099, 7
      %v2101 = vsub.s32 %v2098, %v2100
      %v2102 = vrot.slane %v2094, %v2101
      %v2104 = vunpack.c.l.s4 1934713408
      %v2105 = vunpack.c.0.s8 %v2104
      %v2106 = vlaneseq
      %v2107 = vshrl.u32 %v2106, 7
      %v2108 = vsub.s32 %v2105, %v2107
      %v2109 = vrot.slane %v2095, %v2108
      %v2110 = vcombine.low %v2054, %v2070
      %v2111 = vcombine.high %v2054, %v2070
      %v2113 = vunpack.c.l.s4 1934713408
      %v2114 = vunpack.c.0.s8 %v2113
      %v2115 = vlaneseq
      %v2116 = vshrl.u32 %v2115, 7
      %v2117 = vsub.s32 %v2114, %v2116
      %v2118 = vrot.slane %v2110, %v2117
      %v2120 = vunpack.c.l.s4 1934713408
      %v2121 = vunpack.c.0.s8 %v2120
      %v2122 = vlaneseq
      %v2123 = vshrl.u32 %v2122, 7
      %v2124 = vsub.s32 %v2121, %v2123
      %v2125 = vrot.slane %v2111, %v2124
      %v2126 = vcombine.low %v2061, %v2077
      %v2127 = vcombine.high %v2061, %v2077
      %v2129 = vunpack.c.l.s4 1934713408
      %v2130 = vunpack.c.0.s8 %v2129
      %v2131 = vlaneseq
      %v2132 = vshrl.u32 %v2131, 7
      %v2133 = vsub.s32 %v2130, %v2132
      %v2134 = vrot.slane %v2126, %v2133
      %v2136 = vunpack.c.l.s4 1934713408
      %v2137 = vunpack.c.0.s8 %v2136
      %v2138 = vlaneseq
      %v2139 = vshrl.u32 %v2138, 7
      %v2140 = vsub.s32 %v2137, %v2139
      %v2141 = vrot.slane %v2127, %v2140
      %v2142 = vcombine.low %v2086, %v2118
      %v2143 = vcombine.high %v2086, %v2118
      %v2144 = vcombine.low %v2093, %v2125
      %v2145 = vcombine.high %v2093, %v2125
      %v2146 = vcombine.low %v2102, %v2134
      %v2147 = vcombine.high %v2102, %v2134
      %v2148 = vcombine.low %v2109, %v2141
      %v2149 = vcombine.high %v2109, %v2141
      %2151 = vrot.lane.b32.xlu0 %v2007, 16
      %v2152 = vpop.permute.xlu0 %2151
      %2155 = vrot.lane.b32.xlu0 %v2008, 32
      %v2156 = vpop.permute.xlu0 %2155
      %2159 = vrot.lane.b32.xlu0 %v2009, 48
      %v2160 = vpop.permute.xlu0 %2159
      %2163 = vrot.lane.b32.xlu0 %v2010, 64
      %v2164 = vpop.permute.xlu0 %2163
      %2167 = vrot.lane.b32.xlu0 %v2011, 80
      %v2168 = vpop.permute.xlu0 %2167
      %2171 = vrot.lane.b32.xlu0 %v2012, 96
      %v2172 = vpop.permute.xlu0 %2171
      %2175 = vrot.lane.b32.xlu0 %v2013, 112
      %v2176 = vpop.permute.xlu0 %2175
      %2179 = vrot.lane.b32.xlu0 %v2143, 16
      %v2180 = vpop.permute.xlu0 %2179
      %2183 = vrot.lane.b32.xlu0 %v2144, 32
      %v2184 = vpop.permute.xlu0 %2183
      %2187 = vrot.lane.b32.xlu0 %v2145, 48
      %v2188 = vpop.permute.xlu0 %2187
      %2191 = vrot.lane.b32.xlu0 %v2146, 64
      %v2192 = vpop.permute.xlu0 %2191
      %2195 = vrot.lane.b32.xlu0 %v2147, 80
      %v2196 = vpop.permute.xlu0 %2195
      %2199 = vrot.lane.b32.xlu0 %v2148, 96
      %v2200 = vpop.permute.xlu0 %2199
      %2203 = vrot.lane.b32.xlu0 %v2149, 112
      %v2204 = vpop.permute.xlu0 %2203
      %v2206 = vsel %vm598, %v2006, %v2152
      %v2207 = vsel %vm600, %v2206, %v2156
      %v2208 = vsel %vm602, %v2207, %v2160
      %v2209 = vsel %vm604, %v2208, %v2164
      %v2210 = vsel %vm606, %v2209, %v2168
      %v2211 = vsel %vm608, %v2210, %v2172
      %v2212 = vsel %vm610, %v2211, %v2176
      %v2213 = vsel %vm598, %v2142, %v2180
      %v2214 = vsel %vm600, %v2213, %v2184
      %v2215 = vsel %vm602, %v2214, %v2188
      %v2216 = vsel %vm604, %v2215, %v2192
      %v2217 = vsel %vm606, %v2216, %v2196
      %v2218 = vsel %vm608, %v2217, %v2200
      %v2219 = vsel %vm610, %v2218, %v2204
      %2220 = vst [vmem:[#allocation2 + $0x40] sm:$0xff] %v2212
      %2221 = vst [vmem:[#allocation2 + $0x48] sm:$0xff] %v2219
      %2222 = vrot.lane.b32.xlu0 %v1432, 126
      %v2223 = vpop.permute.xlu0 %2222
      %2224 = vrot.lane.b32.xlu0 %v1434, 126
      %v2225 = vpop.permute.xlu0 %2224
      %2226 = vrot.lane.b32.xlu0 %v1437, 126
      %v2227 = vpop.permute.xlu0 %2226
      %2228 = vrot.lane.b32.xlu0 %v1439, 126
      %v2229 = vpop.permute.xlu0 %2228
      %2230 = vrot.lane.b32.xlu0 %v1442, 126
      %v2231 = vpop.permute.xlu0 %2230
      %2232 = vrot.lane.b32.xlu0 %v1444, 126
      %v2233 = vpop.permute.xlu0 %2232
      %2234 = vrot.lane.b32.xlu0 %v1447, 126
      %v2235 = vpop.permute.xlu0 %2234
      %2236 = vrot.lane.b32.xlu0 %v1449, 126
      %v2237 = vpop.permute.xlu0 %2236
      %2238 = vrot.lane.b32.xlu0 %v1452, 126
      %v2239 = vpop.permute.xlu0 %2238
      %2240 = vrot.lane.b32.xlu0 %v1454, 126
      %v2241 = vpop.permute.xlu0 %2240
      %2242 = vrot.lane.b32.xlu0 %v1457, 126
      %v2243 = vpop.permute.xlu0 %2242
      %2244 = vrot.lane.b32.xlu0 %v1459, 126
      %v2245 = vpop.permute.xlu0 %2244
      %2246 = vrot.lane.b32.xlu0 %v1462, 126
      %v2247 = vpop.permute.xlu0 %2246
      %2248 = vrot.lane.b32.xlu0 %v1464, 126
      %v2249 = vpop.permute.xlu0 %2248
      %2250 = vrot.lane.b32.xlu0 %v1467, 126
      %v2251 = vpop.permute.xlu0 %2250
      %2252 = vrot.lane.b32.xlu0 %v1469, 126
      %v2253 = vpop.permute.xlu0 %2252
      %v2270 = vcombine.low %v2223, %v2231
      %v2271 = vcombine.high %v2223, %v2231
      %v2273 = vunpack.c.l.s4 1983009808
      %v2274 = vunpack.c.0.s8 %v2273
      %v2275 = vlaneseq
      %v2276 = vshrl.u32 %v2275, 7
      %v2277 = vsub.s32 %v2274, %v2276
      %v2278 = vrot.slane %v2270, %v2277
      %v2280 = vunpack.c.l.s4 1983009808
      %v2281 = vunpack.c.0.s8 %v2280
      %v2282 = vlaneseq
      %v2283 = vshrl.u32 %v2282, 7
      %v2284 = vsub.s32 %v2281, %v2283
      %v2285 = vrot.slane %v2271, %v2284
      %v2286 = vcombine.low %v2227, %v2235
      %v2287 = vcombine.high %v2227, %v2235
      %v2289 = vunpack.c.l.s4 1983009808
      %v2290 = vunpack.c.0.s8 %v2289
      %v2291 = vlaneseq
      %v2292 = vshrl.u32 %v2291, 7
      %v2293 = vsub.s32 %v2290, %v2292
      %v2294 = vrot.slane %v2286, %v2293
      %v2296 = vunpack.c.l.s4 1983009808
      %v2297 = vunpack.c.0.s8 %v2296
      %v2298 = vlaneseq
      %v2299 = vshrl.u32 %v2298, 7
      %v2300 = vsub.s32 %v2297, %v2299
      %v2301 = vrot.slane %v2287, %v2300
      %v2302 = vcombine.low %v2239, %v2247
      %v2303 = vcombine.high %v2239, %v2247
      %v2305 = vunpack.c.l.s4 1983009808
      %v2306 = vunpack.c.0.s8 %v2305
      %v2307 = vlaneseq
      %v2308 = vshrl.u32 %v2307, 7
      %v2309 = vsub.s32 %v2306, %v2308
      %v2310 = vrot.slane %v2302, %v2309
      %v2312 = vunpack.c.l.s4 1983009808
      %v2313 = vunpack.c.0.s8 %v2312
      %v2314 = vlaneseq
      %v2315 = vshrl.u32 %v2314, 7
      %v2316 = vsub.s32 %v2313, %v2315
      %v2317 = vrot.slane %v2303, %v2316
      %v2318 = vcombine.low %v2243, %v2251
      %v2319 = vcombine.high %v2243, %v2251
      %v2321 = vunpack.c.l.s4 1983009808
      %v2322 = vunpack.c.0.s8 %v2321
      %v2323 = vlaneseq
      %v2324 = vshrl.u32 %v2323, 7
      %v2325 = vsub.s32 %v2322, %v2324
      %v2326 = vrot.slane %v2318, %v2325
      %v2328 = vunpack.c.l.s4 1983009808
      %v2329 = vunpack.c.0.s8 %v2328
      %v2330 = vlaneseq
      %v2331 = vshrl.u32 %v2330, 7
      %v2332 = vsub.s32 %v2329, %v2331
      %v2333 = vrot.slane %v2319, %v2332
      %v2334 = vcombine.low %v2278, %v2294
      %v2335 = vcombine.high %v2278, %v2294
      %v2337 = vunpack.c.l.s4 1934713408
      %v2338 = vunpack.c.0.s8 %v2337
      %v2339 = vlaneseq
      %v2340 = vshrl.u32 %v2339, 7
      %v2341 = vsub.s32 %v2338, %v2340
      %v2342 = vrot.slane %v2334, %v2341
      %v2344 = vunpack.c.l.s4 1934713408
      %v2345 = vunpack.c.0.s8 %v2344
      %v2346 = vlaneseq
      %v2347 = vshrl.u32 %v2346, 7
      %v2348 = vsub.s32 %v2345, %v2347
      %v2349 = vrot.slane %v2335, %v2348
      %v2350 = vcombine.low %v2285, %v2301
      %v2351 = vcombine.high %v2285, %v2301
      %v2353 = vunpack.c.l.s4 1934713408
      %v2354 = vunpack.c.0.s8 %v2353
      %v2355 = vlaneseq
      %v2356 = vshrl.u32 %v2355, 7
      %v2357 = vsub.s32 %v2354, %v2356
      %v2358 = vrot.slane %v2350, %v2357
      %v2360 = vunpack.c.l.s4 1934713408
      %v2361 = vunpack.c.0.s8 %v2360
      %v2362 = vlaneseq
      %v2363 = vshrl.u32 %v2362, 7
      %v2364 = vsub.s32 %v2361, %v2363
      %v2365 = vrot.slane %v2351, %v2364
      %v2366 = vcombine.low %v2310, %v2326
      %v2367 = vcombine.high %v2310, %v2326
      %v2369 = vunpack.c.l.s4 1934713408
      %v2370 = vunpack.c.0.s8 %v2369
      %v2371 = vlaneseq
      %v2372 = vshrl.u32 %v2371, 7
      %v2373 = vsub.s32 %v2370, %v2372
      %v2374 = vrot.slane %v2366, %v2373
      %v2376 = vunpack.c.l.s4 1934713408
      %v2377 = vunpack.c.0.s8 %v2376
      %v2378 = vlaneseq
      %v2379 = vshrl.u32 %v2378, 7
      %v2380 = vsub.s32 %v2377, %v2379
      %v2381 = vrot.slane %v2367, %v2380
      %v2382 = vcombine.low %v2317, %v2333
      %v2383 = vcombine.high %v2317, %v2333
      %v2385 = vunpack.c.l.s4 1934713408
      %v2386 = vunpack.c.0.s8 %v2385
      %v2387 = vlaneseq
      %v2388 = vshrl.u32 %v2387, 7
      %v2389 = vsub.s32 %v2386, %v2388
      %v2390 = vrot.slane %v2382, %v2389
      %v2392 = vunpack.c.l.s4 1934713408
      %v2393 = vunpack.c.0.s8 %v2392
      %v2394 = vlaneseq
      %v2395 = vshrl.u32 %v2394, 7
      %v2396 = vsub.s32 %v2393, %v2395
      %v2397 = vrot.slane %v2383, %v2396
      %v2398 = vcombine.low %v2342, %v2374
      %v2399 = vcombine.high %v2342, %v2374
      %v2400 = vcombine.low %v2349, %v2381
      %v2401 = vcombine.high %v2349, %v2381
      %v2402 = vcombine.low %v2358, %v2390
      %v2403 = vcombine.high %v2358, %v2390
      %v2404 = vcombine.low %v2365, %v2397
      %v2405 = vcombine.high %v2365, %v2397
      %v2406 = vcombine.low %v2225, %v2233
      %v2407 = vcombine.high %v2225, %v2233
      %v2409 = vunpack.c.l.s4 1983009808
      %v2410 = vunpack.c.0.s8 %v2409
      %v2411 = vlaneseq
      %v2412 = vshrl.u32 %v2411, 7
      %v2413 = vsub.s32 %v2410, %v2412
      %v2414 = vrot.slane %v2406, %v2413
      %v2416 = vunpack.c.l.s4 1983009808
      %v2417 = vunpack.c.0.s8 %v2416
      %v2418 = vlaneseq
      %v2419 = vshrl.u32 %v2418, 7
      %v2420 = vsub.s32 %v2417, %v2419
      %v2421 = vrot.slane %v2407, %v2420
      %v2422 = vcombine.low %v2229, %v2237
      %v2423 = vcombine.high %v2229, %v2237
      %v2425 = vunpack.c.l.s4 1983009808
      %v2426 = vunpack.c.0.s8 %v2425
      %v2427 = vlaneseq
      %v2428 = vshrl.u32 %v2427, 7
      %v2429 = vsub.s32 %v2426, %v2428
      %v2430 = vrot.slane %v2422, %v2429
      %v2432 = vunpack.c.l.s4 1983009808
      %v2433 = vunpack.c.0.s8 %v2432
      %v2434 = vlaneseq
      %v2435 = vshrl.u32 %v2434, 7
      %v2436 = vsub.s32 %v2433, %v2435
      %v2437 = vrot.slane %v2423, %v2436
      %v2438 = vcombine.low %v2241, %v2249
      %v2439 = vcombine.high %v2241, %v2249
      %v2441 = vunpack.c.l.s4 1983009808
      %v2442 = vunpack.c.0.s8 %v2441
      %v2443 = vlaneseq
      %v2444 = vshrl.u32 %v2443, 7
      %v2445 = vsub.s32 %v2442, %v2444
      %v2446 = vrot.slane %v2438, %v2445
      %v2448 = vunpack.c.l.s4 1983009808
      %v2449 = vunpack.c.0.s8 %v2448
      %v2450 = vlaneseq
      %v2451 = vshrl.u32 %v2450, 7
      %v2452 = vsub.s32 %v2449, %v2451
      %v2453 = vrot.slane %v2439, %v2452
      %v2454 = vcombine.low %v2245, %v2253
      %v2455 = vcombine.high %v2245, %v2253
      %v2457 = vunpack.c.l.s4 1983009808
      %v2458 = vunpack.c.0.s8 %v2457
      %v2459 = vlaneseq
      %v2460 = vshrl.u32 %v2459, 7
      %v2461 = vsub.s32 %v2458, %v2460
      %v2462 = vrot.slane %v2454, %v2461
      %v2464 = vunpack.c.l.s4 1983009808
      %v2465 = vunpack.c.0.s8 %v2464
      %v2466 = vlaneseq
      %v2467 = vshrl.u32 %v2466, 7
      %v2468 = vsub.s32 %v2465, %v2467
      %v2469 = vrot.slane %v2455, %v2468
      %v2470 = vcombine.low %v2414, %v2430
      %v2471 = vcombine.high %v2414, %v2430
      %v2473 = vunpack.c.l.s4 1934713408
      %v2474 = vunpack.c.0.s8 %v2473
      %v2475 = vlaneseq
      %v2476 = vshrl.u32 %v2475, 7
      %v2477 = vsub.s32 %v2474, %v2476
      %v2478 = vrot.slane %v2470, %v2477
      %v2480 = vunpack.c.l.s4 1934713408
      %v2481 = vunpack.c.0.s8 %v2480
      %v2482 = vlaneseq
      %v2483 = vshrl.u32 %v2482, 7
      %v2484 = vsub.s32 %v2481, %v2483
      %v2485 = vrot.slane %v2471, %v2484
      %v2486 = vcombine.low %v2421, %v2437
      %v2487 = vcombine.high %v2421, %v2437
      %v2489 = vunpack.c.l.s4 1934713408
      %v2490 = vunpack.c.0.s8 %v2489
      %v2491 = vlaneseq
      %v2492 = vshrl.u32 %v2491, 7
      %v2493 = vsub.s32 %v2490, %v2492
      %v2494 = vrot.slane %v2486, %v2493
      %v2496 = vunpack.c.l.s4 1934713408
      %v2497 = vunpack.c.0.s8 %v2496
      %v2498 = vlaneseq
      %v2499 = vshrl.u32 %v2498, 7
      %v2500 = vsub.s32 %v2497, %v2499
      %v2501 = vrot.slane %v2487, %v2500
      %v2502 = vcombine.low %v2446, %v2462
      %v2503 = vcombine.high %v2446, %v2462
      %v2505 = vunpack.c.l.s4 1934713408
      %v2506 = vunpack.c.0.s8 %v2505
      %v2507 = vlaneseq
      %v2508 = vshrl.u32 %v2507, 7
      %v2509 = vsub.s32 %v2506, %v2508
      %v2510 = vrot.slane %v2502, %v2509
      %v2512 = vunpack.c.l.s4 1934713408
      %v2513 = vunpack.c.0.s8 %v2512
      %v2514 = vlaneseq
      %v2515 = vshrl.u32 %v2514, 7
      %v2516 = vsub.s32 %v2513, %v2515
      %v2517 = vrot.slane %v2503, %v2516
      %v2518 = vcombine.low %v2453, %v2469
      %v2519 = vcombine.high %v2453, %v2469
      %v2521 = vunpack.c.l.s4 1934713408
      %v2522 = vunpack.c.0.s8 %v2521
      %v2523 = vlaneseq
      %v2524 = vshrl.u32 %v2523, 7
      %v2525 = vsub.s32 %v2522, %v2524
      %v2526 = vrot.slane %v2518, %v2525
      %v2528 = vunpack.c.l.s4 1934713408
      %v2529 = vunpack.c.0.s8 %v2528
      %v2530 = vlaneseq
      %v2531 = vshrl.u32 %v2530, 7
      %v2532 = vsub.s32 %v2529, %v2531
      %v2533 = vrot.slane %v2519, %v2532
      %v2534 = vcombine.low %v2478, %v2510
      %v2535 = vcombine.high %v2478, %v2510
      %v2536 = vcombine.low %v2485, %v2517
      %v2537 = vcombine.high %v2485, %v2517
      %v2538 = vcombine.low %v2494, %v2526
      %v2539 = vcombine.high %v2494, %v2526
      %v2540 = vcombine.low %v2501, %v2533
      %v2541 = vcombine.high %v2501, %v2533
      %2543 = vrot.lane.b32.xlu0 %v2399, 16
      %v2544 = vpop.permute.xlu0 %2543
      %2547 = vrot.lane.b32.xlu0 %v2400, 32
      %v2548 = vpop.permute.xlu0 %2547
      %2551 = vrot.lane.b32.xlu0 %v2401, 48
      %v2552 = vpop.permute.xlu0 %2551
      %2555 = vrot.lane.b32.xlu0 %v2402, 64
      %v2556 = vpop.permute.xlu0 %2555
      %2559 = vrot.lane.b32.xlu0 %v2403, 80
      %v2560 = vpop.permute.xlu0 %2559
      %2563 = vrot.lane.b32.xlu0 %v2404, 96
      %v2564 = vpop.permute.xlu0 %2563
      %2567 = vrot.lane.b32.xlu0 %v2405, 112
      %v2568 = vpop.permute.xlu0 %2567
      %2571 = vrot.lane.b32.xlu0 %v2535, 16
      %v2572 = vpop.permute.xlu0 %2571
      %2575 = vrot.lane.b32.xlu0 %v2536, 32
      %v2576 = vpop.permute.xlu0 %2575
      %2579 = vrot.lane.b32.xlu0 %v2537, 48
      %v2580 = vpop.permute.xlu0 %2579
      %2583 = vrot.lane.b32.xlu0 %v2538, 64
      %v2584 = vpop.permute.xlu0 %2583
      %2587 = vrot.lane.b32.xlu0 %v2539, 80
      %v2588 = vpop.permute.xlu0 %2587
      %2591 = vrot.lane.b32.xlu0 %v2540, 96
      %v2592 = vpop.permute.xlu0 %2591
      %2595 = vrot.lane.b32.xlu0 %v2541, 112
      %v2596 = vpop.permute.xlu0 %2595
      %v2598 = vsel %vm598, %v2398, %v2544
      %v2599 = vsel %vm600, %v2598, %v2548
      %v2600 = vsel %vm602, %v2599, %v2552
      %v2601 = vsel %vm604, %v2600, %v2556
      %v2602 = vsel %vm606, %v2601, %v2560
      %v2603 = vsel %vm608, %v2602, %v2564
      %v2604 = vsel %vm610, %v2603, %v2568
      %v2605 = vsel %vm598, %v2534, %v2572
      %v2606 = vsel %vm600, %v2605, %v2576
      %v2607 = vsel %vm602, %v2606, %v2580
      %v2608 = vsel %vm604, %v2607, %v2584
      %v2609 = vsel %vm606, %v2608, %v2588
      %v2610 = vsel %vm608, %v2609, %v2592
      %v2611 = vsel %vm610, %v2610, %v2596
      %2612 = vst [vmem:[#allocation2 + $0x50] sm:$0xff] %v2604
      %2613 = vst [vmem:[#allocation2 + $0x58] sm:$0xff] %v2611
      %vm2614 = vcmask 1045504
      %v2615 = vrot.slane %v246, 2
      %v2616 = vrot.slane %v247, 2
      %v2617 = vsel %vm2614, %v2615, %v2616
      %v2618 = vrot.slane %v248, 2
      %v2619 = vsel %vm2614, %v2616, %v2618
      %v2620 = vrot.slane %v249, 2
      %v2621 = vrot.slane %v250, 2
      %v2622 = vsel %vm2614, %v2620, %v2621
      %v2623 = vrot.slane %v251, 2
      %v2624 = vsel %vm2614, %v2621, %v2623
      %v2625 = vrot.slane %v252, 2
      %v2626 = vrot.slane %v253, 2
      %v2627 = vsel %vm2614, %v2625, %v2626
      %v2628 = vrot.slane %v254, 2
      %v2629 = vsel %vm2614, %v2626, %v2628
      %v2630 = vrot.slane %v255, 2
      %v2631 = vrot.slane %v256, 2
      %v2632 = vsel %vm2614, %v2630, %v2631
      %v2633 = vrot.slane %v257, 2
      %v2634 = vsel %vm2614, %v2631, %v2633
      %v2635 = vrot.slane %v258, 2
      %v2636 = vrot.slane %v259, 2
      %v2637 = vsel %vm2614, %v2635, %v2636
      %v2638 = vrot.slane %v260, 2
      %v2639 = vsel %vm2614, %v2636, %v2638
      %v2640 = vrot.slane %v261, 2
      %v2641 = vrot.slane %v262, 2
      %v2642 = vsel %vm2614, %v2640, %v2641
      %v2643 = vrot.slane %v263, 2
      %v2644 = vsel %vm2614, %v2641, %v2643
      %v2645 = vrot.slane %v264, 2
      %v2646 = vrot.slane %v265, 2
      %v2647 = vsel %vm2614, %v2645, %v2646
      %v2648 = vrot.slane %v266, 2
      %v2649 = vsel %vm2614, %v2646, %v2648
      %v2650 = vrot.slane %v267, 2
      %v2651 = vrot.slane %v268, 2
      %v2652 = vsel %vm2614, %v2650, %v2651
      %v2653 = vrot.slane %v269, 2
      %v2654 = vsel %vm2614, %v2651, %v2653
      %v2671 = vcombine.low %v2617, %v2627
      %v2672 = vcombine.high %v2617, %v2627
      %v2674 = vunpack.c.l.s4 1983009808
      %v2675 = vunpack.c.0.s8 %v2674
      %v2676 = vlaneseq
      %v2677 = vshrl.u32 %v2676, 7
      %v2678 = vsub.s32 %v2675, %v2677
      %v2679 = vrot.slane %v2671, %v2678
      %v2681 = vunpack.c.l.s4 1983009808
      %v2682 = vunpack.c.0.s8 %v2681
      %v2683 = vlaneseq
      %v2684 = vshrl.u32 %v2683, 7
      %v2685 = vsub.s32 %v2682, %v2684
      %v2686 = vrot.slane %v2672, %v2685
      %v2687 = vcombine.low %v2622, %v2632
      %v2688 = vcombine.high %v2622, %v2632
      %v2690 = vunpack.c.l.s4 1983009808
      %v2691 = vunpack.c.0.s8 %v2690
      %v2692 = vlaneseq
      %v2693 = vshrl.u32 %v2692, 7
      %v2694 = vsub.s32 %v2691, %v2693
      %v2695 = vrot.slane %v2687, %v2694
      %v2697 = vunpack.c.l.s4 1983009808
      %v2698 = vunpack.c.0.s8 %v2697
      %v2699 = vlaneseq
      %v2700 = vshrl.u32 %v2699, 7
      %v2701 = vsub.s32 %v2698, %v2700
      %v2702 = vrot.slane %v2688, %v2701
      %v2703 = vcombine.low %v2637, %v2647
      %v2704 = vcombine.high %v2637, %v2647
      %v2706 = vunpack.c.l.s4 1983009808
      %v2707 = vunpack.c.0.s8 %v2706
      %v2708 = vlaneseq
      %v2709 = vshrl.u32 %v2708, 7
      %v2710 = vsub.s32 %v2707, %v2709
      %v2711 = vrot.slane %v2703, %v2710
      %v2713 = vunpack.c.l.s4 1983009808
      %v2714 = vunpack.c.0.s8 %v2713
      %v2715 = vlaneseq
      %v2716 = vshrl.u32 %v2715, 7
      %v2717 = vsub.s32 %v2714, %v2716
      %v2718 = vrot.slane %v2704, %v2717
      %v2719 = vcombine.low %v2642, %v2652
      %v2720 = vcombine.high %v2642, %v2652
      %v2722 = vunpack.c.l.s4 1983009808
      %v2723 = vunpack.c.0.s8 %v2722
      %v2724 = vlaneseq
      %v2725 = vshrl.u32 %v2724, 7
      %v2726 = vsub.s32 %v2723, %v2725
      %v2727 = vrot.slane %v2719, %v2726
      %v2729 = vunpack.c.l.s4 1983009808
      %v2730 = vunpack.c.0.s8 %v2729
      %v2731 = vlaneseq
      %v2732 = vshrl.u32 %v2731, 7
      %v2733 = vsub.s32 %v2730, %v2732
      %v2734 = vrot.slane %v2720, %v2733
      %v2735 = vcombine.low %v2679, %v2695
      %v2736 = vcombine.high %v2679, %v2695
      %v2738 = vunpack.c.l.s4 1934713408
      %v2739 = vunpack.c.0.s8 %v2738
      %v2740 = vlaneseq
      %v2741 = vshrl.u32 %v2740, 7
      %v2742 = vsub.s32 %v2739, %v2741
      %v2743 = vrot.slane %v2735, %v2742
      %v2745 = vunpack.c.l.s4 1934713408
      %v2746 = vunpack.c.0.s8 %v2745
      %v2747 = vlaneseq
      %v2748 = vshrl.u32 %v2747, 7
      %v2749 = vsub.s32 %v2746, %v2748
      %v2750 = vrot.slane %v2736, %v2749
      %v2751 = vcombine.low %v2686, %v2702
      %v2752 = vcombine.high %v2686, %v2702
      %v2754 = vunpack.c.l.s4 1934713408
      %v2755 = vunpack.c.0.s8 %v2754
      %v2756 = vlaneseq
      %v2757 = vshrl.u32 %v2756, 7
      %v2758 = vsub.s32 %v2755, %v2757
      %v2759 = vrot.slane %v2751, %v2758
      %v2761 = vunpack.c.l.s4 1934713408
      %v2762 = vunpack.c.0.s8 %v2761
      %v2763 = vlaneseq
      %v2764 = vshrl.u32 %v2763, 7
      %v2765 = vsub.s32 %v2762, %v2764
      %v2766 = vrot.slane %v2752, %v2765
      %v2767 = vcombine.low %v2711, %v2727
      %v2768 = vcombine.high %v2711, %v2727
      %v2770 = vunpack.c.l.s4 1934713408
      %v2771 = vunpack.c.0.s8 %v2770
      %v2772 = vlaneseq
      %v2773 = vshrl.u32 %v2772, 7
      %v2774 = vsub.s32 %v2771, %v2773
      %v2775 = vrot.slane %v2767, %v2774
      %v2777 = vunpack.c.l.s4 1934713408
      %v2778 = vunpack.c.0.s8 %v2777
      %v2779 = vlaneseq
      %v2780 = vshrl.u32 %v2779, 7
      %v2781 = vsub.s32 %v2778, %v2780
      %v2782 = vrot.slane %v2768, %v2781
      %v2783 = vcombine.low %v2718, %v2734
      %v2784 = vcombine.high %v2718, %v2734
      %v2786 = vunpack.c.l.s4 1934713408
      %v2787 = vunpack.c.0.s8 %v2786
      %v2788 = vlaneseq
      %v2789 = vshrl.u32 %v2788, 7
      %v2790 = vsub.s32 %v2787, %v2789
      %v2791 = vrot.slane %v2783, %v2790
      %v2793 = vunpack.c.l.s4 1934713408
      %v2794 = vunpack.c.0.s8 %v2793
      %v2795 = vlaneseq
      %v2796 = vshrl.u32 %v2795, 7
      %v2797 = vsub.s32 %v2794, %v2796
      %v2798 = vrot.slane %v2784, %v2797
      %v2799 = vcombine.low %v2743, %v2775
      %v2800 = vcombine.high %v2743, %v2775
      %v2801 = vcombine.low %v2750, %v2782
      %v2802 = vcombine.high %v2750, %v2782
      %v2803 = vcombine.low %v2759, %v2791
      %v2804 = vcombine.high %v2759, %v2791
      %v2805 = vcombine.low %v2766, %v2798
      %v2806 = vcombine.high %v2766, %v2798
      %v2807 = vcombine.low %v2619, %v2629
      %v2808 = vcombine.high %v2619, %v2629
      %v2810 = vunpack.c.l.s4 1983009808
      %v2811 = vunpack.c.0.s8 %v2810
      %v2812 = vlaneseq
      %v2813 = vshrl.u32 %v2812, 7
      %v2814 = vsub.s32 %v2811, %v2813
      %v2815 = vrot.slane %v2807, %v2814
      %v2817 = vunpack.c.l.s4 1983009808
      %v2818 = vunpack.c.0.s8 %v2817
      %v2819 = vlaneseq
      %v2820 = vshrl.u32 %v2819, 7
      %v2821 = vsub.s32 %v2818, %v2820
      %v2822 = vrot.slane %v2808, %v2821
      %v2823 = vcombine.low %v2624, %v2634
      %v2824 = vcombine.high %v2624, %v2634
      %v2826 = vunpack.c.l.s4 1983009808
      %v2827 = vunpack.c.0.s8 %v2826
      %v2828 = vlaneseq
      %v2829 = vshrl.u32 %v2828, 7
      %v2830 = vsub.s32 %v2827, %v2829
      %v2831 = vrot.slane %v2823, %v2830
      %v2833 = vunpack.c.l.s4 1983009808
      %v2834 = vunpack.c.0.s8 %v2833
      %v2835 = vlaneseq
      %v2836 = vshrl.u32 %v2835, 7
      %v2837 = vsub.s32 %v2834, %v2836
      %v2838 = vrot.slane %v2824, %v2837
      %v2839 = vcombine.low %v2639, %v2649
      %v2840 = vcombine.high %v2639, %v2649
      %v2842 = vunpack.c.l.s4 1983009808
      %v2843 = vunpack.c.0.s8 %v2842
      %v2844 = vlaneseq
      %v2845 = vshrl.u32 %v2844, 7
      %v2846 = vsub.s32 %v2843, %v2845
      %v2847 = vrot.slane %v2839, %v2846
      %v2849 = vunpack.c.l.s4 1983009808
      %v2850 = vunpack.c.0.s8 %v2849
      %v2851 = vlaneseq
      %v2852 = vshrl.u32 %v2851, 7
      %v2853 = vsub.s32 %v2850, %v2852
      %v2854 = vrot.slane %v2840, %v2853
      %v2855 = vcombine.low %v2644, %v2654
      %v2856 = vcombine.high %v2644, %v2654
      %v2858 = vunpack.c.l.s4 1983009808
      %v2859 = vunpack.c.0.s8 %v2858
      %v2860 = vlaneseq
      %v2861 = vshrl.u32 %v2860, 7
      %v2862 = vsub.s32 %v2859, %v2861
      %v2863 = vrot.slane %v2855, %v2862
      %v2865 = vunpack.c.l.s4 1983009808
      %v2866 = vunpack.c.0.s8 %v2865
      %v2867 = vlaneseq
      %v2868 = vshrl.u32 %v2867, 7
      %v2869 = vsub.s32 %v2866, %v2868
      %v2870 = vrot.slane %v2856, %v2869
      %v2871 = vcombine.low %v2815, %v2831
      %v2872 = vcombine.high %v2815, %v2831
      %v2874 = vunpack.c.l.s4 1934713408
      %v2875 = vunpack.c.0.s8 %v2874
      %v2876 = vlaneseq
      %v2877 = vshrl.u32 %v2876, 7
      %v2878 = vsub.s32 %v2875, %v2877
      %v2879 = vrot.slane %v2871, %v2878
      %v2881 = vunpack.c.l.s4 1934713408
      %v2882 = vunpack.c.0.s8 %v2881
      %v2883 = vlaneseq
      %v2884 = vshrl.u32 %v2883, 7
      %v2885 = vsub.s32 %v2882, %v2884
      %v2886 = vrot.slane %v2872, %v2885
      %v2887 = vcombine.low %v2822, %v2838
      %v2888 = vcombine.high %v2822, %v2838
      %v2890 = vunpack.c.l.s4 1934713408
      %v2891 = vunpack.c.0.s8 %v2890
      %v2892 = vlaneseq
      %v2893 = vshrl.u32 %v2892, 7
      %v2894 = vsub.s32 %v2891, %v2893
      %v2895 = vrot.slane %v2887, %v2894
      %v2897 = vunpack.c.l.s4 1934713408
      %v2898 = vunpack.c.0.s8 %v2897
      %v2899 = vlaneseq
      %v2900 = vshrl.u32 %v2899, 7
      %v2901 = vsub.s32 %v2898, %v2900
      %v2902 = vrot.slane %v2888, %v2901
      %v2903 = vcombine.low %v2847, %v2863
      %v2904 = vcombine.high %v2847, %v2863
      %v2906 = vunpack.c.l.s4 1934713408
      %v2907 = vunpack.c.0.s8 %v2906
      %v2908 = vlaneseq
      %v2909 = vshrl.u32 %v2908, 7
      %v2910 = vsub.s32 %v2907, %v2909
      %v2911 = vrot.slane %v2903, %v2910
      %v2913 = vunpack.c.l.s4 1934713408
      %v2914 = vunpack.c.0.s8 %v2913
      %v2915 = vlaneseq
      %v2916 = vshrl.u32 %v2915, 7
      %v2917 = vsub.s32 %v2914, %v2916
      %v2918 = vrot.slane %v2904, %v2917
      %v2919 = vcombine.low %v2854, %v2870
      %v2920 = vcombine.high %v2854, %v2870
      %v2922 = vunpack.c.l.s4 1934713408
      %v2923 = vunpack.c.0.s8 %v2922
      %v2924 = vlaneseq
      %v2925 = vshrl.u32 %v2924, 7
      %v2926 = vsub.s32 %v2923, %v2925
      %v2927 = vrot.slane %v2919, %v2926
      %v2929 = vunpack.c.l.s4 1934713408
      %v2930 = vunpack.c.0.s8 %v2929
      %v2931 = vlaneseq
      %v2932 = vshrl.u32 %v2931, 7
      %v2933 = vsub.s32 %v2930, %v2932
      %v2934 = vrot.slane %v2920, %v2933
      %v2935 = vcombine.low %v2879, %v2911
      %v2936 = vcombine.high %v2879, %v2911
      %v2937 = vcombine.low %v2886, %v2918
      %v2938 = vcombine.high %v2886, %v2918
      %v2939 = vcombine.low %v2895, %v2927
      %v2940 = vcombine.high %v2895, %v2927
      %v2941 = vcombine.low %v2902, %v2934
      %v2942 = vcombine.high %v2902, %v2934
      %2944 = vrot.lane.b32.xlu0 %v2800, 16
      %v2945 = vpop.permute.xlu0 %2944
      %2948 = vrot.lane.b32.xlu0 %v2801, 32
      %v2949 = vpop.permute.xlu0 %2948
      %2952 = vrot.lane.b32.xlu0 %v2802, 48
      %v2953 = vpop.permute.xlu0 %2952
      %2956 = vrot.lane.b32.xlu0 %v2803, 64
      %v2957 = vpop.permute.xlu0 %2956
      %2960 = vrot.lane.b32.xlu0 %v2804, 80
      %v2961 = vpop.permute.xlu0 %2960
      %2964 = vrot.lane.b32.xlu0 %v2805, 96
      %v2965 = vpop.permute.xlu0 %2964
      %2968 = vrot.lane.b32.xlu0 %v2806, 112
      %v2969 = vpop.permute.xlu0 %2968
      %2972 = vrot.lane.b32.xlu0 %v2936, 16
      %v2973 = vpop.permute.xlu0 %2972
      %2976 = vrot.lane.b32.xlu0 %v2937, 32
      %v2977 = vpop.permute.xlu0 %2976
      %2980 = vrot.lane.b32.xlu0 %v2938, 48
      %v2981 = vpop.permute.xlu0 %2980
      %2984 = vrot.lane.b32.xlu0 %v2939, 64
      %v2985 = vpop.permute.xlu0 %2984
      %2988 = vrot.lane.b32.xlu0 %v2940, 80
      %v2989 = vpop.permute.xlu0 %2988
      %2992 = vrot.lane.b32.xlu0 %v2941, 96
      %v2993 = vpop.permute.xlu0 %2992
      %2996 = vrot.lane.b32.xlu0 %v2942, 112
      %v2997 = vpop.permute.xlu0 %2996
      %v2999 = vsel %vm598, %v2799, %v2945
      %v3000 = vsel %vm600, %v2999, %v2949
      %v3001 = vsel %vm602, %v3000, %v2953
      %v3002 = vsel %vm604, %v3001, %v2957
      %v3003 = vsel %vm606, %v3002, %v2961
      %v3004 = vsel %vm608, %v3003, %v2965
      %v3005 = vsel %vm610, %v3004, %v2969
      %v3006 = vsel %vm598, %v2935, %v2973
      %v3007 = vsel %vm600, %v3006, %v2977
      %v3008 = vsel %vm602, %v3007, %v2981
      %v3009 = vsel %vm604, %v3008, %v2985
      %v3010 = vsel %vm606, %v3009, %v2989
      %v3011 = vsel %vm608, %v3010, %v2993
      %v3012 = vsel %vm610, %v3011, %v2997
      %3013 = vst [vmem:[#allocation2 + $0x60] sm:$0xff] %v3005
      %3014 = vst [vmem:[#allocation2 + $0x68] sm:$0xff] %v3012
      %3015 = vrot.lane.b32.xlu0 %v2617, 127
      %v3016 = vpop.permute.xlu0 %3015
      %3017 = vrot.lane.b32.xlu0 %v2619, 127
      %v3018 = vpop.permute.xlu0 %3017
      %3019 = vrot.lane.b32.xlu0 %v2622, 127
      %v3020 = vpop.permute.xlu0 %3019
      %3021 = vrot.lane.b32.xlu0 %v2624, 127
      %v3022 = vpop.permute.xlu0 %3021
      %3023 = vrot.lane.b32.xlu0 %v2627, 127
      %v3024 = vpop.permute.xlu0 %3023
      %3025 = vrot.lane.b32.xlu0 %v2629, 127
      %v3026 = vpop.permute.xlu0 %3025
      %3027 = vrot.lane.b32.xlu0 %v2632, 127
      %v3028 = vpop.permute.xlu0 %3027
      %3029 = vrot.lane.b32.xlu0 %v2634, 127
      %v3030 = vpop.permute.xlu0 %3029
      %3031 = vrot.lane.b32.xlu0 %v2637, 127
      %v3032 = vpop.permute.xlu0 %3031
      %3033 = vrot.lane.b32.xlu0 %v2639, 127
      %v3034 = vpop.permute.xlu0 %3033
      %3035 = vrot.lane.b32.xlu0 %v2642, 127
      %v3036 = vpop.permute.xlu0 %3035
      %3037 = vrot.lane.b32.xlu0 %v2644, 127
      %v3038 = vpop.permute.xlu0 %3037
      %3039 = vrot.lane.b32.xlu0 %v2647, 127
      %v3040 = vpop.permute.xlu0 %3039
      %3041 = vrot.lane.b32.xlu0 %v2649, 127
      %v3042 = vpop.permute.xlu0 %3041
      %3043 = vrot.lane.b32.xlu0 %v2652, 127
      %v3044 = vpop.permute.xlu0 %3043
      %3045 = vrot.lane.b32.xlu0 %v2654, 127
      %v3046 = vpop.permute.xlu0 %3045
      %v3063 = vcombine.low %v3016, %v3024
      %v3064 = vcombine.high %v3016, %v3024
      %v3066 = vunpack.c.l.s4 1983009808
      %v3067 = vunpack.c.0.s8 %v3066
      %v3068 = vlaneseq
      %v3069 = vshrl.u32 %v3068, 7
      %v3070 = vsub.s32 %v3067, %v3069
      %v3071 = vrot.slane %v3063, %v3070
      %v3073 = vunpack.c.l.s4 1983009808
      %v3074 = vunpack.c.0.s8 %v3073
      %v3075 = vlaneseq
      %v3076 = vshrl.u32 %v3075, 7
      %v3077 = vsub.s32 %v3074, %v3076
      %v3078 = vrot.slane %v3064, %v3077
      %v3079 = vcombine.low %v3020, %v3028
      %v3080 = vcombine.high %v3020, %v3028
      %v3082 = vunpack.c.l.s4 1983009808
      %v3083 = vunpack.c.0.s8 %v3082
      %v3084 = vlaneseq
      %v3085 = vshrl.u32 %v3084, 7
      %v3086 = vsub.s32 %v3083, %v3085
      %v3087 = vrot.slane %v3079, %v3086
      %v3089 = vunpack.c.l.s4 1983009808
      %v3090 = vunpack.c.0.s8 %v3089
      %v3091 = vlaneseq
      %v3092 = vshrl.u32 %v3091, 7
      %v3093 = vsub.s32 %v3090, %v3092
      %v3094 = vrot.slane %v3080, %v3093
      %v3095 = vcombine.low %v3032, %v3040
      %v3096 = vcombine.high %v3032, %v3040
      %v3098 = vunpack.c.l.s4 1983009808
      %v3099 = vunpack.c.0.s8 %v3098
      %v3100 = vlaneseq
      %v3101 = vshrl.u32 %v3100, 7
      %v3102 = vsub.s32 %v3099, %v3101
      %v3103 = vrot.slane %v3095, %v3102
      %v3105 = vunpack.c.l.s4 1983009808
      %v3106 = vunpack.c.0.s8 %v3105
      %v3107 = vlaneseq
      %v3108 = vshrl.u32 %v3107, 7
      %v3109 = vsub.s32 %v3106, %v3108
      %v3110 = vrot.slane %v3096, %v3109
      %v3111 = vcombine.low %v3036, %v3044
      %v3112 = vcombine.high %v3036, %v3044
      %v3114 = vunpack.c.l.s4 1983009808
      %v3115 = vunpack.c.0.s8 %v3114
      %v3116 = vlaneseq
      %v3117 = vshrl.u32 %v3116, 7
      %v3118 = vsub.s32 %v3115, %v3117
      %v3119 = vrot.slane %v3111, %v3118
      %v3121 = vunpack.c.l.s4 1983009808
      %v3122 = vunpack.c.0.s8 %v3121
      %v3123 = vlaneseq
      %v3124 = vshrl.u32 %v3123, 7
      %v3125 = vsub.s32 %v3122, %v3124
      %v3126 = vrot.slane %v3112, %v3125
      %v3127 = vcombine.low %v3071, %v3087
      %v3128 = vcombine.high %v3071, %v3087
      %v3130 = vunpack.c.l.s4 1934713408
      %v3131 = vunpack.c.0.s8 %v3130
      %v3132 = vlaneseq
      %v3133 = vshrl.u32 %v3132, 7
      %v3134 = vsub.s32 %v3131, %v3133
      %v3135 = vrot.slane %v3127, %v3134
      %v3137 = vunpack.c.l.s4 1934713408
      %v3138 = vunpack.c.0.s8 %v3137
      %v3139 = vlaneseq
      %v3140 = vshrl.u32 %v3139, 7
      %v3141 = vsub.s32 %v3138, %v3140
      %v3142 = vrot.slane %v3128, %v3141
      %v3143 = vcombine.low %v3078, %v3094
      %v3144 = vcombine.high %v3078, %v3094
      %v3146 = vunpack.c.l.s4 1934713408
      %v3147 = vunpack.c.0.s8 %v3146
      %v3148 = vlaneseq
      %v3149 = vshrl.u32 %v3148, 7
      %v3150 = vsub.s32 %v3147, %v3149
      %v3151 = vrot.slane %v3143, %v3150
      %v3153 = vunpack.c.l.s4 1934713408
      %v3154 = vunpack.c.0.s8 %v3153
      %v3155 = vlaneseq
      %v3156 = vshrl.u32 %v3155, 7
      %v3157 = vsub.s32 %v3154, %v3156
      %v3158 = vrot.slane %v3144, %v3157
      %v3159 = vcombine.low %v3103, %v3119
      %v3160 = vcombine.high %v3103, %v3119
      %v3162 = vunpack.c.l.s4 1934713408
      %v3163 = vunpack.c.0.s8 %v3162
      %v3164 = vlaneseq
      %v3165 = vshrl.u32 %v3164, 7
      %v3166 = vsub.s32 %v3163, %v3165
      %v3167 = vrot.slane %v3159, %v3166
      %v3169 = vunpack.c.l.s4 1934713408
      %v3170 = vunpack.c.0.s8 %v3169
      %v3171 = vlaneseq
      %v3172 = vshrl.u32 %v3171, 7
      %v3173 = vsub.s32 %v3170, %v3172
      %v3174 = vrot.slane %v3160, %v3173
      %v3175 = vcombine.low %v3110, %v3126
      %v3176 = vcombine.high %v3110, %v3126
      %v3178 = vunpack.c.l.s4 1934713408
      %v3179 = vunpack.c.0.s8 %v3178
      %v3180 = vlaneseq
      %v3181 = vshrl.u32 %v3180, 7
      %v3182 = vsub.s32 %v3179, %v3181
      %v3183 = vrot.slane %v3175, %v3182
      %v3185 = vunpack.c.l.s4 1934713408
      %v3186 = vunpack.c.0.s8 %v3185
      %v3187 = vlaneseq
      %v3188 = vshrl.u32 %v3187, 7
      %v3189 = vsub.s32 %v3186, %v3188
      %v3190 = vrot.slane %v3176, %v3189
      %v3191 = vcombine.low %v3135, %v3167
      %v3192 = vcombine.high %v3135, %v3167
      %v3193 = vcombine.low %v3142, %v3174
      %v3194 = vcombine.high %v3142, %v3174
      %v3195 = vcombine.low %v3151, %v3183
      %v3196 = vcombine.high %v3151, %v3183
      %v3197 = vcombine.low %v3158, %v3190
      %v3198 = vcombine.high %v3158, %v3190
      %v3199 = vcombine.low %v3018, %v3026
      %v3200 = vcombine.high %v3018, %v3026
      %v3202 = vunpack.c.l.s4 1983009808
      %v3203 = vunpack.c.0.s8 %v3202
      %v3204 = vlaneseq
      %v3205 = vshrl.u32 %v3204, 7
      %v3206 = vsub.s32 %v3203, %v3205
      %v3207 = vrot.slane %v3199, %v3206
      %v3209 = vunpack.c.l.s4 1983009808
      %v3210 = vunpack.c.0.s8 %v3209
      %v3211 = vlaneseq
      %v3212 = vshrl.u32 %v3211, 7
      %v3213 = vsub.s32 %v3210, %v3212
      %v3214 = vrot.slane %v3200, %v3213
      %v3215 = vcombine.low %v3022, %v3030
      %v3216 = vcombine.high %v3022, %v3030
      %v3218 = vunpack.c.l.s4 1983009808
      %v3219 = vunpack.c.0.s8 %v3218
      %v3220 = vlaneseq
      %v3221 = vshrl.u32 %v3220, 7
      %v3222 = vsub.s32 %v3219, %v3221
      %v3223 = vrot.slane %v3215, %v3222
      %v3225 = vunpack.c.l.s4 1983009808
      %v3226 = vunpack.c.0.s8 %v3225
      %v3227 = vlaneseq
      %v3228 = vshrl.u32 %v3227, 7
      %v3229 = vsub.s32 %v3226, %v3228
      %v3230 = vrot.slane %v3216, %v3229
      %v3231 = vcombine.low %v3034, %v3042
      %v3232 = vcombine.high %v3034, %v3042
      %v3234 = vunpack.c.l.s4 1983009808
      %v3235 = vunpack.c.0.s8 %v3234
      %v3236 = vlaneseq
      %v3237 = vshrl.u32 %v3236, 7
      %v3238 = vsub.s32 %v3235, %v3237
      %v3239 = vrot.slane %v3231, %v3238
      %v3241 = vunpack.c.l.s4 1983009808
      %v3242 = vunpack.c.0.s8 %v3241
      %v3243 = vlaneseq
      %v3244 = vshrl.u32 %v3243, 7
      %v3245 = vsub.s32 %v3242, %v3244
      %v3246 = vrot.slane %v3232, %v3245
      %v3247 = vcombine.low %v3038, %v3046
      %v3248 = vcombine.high %v3038, %v3046
      %v3250 = vunpack.c.l.s4 1983009808
      %v3251 = vunpack.c.0.s8 %v3250
      %v3252 = vlaneseq
      %v3253 = vshrl.u32 %v3252, 7
      %v3254 = vsub.s32 %v3251, %v3253
      %v3255 = vrot.slane %v3247, %v3254
      %v3257 = vunpack.c.l.s4 1983009808
      %v3258 = vunpack.c.0.s8 %v3257
      %v3259 = vlaneseq
      %v3260 = vshrl.u32 %v3259, 7
      %v3261 = vsub.s32 %v3258, %v3260
      %v3262 = vrot.slane %v3248, %v3261
      %v3263 = vcombine.low %v3207, %v3223
      %v3264 = vcombine.high %v3207, %v3223
      %v3266 = vunpack.c.l.s4 1934713408
      %v3267 = vunpack.c.0.s8 %v3266
      %v3268 = vlaneseq
      %v3269 = vshrl.u32 %v3268, 7
      %v3270 = vsub.s32 %v3267, %v3269
      %v3271 = vrot.slane %v3263, %v3270
      %v3273 = vunpack.c.l.s4 1934713408
      %v3274 = vunpack.c.0.s8 %v3273
      %v3275 = vlaneseq
      %v3276 = vshrl.u32 %v3275, 7
      %v3277 = vsub.s32 %v3274, %v3276
      %v3278 = vrot.slane %v3264, %v3277
      %v3279 = vcombine.low %v3214, %v3230
      %v3280 = vcombine.high %v3214, %v3230
      %v3282 = vunpack.c.l.s4 1934713408
      %v3283 = vunpack.c.0.s8 %v3282
      %v3284 = vlaneseq
      %v3285 = vshrl.u32 %v3284, 7
      %v3286 = vsub.s32 %v3283, %v3285
      %v3287 = vrot.slane %v3279, %v3286
      %v3289 = vunpack.c.l.s4 1934713408
      %v3290 = vunpack.c.0.s8 %v3289
      %v3291 = vlaneseq
      %v3292 = vshrl.u32 %v3291, 7
      %v3293 = vsub.s32 %v3290, %v3292
      %v3294 = vrot.slane %v3280, %v3293
      %v3295 = vcombine.low %v3239, %v3255
      %v3296 = vcombine.high %v3239, %v3255
      %v3298 = vunpack.c.l.s4 1934713408
      %v3299 = vunpack.c.0.s8 %v3298
      %v3300 = vlaneseq
      %v3301 = vshrl.u32 %v3300, 7
      %v3302 = vsub.s32 %v3299, %v3301
      %v3303 = vrot.slane %v3295, %v3302
      %v3305 = vunpack.c.l.s4 1934713408
      %v3306 = vunpack.c.0.s8 %v3305
      %v3307 = vlaneseq
      %v3308 = vshrl.u32 %v3307, 7
      %v3309 = vsub.s32 %v3306, %v3308
      %v3310 = vrot.slane %v3296, %v3309
      %v3311 = vcombine.low %v3246, %v3262
      %v3312 = vcombine.high %v3246, %v3262
      %v3314 = vunpack.c.l.s4 1934713408
      %v3315 = vunpack.c.0.s8 %v3314
      %v3316 = vlaneseq
      %v3317 = vshrl.u32 %v3316, 7
      %v3318 = vsub.s32 %v3315, %v3317
      %v3319 = vrot.slane %v3311, %v3318
      %v3321 = vunpack.c.l.s4 1934713408
      %v3322 = vunpack.c.0.s8 %v3321
      %v3323 = vlaneseq
      %v3324 = vshrl.u32 %v3323, 7
      %v3325 = vsub.s32 %v3322, %v3324
      %v3326 = vrot.slane %v3312, %v3325
      %v3327 = vcombine.low %v3271, %v3303
      %v3328 = vcombine.high %v3271, %v3303
      %v3329 = vcombine.low %v3278, %v3310
      %v3330 = vcombine.high %v3278, %v3310
      %v3331 = vcombine.low %v3287, %v3319
      %v3332 = vcombine.high %v3287, %v3319
      %v3333 = vcombine.low %v3294, %v3326
      %v3334 = vcombine.high %v3294, %v3326
      %3336 = vrot.lane.b32.xlu0 %v3192, 16
      %v3337 = vpop.permute.xlu0 %3336
      %3340 = vrot.lane.b32.xlu0 %v3193, 32
      %v3341 = vpop.permute.xlu0 %3340
      %3344 = vrot.lane.b32.xlu0 %v3194, 48
      %v3345 = vpop.permute.xlu0 %3344
      %3348 = vrot.lane.b32.xlu0 %v3195, 64
      %v3349 = vpop.permute.xlu0 %3348
      %3352 = vrot.lane.b32.xlu0 %v3196, 80
      %v3353 = vpop.permute.xlu0 %3352
      %3356 = vrot.lane.b32.xlu0 %v3197, 96
      %v3357 = vpop.permute.xlu0 %3356
      %3360 = vrot.lane.b32.xlu0 %v3198, 112
      %v3361 = vpop.permute.xlu0 %3360
      %3364 = vrot.lane.b32.xlu0 %v3328, 16
      %v3365 = vpop.permute.xlu0 %3364
      %3368 = vrot.lane.b32.xlu0 %v3329, 32
      %v3369 = vpop.permute.xlu0 %3368
      %3372 = vrot.lane.b32.xlu0 %v3330, 48
      %v3373 = vpop.permute.xlu0 %3372
      %3376 = vrot.lane.b32.xlu0 %v3331, 64
      %v3377 = vpop.permute.xlu0 %3376
      %3380 = vrot.lane.b32.xlu0 %v3332, 80
      %v3381 = vpop.permute.xlu0 %3380
      %3384 = vrot.lane.b32.xlu0 %v3333, 96
      %v3385 = vpop.permute.xlu0 %3384
      %3388 = vrot.lane.b32.xlu0 %v3334, 112
      %v3389 = vpop.permute.xlu0 %3388
      %v3391 = vsel %vm598, %v3191, %v3337
      %v3392 = vsel %vm600, %v3391, %v3341
      %v3393 = vsel %vm602, %v3392, %v3345
      %v3394 = vsel %vm604, %v3393, %v3349
      %v3395 = vsel %vm606, %v3394, %v3353
      %v3396 = vsel %vm608, %v3395, %v3357
      %v3397 = vsel %vm610, %v3396, %v3361
      %v3398 = vsel %vm598, %v3327, %v3365
      %v3399 = vsel %vm600, %v3398, %v3369
      %v3400 = vsel %vm602, %v3399, %v3373
      %v3401 = vsel %vm604, %v3400, %v3377
      %v3402 = vsel %vm606, %v3401, %v3381
      %v3403 = vsel %vm608, %v3402, %v3385
      %v3404 = vsel %vm610, %v3403, %v3389
      %3405 = vst [vmem:[#allocation2 + $0x70] sm:$0xff] %v3397
      %3406 = vst [vmem:[#allocation2 + $0x78] sm:$0xff] %v3404
      %3407 = vrot.lane.b32.xlu0 %v2617, 126
      %v3408 = vpop.permute.xlu0 %3407
      %3409 = vrot.lane.b32.xlu0 %v2619, 126
      %v3410 = vpop.permute.xlu0 %3409
      %3411 = vrot.lane.b32.xlu0 %v2622, 126
      %v3412 = vpop.permute.xlu0 %3411
      %3413 = vrot.lane.b32.xlu0 %v2624, 126
      %v3414 = vpop.permute.xlu0 %3413
      %3415 = vrot.lane.b32.xlu0 %v2627, 126
      %v3416 = vpop.permute.xlu0 %3415
      %3417 = vrot.lane.b32.xlu0 %v2629, 126
      %v3418 = vpop.permute.xlu0 %3417
      %3419 = vrot.lane.b32.xlu0 %v2632, 126
      %v3420 = vpop.permute.xlu0 %3419
      %3421 = vrot.lane.b32.xlu0 %v2634, 126
      %v3422 = vpop.permute.xlu0 %3421
      %3423 = vrot.lane.b32.xlu0 %v2637, 126
      %v3424 = vpop.permute.xlu0 %3423
      %3425 = vrot.lane.b32.xlu0 %v2639, 126
      %v3426 = vpop.permute.xlu0 %3425
      %3427 = vrot.lane.b32.xlu0 %v2642, 126
      %v3428 = vpop.permute.xlu0 %3427
      %3429 = vrot.lane.b32.xlu0 %v2644, 126
      %v3430 = vpop.permute.xlu0 %3429
      %3431 = vrot.lane.b32.xlu0 %v2647, 126
      %v3432 = vpop.permute.xlu0 %3431
      %3433 = vrot.lane.b32.xlu0 %v2649, 126
      %v3434 = vpop.permute.xlu0 %3433
      %3435 = vrot.lane.b32.xlu0 %v2652, 126
      %v3436 = vpop.permute.xlu0 %3435
      %3437 = vrot.lane.b32.xlu0 %v2654, 126
      %v3438 = vpop.permute.xlu0 %3437
      %v3455 = vcombine.low %v3408, %v3416
      %v3456 = vcombine.high %v3408, %v3416
      %v3458 = vunpack.c.l.s4 1983009808
      %v3459 = vunpack.c.0.s8 %v3458
      %v3460 = vlaneseq
      %v3461 = vshrl.u32 %v3460, 7
      %v3462 = vsub.s32 %v3459, %v3461
      %v3463 = vrot.slane %v3455, %v3462
      %v3465 = vunpack.c.l.s4 1983009808
      %v3466 = vunpack.c.0.s8 %v3465
      %v3467 = vlaneseq
      %v3468 = vshrl.u32 %v3467, 7
      %v3469 = vsub.s32 %v3466, %v3468
      %v3470 = vrot.slane %v3456, %v3469
      %v3471 = vcombine.low %v3412, %v3420
      %v3472 = vcombine.high %v3412, %v3420
      %v3474 = vunpack.c.l.s4 1983009808
      %v3475 = vunpack.c.0.s8 %v3474
      %v3476 = vlaneseq
      %v3477 = vshrl.u32 %v3476, 7
      %v3478 = vsub.s32 %v3475, %v3477
      %v3479 = vrot.slane %v3471, %v3478
      %v3481 = vunpack.c.l.s4 1983009808
      %v3482 = vunpack.c.0.s8 %v3481
      %v3483 = vlaneseq
      %v3484 = vshrl.u32 %v3483, 7
      %v3485 = vsub.s32 %v3482, %v3484
      %v3486 = vrot.slane %v3472, %v3485
      %v3487 = vcombine.low %v3424, %v3432
      %v3488 = vcombine.high %v3424, %v3432
      %v3490 = vunpack.c.l.s4 1983009808
      %v3491 = vunpack.c.0.s8 %v3490
      %v3492 = vlaneseq
      %v3493 = vshrl.u32 %v3492, 7
      %v3494 = vsub.s32 %v3491, %v3493
      %v3495 = vrot.slane %v3487, %v3494
      %v3497 = vunpack.c.l.s4 1983009808
      %v3498 = vunpack.c.0.s8 %v3497
      %v3499 = vlaneseq
      %v3500 = vshrl.u32 %v3499, 7
      %v3501 = vsub.s32 %v3498, %v3500
      %v3502 = vrot.slane %v3488, %v3501
      %v3503 = vcombine.low %v3428, %v3436
      %v3504 = vcombine.high %v3428, %v3436
      %v3506 = vunpack.c.l.s4 1983009808
      %v3507 = vunpack.c.0.s8 %v3506
      %v3508 = vlaneseq
      %v3509 = vshrl.u32 %v3508, 7
      %v3510 = vsub.s32 %v3507, %v3509
      %v3511 = vrot.slane %v3503, %v3510
      %v3513 = vunpack.c.l.s4 1983009808
      %v3514 = vunpack.c.0.s8 %v3513
      %v3515 = vlaneseq
      %v3516 = vshrl.u32 %v3515, 7
      %v3517 = vsub.s32 %v3514, %v3516
      %v3518 = vrot.slane %v3504, %v3517
      %v3519 = vcombine.low %v3463, %v3479
      %v3520 = vcombine.high %v3463, %v3479
      %v3522 = vunpack.c.l.s4 1934713408
      %v3523 = vunpack.c.0.s8 %v3522
      %v3524 = vlaneseq
      %v3525 = vshrl.u32 %v3524, 7
      %v3526 = vsub.s32 %v3523, %v3525
      %v3527 = vrot.slane %v3519, %v3526
      %v3529 = vunpack.c.l.s4 1934713408
      %v3530 = vunpack.c.0.s8 %v3529
      %v3531 = vlaneseq
      %v3532 = vshrl.u32 %v3531, 7
      %v3533 = vsub.s32 %v3530, %v3532
      %v3534 = vrot.slane %v3520, %v3533
      %v3535 = vcombine.low %v3470, %v3486
      %v3536 = vcombine.high %v3470, %v3486
      %v3538 = vunpack.c.l.s4 1934713408
      %v3539 = vunpack.c.0.s8 %v3538
      %v3540 = vlaneseq
      %v3541 = vshrl.u32 %v3540, 7
      %v3542 = vsub.s32 %v3539, %v3541
      %v3543 = vrot.slane %v3535, %v3542
      %v3545 = vunpack.c.l.s4 1934713408
      %v3546 = vunpack.c.0.s8 %v3545
      %v3547 = vlaneseq
      %v3548 = vshrl.u32 %v3547, 7
      %v3549 = vsub.s32 %v3546, %v3548
      %v3550 = vrot.slane %v3536, %v3549
      %v3551 = vcombine.low %v3495, %v3511
      %v3552 = vcombine.high %v3495, %v3511
      %v3554 = vunpack.c.l.s4 1934713408
      %v3555 = vunpack.c.0.s8 %v3554
      %v3556 = vlaneseq
      %v3557 = vshrl.u32 %v3556, 7
      %v3558 = vsub.s32 %v3555, %v3557
      %v3559 = vrot.slane %v3551, %v3558
      %v3561 = vunpack.c.l.s4 1934713408
      %v3562 = vunpack.c.0.s8 %v3561
      %v3563 = vlaneseq
      %v3564 = vshrl.u32 %v3563, 7
      %v3565 = vsub.s32 %v3562, %v3564
      %v3566 = vrot.slane %v3552, %v3565
      %v3567 = vcombine.low %v3502, %v3518
      %v3568 = vcombine.high %v3502, %v3518
      %v3570 = vunpack.c.l.s4 1934713408
      %v3571 = vunpack.c.0.s8 %v3570
      %v3572 = vlaneseq
      %v3573 = vshrl.u32 %v3572, 7
      %v3574 = vsub.s32 %v3571, %v3573
      %v3575 = vrot.slane %v3567, %v3574
      %v3577 = vunpack.c.l.s4 1934713408
      %v3578 = vunpack.c.0.s8 %v3577
      %v3579 = vlaneseq
      %v3580 = vshrl.u32 %v3579, 7
      %v3581 = vsub.s32 %v3578, %v3580
      %v3582 = vrot.slane %v3568, %v3581
      %v3583 = vcombine.low %v3527, %v3559
      %v3584 = vcombine.high %v3527, %v3559
      %v3585 = vcombine.low %v3534, %v3566
      %v3586 = vcombine.high %v3534, %v3566
      %v3587 = vcombine.low %v3543, %v3575
      %v3588 = vcombine.high %v3543, %v3575
      %v3589 = vcombine.low %v3550, %v3582
      %v3590 = vcombine.high %v3550, %v3582
      %v3591 = vcombine.low %v3410, %v3418
      %v3592 = vcombine.high %v3410, %v3418
      %v3594 = vunpack.c.l.s4 1983009808
      %v3595 = vunpack.c.0.s8 %v3594
      %v3596 = vlaneseq
      %v3597 = vshrl.u32 %v3596, 7
      %v3598 = vsub.s32 %v3595, %v3597
      %v3599 = vrot.slane %v3591, %v3598
      %v3601 = vunpack.c.l.s4 1983009808
      %v3602 = vunpack.c.0.s8 %v3601
      %v3603 = vlaneseq
      %v3604 = vshrl.u32 %v3603, 7
      %v3605 = vsub.s32 %v3602, %v3604
      %v3606 = vrot.slane %v3592, %v3605
      %v3607 = vcombine.low %v3414, %v3422
      %v3608 = vcombine.high %v3414, %v3422
      %v3610 = vunpack.c.l.s4 1983009808
      %v3611 = vunpack.c.0.s8 %v3610
      %v3612 = vlaneseq
      %v3613 = vshrl.u32 %v3612, 7
      %v3614 = vsub.s32 %v3611, %v3613
      %v3615 = vrot.slane %v3607, %v3614
      %v3617 = vunpack.c.l.s4 1983009808
      %v3618 = vunpack.c.0.s8 %v3617
      %v3619 = vlaneseq
      %v3620 = vshrl.u32 %v3619, 7
      %v3621 = vsub.s32 %v3618, %v3620
      %v3622 = vrot.slane %v3608, %v3621
      %v3623 = vcombine.low %v3426, %v3434
      %v3624 = vcombine.high %v3426, %v3434
      %v3626 = vunpack.c.l.s4 1983009808
      %v3627 = vunpack.c.0.s8 %v3626
      %v3628 = vlaneseq
      %v3629 = vshrl.u32 %v3628, 7
      %v3630 = vsub.s32 %v3627, %v3629
      %v3631 = vrot.slane %v3623, %v3630
      %v3633 = vunpack.c.l.s4 1983009808
      %v3634 = vunpack.c.0.s8 %v3633
      %v3635 = vlaneseq
      %v3636 = vshrl.u32 %v3635, 7
      %v3637 = vsub.s32 %v3634, %v3636
      %v3638 = vrot.slane %v3624, %v3637
      %v3639 = vcombine.low %v3430, %v3438
      %v3640 = vcombine.high %v3430, %v3438
      %v3642 = vunpack.c.l.s4 1983009808
      %v3643 = vunpack.c.0.s8 %v3642
      %v3644 = vlaneseq
      %v3645 = vshrl.u32 %v3644, 7
      %v3646 = vsub.s32 %v3643, %v3645
      %v3647 = vrot.slane %v3639, %v3646
      %v3649 = vunpack.c.l.s4 1983009808
      %v3650 = vunpack.c.0.s8 %v3649
      %v3651 = vlaneseq
      %v3652 = vshrl.u32 %v3651, 7
      %v3653 = vsub.s32 %v3650, %v3652
      %v3654 = vrot.slane %v3640, %v3653
      %v3655 = vcombine.low %v3599, %v3615
      %v3656 = vcombine.high %v3599, %v3615
      %v3658 = vunpack.c.l.s4 1934713408
      %v3659 = vunpack.c.0.s8 %v3658
      %v3660 = vlaneseq
      %v3661 = vshrl.u32 %v3660, 7
      %v3662 = vsub.s32 %v3659, %v3661
      %v3663 = vrot.slane %v3655, %v3662
      %v3665 = vunpack.c.l.s4 1934713408
      %v3666 = vunpack.c.0.s8 %v3665
      %v3667 = vlaneseq
      %v3668 = vshrl.u32 %v3667, 7
      %v3669 = vsub.s32 %v3666, %v3668
      %v3670 = vrot.slane %v3656, %v3669
      %v3671 = vcombine.low %v3606, %v3622
      %v3672 = vcombine.high %v3606, %v3622
      %v3674 = vunpack.c.l.s4 1934713408
      %v3675 = vunpack.c.0.s8 %v3674
      %v3676 = vlaneseq
      %v3677 = vshrl.u32 %v3676, 7
      %v3678 = vsub.s32 %v3675, %v3677
      %v3679 = vrot.slane %v3671, %v3678
      %v3681 = vunpack.c.l.s4 1934713408
      %v3682 = vunpack.c.0.s8 %v3681
      %v3683 = vlaneseq
      %v3684 = vshrl.u32 %v3683, 7
      %v3685 = vsub.s32 %v3682, %v3684
      %v3686 = vrot.slane %v3672, %v3685
      %v3687 = vcombine.low %v3631, %v3647
      %v3688 = vcombine.high %v3631, %v3647
      %v3690 = vunpack.c.l.s4 1934713408
      %v3691 = vunpack.c.0.s8 %v3690
      %v3692 = vlaneseq
      %v3693 = vshrl.u32 %v3692, 7
      %v3694 = vsub.s32 %v3691, %v3693
      %v3695 = vrot.slane %v3687, %v3694
      %v3697 = vunpack.c.l.s4 1934713408
      %v3698 = vunpack.c.0.s8 %v3697
      %v3699 = vlaneseq
      %v3700 = vshrl.u32 %v3699, 7
      %v3701 = vsub.s32 %v3698, %v3700
      %v3702 = vrot.slane %v3688, %v3701
      %v3703 = vcombine.low %v3638, %v3654
      %v3704 = vcombine.high %v3638, %v3654
      %v3706 = vunpack.c.l.s4 1934713408
      %v3707 = vunpack.c.0.s8 %v3706
      %v3708 = vlaneseq
      %v3709 = vshrl.u32 %v3708, 7
      %v3710 = vsub.s32 %v3707, %v3709
      %v3711 = vrot.slane %v3703, %v3710
      %v3713 = vunpack.c.l.s4 1934713408
      %v3714 = vunpack.c.0.s8 %v3713
      %v3715 = vlaneseq
      %v3716 = vshrl.u32 %v3715, 7
      %v3717 = vsub.s32 %v3714, %v3716
      %v3718 = vrot.slane %v3704, %v3717
      %v3719 = vcombine.low %v3663, %v3695
      %v3720 = vcombine.high %v3663, %v3695
      %v3721 = vcombine.low %v3670, %v3702
      %v3722 = vcombine.high %v3670, %v3702
      %v3723 = vcombine.low %v3679, %v3711
      %v3724 = vcombine.high %v3679, %v3711
      %v3725 = vcombine.low %v3686, %v3718
      %v3726 = vcombine.high %v3686, %v3718
      %3728 = vrot.lane.b32.xlu0 %v3584, 16
      %v3729 = vpop.permute.xlu0 %3728
      %3732 = vrot.lane.b32.xlu0 %v3585, 32
      %v3733 = vpop.permute.xlu0 %3732
      %3736 = vrot.lane.b32.xlu0 %v3586, 48
      %v3737 = vpop.permute.xlu0 %3736
      %3740 = vrot.lane.b32.xlu0 %v3587, 64
      %v3741 = vpop.permute.xlu0 %3740
      %3744 = vrot.lane.b32.xlu0 %v3588, 80
      %v3745 = vpop.permute.xlu0 %3744
      %3748 = vrot.lane.b32.xlu0 %v3589, 96
      %v3749 = vpop.permute.xlu0 %3748
      %3752 = vrot.lane.b32.xlu0 %v3590, 112
      %v3753 = vpop.permute.xlu0 %3752
      %3756 = vrot.lane.b32.xlu0 %v3720, 16
      %v3757 = vpop.permute.xlu0 %3756
      %3760 = vrot.lane.b32.xlu0 %v3721, 32
      %v3761 = vpop.permute.xlu0 %3760
      %3764 = vrot.lane.b32.xlu0 %v3722, 48
      %v3765 = vpop.permute.xlu0 %3764
      %3768 = vrot.lane.b32.xlu0 %v3723, 64
      %v3769 = vpop.permute.xlu0 %3768
      %3772 = vrot.lane.b32.xlu0 %v3724, 80
      %v3773 = vpop.permute.xlu0 %3772
      %3776 = vrot.lane.b32.xlu0 %v3725, 96
      %v3777 = vpop.permute.xlu0 %3776
      %3780 = vrot.lane.b32.xlu0 %v3726, 112
      %v3781 = vpop.permute.xlu0 %3780
      %v3783 = vsel %vm598, %v3583, %v3729
      %v3784 = vsel %vm600, %v3783, %v3733
      %v3785 = vsel %vm602, %v3784, %v3737
      %v3786 = vsel %vm604, %v3785, %v3741
      %v3787 = vsel %vm606, %v3786, %v3745
      %v3788 = vsel %vm608, %v3787, %v3749
      %v3789 = vsel %vm610, %v3788, %v3753
      %v3790 = vsel %vm598, %v3719, %v3757
      %v3791 = vsel %vm600, %v3790, %v3761
      %v3792 = vsel %vm602, %v3791, %v3765
      %v3793 = vsel %vm604, %v3792, %v3769
      %v3794 = vsel %vm606, %v3793, %v3773
      %v3795 = vsel %vm608, %v3794, %v3777
      %v3796 = vsel %vm610, %v3795, %v3781
      %3797 = vst [vmem:[#allocation2 + $0x80] sm:$0xff] %v3789
      %3798 = vst [vmem:[#allocation2 + $0x88] sm:$0xff] %v3796
      %v3799 = vld [vmem:[%s1] sm:$0xff]
      %v3800 = vld [vmem:[#allocation2] sm:$0xff]
      %v3801 = vld [vmem:[#allocation2 + $0x8] sm:$0xff]
      %v3802 = vld [vmem:[#allocation2 + $0x10] sm:$0xff]
      %v3803 = vld [vmem:[#allocation2 + $0x18] sm:$0xff]
      %v3804 = vld [vmem:[#allocation2 + $0x20] sm:$0xff]
      %v3805 = vld [vmem:[#allocation2 + $0x28] sm:$0xff]
      %v3806 = vld [vmem:[#allocation2 + $0x30] sm:$0xff]
      %v3807 = vld [vmem:[#allocation2 + $0x38] sm:$0xff]
      %v3808 = vld [vmem:[#allocation2 + $0x40] sm:$0xff]
      %v3809 = vld [vmem:[#allocation2 + $0x48] sm:$0xff]
      %v3810 = vld [vmem:[#allocation2 + $0x50] sm:$0xff]
      %v3811 = vld [vmem:[#allocation2 + $0x58] sm:$0xff]
      %v3812 = vld [vmem:[#allocation2 + $0x60] sm:$0xff]
      %v3813 = vld [vmem:[#allocation2 + $0x68] sm:$0xff]
      %v3814 = vld [vmem:[#allocation2 + $0x70] sm:$0xff]
      %v3815 = vld [vmem:[#allocation2 + $0x78] sm:$0xff]
      %v3816 = vld [vmem:[#allocation2 + $0x80] sm:$0xff]
      %v3817 = vld [vmem:[#allocation2 + $0x88] sm:$0xff]
      %v3818 = vld [vmem:[%s2] sm:$0xff]
      %3820 = vset.pattern.permute.xlu0 0
      %3821 = vperm.xlu0 %3820, %v3818
      %v3822 = vpop.permute.xlu0 %3821
      %vm3824 = vcmask 588800
      %v3826 = vsel %vm3824, %v3799, 0
      %3828 = vmatprep.subr.mxu0 %v3801
      %3829 = vmatpush1.msra.mxu0 %v3800
      %3830 = vmatprep.subr.mxu0 %v3803
      %3831 = vmatpush1.msra.mxu0 %v3802
      %3832 = vmatprep.subr.mxu0 %v3805
      %3833 = vmatpush1.msra.mxu0 %v3804
      %3834 = vmatprep.subr.mxu0 %v3807
      %3835 = vmatpush1.msra.mxu0 %v3806
      %3836 = vmatprep.subr.mxu0 %v3809
      %3837 = vmatpush1.msra.mxu0 %v3808
      %3838 = vmatprep.subr.mxu0 %v3811
      %3839 = vmatpush1.msra.mxu0 %v3810
      %3840 = vmatprep.subr.mxu0 %v3813
      %3841 = vmatpush1.msra.mxu0 %v3812
      %3842 = vmatprep.subr.mxu0 %v3815
      %3843 = vmatpush1.msra.mxu0 %v3814
      %3844 = vmatprep.subr.mxu0 %v3817
      %3845 = vmatpush1.msra.mxu0 %v3816
      %3846 = vmatprep.subr.mxu0 0.0
      %3847 = vmatpush1.msra.mxu0 0.0
      %3848 = vmatprep.subr.mxu0 0.0
      %3849 = vmatpush1.msra.mxu0 0.0
      %3850 = vmatprep.subr.mxu0 0.0
      %3851 = vmatpush1.msra.mxu0 0.0
      %3852 = vmatprep.subr.mxu0 0.0
      %3853 = vmatpush1.msra.mxu0 0.0
      %3854 = vmatprep.subr.mxu0 0.0
      %3855 = vmatpush1.msra.mxu0 0.0
      %3856 = vmatprep.subr.mxu0 0.0
      %3857 = vmatpush1.msra.mxu0 0.0
      %3858 = vmatprep.subr.mxu0 0.0
      %3859 = vmatpush1.msra.mxu0 0.0
      %3860 = vmatprep.subr.mxu0 0.0
      %3861 = vmatpush1.msra.mxu0 0.0
      %3862 = vmatprep.subr.mxu0 0.0
      %3863 = vmatpush1.msra.mxu0 0.0
      %3864 = vmatprep.subr.mxu0 0.0
      %3865 = vmatpush1.msra.mxu0 0.0
      %3866 = vmatprep.subr.mxu0 0.0
      %3867 = vmatpush1.msra.mxu0 0.0
      %3868 = vmatprep.subr.mxu0 0.0
      %3869 = vmatpush1.msra.mxu0 0.0
      %3870 = vmatprep.subr.mxu0 0.0
      %3871 = vmatpush1.msra.mxu0 0.0
      %3872 = vmatprep.subr.mxu0 0.0
      %3873 = vmatpush1.msra.mxu0 0.0
      %3874 = vmatprep.subr.mxu0 0.0
      %3875 = vmatpush1.msra.mxu0 0.0
      %3876 = vmatprep.subr.mxu0 0.0
      %3877 = vmatpush1.msra.mxu0 0.0
      %3878 = vmatprep.subr.mxu0 0.0
      %3879 = vmatpush1.msra.mxu0 0.0
      %3880 = vmatprep.subr.mxu0 0.0
      %3881 = vmatpush1.msra.mxu0 0.0
      %3882 = vmatprep.subr.mxu0 0.0
      %3883 = vmatpush1.msra.mxu0 0.0
      %3884 = vmatprep.subr.mxu0 0.0
      %3885 = vmatpush1.msra.mxu0 0.0
      %3886 = vmatprep.subr.mxu0 0.0
      %3887 = vmatpush1.msra.mxu0 0.0
      %3888 = vmatprep.subr.mxu0 0.0
      %3889 = vmatpush1.msra.mxu0 0.0
      %3890 = vmatprep.subr.mxu0 0.0
      %3891 = vmatpush1.msra.mxu0 0.0
      %3892 = vmatprep.mubr.f32.mxu0 0.0
      %3893 = vmatmul.mubr.f32.gmra.mrb[0].mxu0 %v3826
      %v3894 = vpop.f32.mrb[0].mxu0
      %v3895 = vadd.f32 %v3822, %v3894
      %v3896 = vpop.f32.mrb[0].mxu0
      %v3897 = vadd.f32 %v3822, %v3896
      %3898 = vdwg.mxu0
      %3899 = vst [vmem:[%s237] sm:$0xff] %v3895
      %3900 = vst [vmem:[%s237 + $0x8] sm:$0xff] %v3897
      %v3901 = vadd.f32 %v3895, %v3897
      %3902 = vadd.xlane.f32.xlu0 %v3901
      %v3903 = vpop.xlane.xlu0 %3902
      %vm3904 = vcmask 7168
      %3905 = vst.msk [vmem:[%s241] sm:$0xff] %vm3904, %v3903
      %v3906 = vmul.f32 %v3895, %v3895
      %v3907 = vmul.f32 %v3897, %v3897
      %v3908 = vadd.f32 %v3906, %v3907
      %3909 = vadd.xlane.f32.xlu0 %v3908
      %v3910 = vpop.xlane.xlu0 %3909
      %3911 = vst.msk [vmem:[%s245] sm:$0xff] %vm3904, %v3910
      %p3912 = scmp.lt.s32.totalorder %s17, 1
      %s3913 = scalar_select %p3912, %s17, 1
      %s3914 = smul.addr %s3913, 2
      %s3915 = smul.addr %s3914, 8
      %s3916 = scalar_lea.vmem %s3, %s3915
      %p3917 = scmp.lt.s32.totalorder %s17, 1
      %s3918 = scalar_select %p3917, %s17, 1
      %s3919 = smul.addr %s3918, 8
      %s3920 = scalar_lea.vmem %s4, %s3919
      %p3921 = scmp.lt.s32.totalorder %s17, 1
      %s3922 = scalar_select %p3921, %s17, 1
      %s3923 = smul.addr %s3922, 8
      %s3924 = scalar_lea.vmem %s5, %s3923
      // Predicated region
      $region33: #{double_conv.3} parent=31 // pred_check
        %p3925 = pneg %p103
      $region34: #{double_conv.3} parent=31 // pred_check_branch
        %3927 = sbr.rel (%p3925) target = $region36
      $region35: #{double_conv.3} parent=31 // pred_region
        _
      $region36: #{double_conv.3} parent=31 // pred_fallthru
        _
      // Predicated region
      $region37: #{double_conv.3} parent=31 // pred_check
        %p3928 = pneg %p129
      $region38: #{double_conv.3} parent=31 // pred_check_branch
        %3930 = sbr.rel (%p3928) target = $region40
      $region39: #{double_conv.3} parent=31 // pred_region
        _
      $region40: #{double_conv.3} parent=31 // pred_fallthru
        _
      // Predicated region
      $region41: #{double_conv.3} parent=31 // pred_check
        %p3931 = pneg %p155
      $region42: #{double_conv.3} parent=31 // pred_check_branch
        %3933 = sbr.rel (%p3931) target = $region44
      $region43: #{double_conv.3} parent=31 // pred_region
        _
      $region44: #{double_conv.3} parent=31 // pred_fallthru
        _
    $region32: #{double_conv.3} parent=5 // pred_fallthru
      _
    %p3934 = scmp.le.s32.totalorder 2, %s12
    // Predicated region
    $region45: #{double_conv.3} parent=5 // pred_check
      %p3935 = pneg %p3934
    $region46: #{double_conv.3} parent=5 // pred_check_branch
      %3937 = sbr.rel (%p3935) target = $region48
    $region47: #{double_conv.3} parent=5 // pred_region
      %s3938 = ssub.s32 %s12, 2
      // Predicated region
      $region49: #{double_conv.3} parent=47 // pred_check
        %p3939 = pneg %p109
      $region50: #{double_conv.3} parent=47 // pred_check_branch
        %3941 = sbr.rel (%p3939) target = $region52
      $region51: #{double_conv.3} parent=47 // pred_region
        %p3942 = scmp.lt.s32.totalorder %s18, 1
        %s3943 = scalar_select %p3942, %s18, 1
        %s3944 = smul.addr %s3943, 2
        %s3945 = smul.addr %s3944, 8
        %s3946 = scalar_lea.vmem %s3, %s3945
      $region52: #{double_conv.3} parent=47 // pred_fallthru
        _
      // Predicated region
      $region53: #{double_conv.3} parent=47 // pred_check
        %p3947 = pneg %p135
      $region54: #{double_conv.3} parent=47 // pred_check_branch
        %3949 = sbr.rel (%p3947) target = $region56
      $region55: #{double_conv.3} parent=47 // pred_region
        %p3950 = scmp.lt.s32.totalorder %s18, 1
        %s3951 = scalar_select %p3950, %s18, 1
        %s3952 = smul.addr %s3951, 8
        %s3953 = scalar_lea.vmem %s4, %s3952
      $region56: #{double_conv.3} parent=47 // pred_fallthru
        _
      // Predicated region
      $region57: #{double_conv.3} parent=47 // pred_check
        %p3954 = pneg %p161
      $region58: #{double_conv.3} parent=47 // pred_check_branch
        %3956 = sbr.rel (%p3954) target = $region60
      $region59: #{double_conv.3} parent=47 // pred_region
        %p3957 = scmp.lt.s32.totalorder %s18, 1
        %s3958 = scalar_select %p3957, %s18, 1
        %s3959 = smul.addr %s3958, 8
        %s3960 = scalar_lea.vmem %s5, %s3959
      $region60: #{double_conv.3} parent=47 // pred_fallthru
        _
    $region48: #{double_conv.3} parent=5 // pred_fallthru
      _
  $region6: #{double_conv.3} parent=0 // loop_footer
    %s16 = sadd.s32 1, %s12
  $region7: #{double_conv.3} parent=0 // loop_footer_branch
    %11 = sbr.rel target = $region3
  $region8: #{double_conv.3} parent=0 // loop_exit
    _

// kernel: double_conv.2
$region0: #{double_conv.2}
  #allocation0 [shape = 'u32[]', space=smem, size = 0x4, offset = 0x4, fixed_abs, tag = 'smem constant byte address 0x4 - core index']
  #allocation1 [shape = 'u32[144,128]{1,0:T(1,128)}', space=vmem, size = 0x12000, scoped, tag = 'internal scratch']
  #allocation2 [shape = 'f32[36,256]{1,0:T(8,128)}', space=vmem, size = 0xa000, scoped, tag = 'scratch operand']
  %s0 = inlined_call_operand.vmem [shape: f32[2,4,18,18], index: 0, kind: input, shape index: {}]
  %s1 = inlined_call_operand.vmem [shape: f32[8,36], index: 1, kind: input, shape index: {}]
  %s2 = inlined_call_operand.vmem [shape: f32[8,1], index: 2, kind: input, shape index: {}]
  %s3 = inlined_call_operand.vmem [shape: f32[2,8,256], index: 3, kind: output, shape index: {0}]
  %s4 = inlined_call_operand.vmem [shape: f32[2,8,1], index: 4, kind: output, shape index: {1}]
  %s5 = inlined_call_operand.vmem [shape: f32[2,8,1], index: 5, kind: output, shape index: {2}]
  %6 = xla_tuple %s3, %s4, %s5
  %s7 = sld [smem:[#allocation0]]
  $region61: #{double_conv.2} parent=0
    _
  %s9 = ssub.s32 1, %s7
  %s10 = scalar_select 0, %s9, %s7
  loop: start=0, step=1, limit=4
  $region2: #{double_conv.2} parent=0 // loop_pre_header
    _
  $region3: #{double_conv.2} parent=0 // loop_header
    %s12 = sphi 0, %s16
    %p13 = scmp.ge.s32.totalorder %s12, 4
    %s22 = sphi 0, %s24
    %s25 = sphi 0, %s22
    %s26 = sphi 0, %s25
    %s42 = sphi 0, %s26
    %s46 = sphi 0, %s46
    %s48 = sphi 0, %s46
    %s49 = sphi 0, %s48
    %s63 = sphi 0, %s49
    %s67 = sphi 0, %s67
    %s69 = sphi 0, %s67
    %s70 = sphi 0, %s69
    %s84 = sphi 0, %s70
    %s90 = sphi 0, %s92
    %s93 = sphi 0, %s90
    %s94 = sphi 0, %s93
    %s110 = sphi 0, %s94
    %s116 = sphi 0, %s118
    %s119 = sphi 0, %s116
    %s120 = sphi 0, %s119
    %s136 = sphi 0, %s120
    %s142 = sphi 0, %s144
    %s145 = sphi 0, %s142
    %s146 = sphi 0, %s145
    %s162 = sphi 0, %s146
  $region4: #{double_conv.2} parent=0 // loop_header_branch
    %15 = sbr.rel (%p13) target = $region8
  $region5: #{double_conv.2} parent=0 // loop_body
    %s17 = ssub.s32 %s12, 1
    %s18 = ssub.s32 %s12, 2
    %s19 = sadd.s32 %s12, 1
    %s20 = ssub.s32 %s12, %s19
    %p21 = scmp.eq.s32.totalorder %s20, 0
    %s23 = sadd.s32 %s22, 1
    %s24 = scalar_select %p21, %s22, %s23
    %p27 = pneg %p21
    %p28 = scmp.eq.s32.totalorder %s12, 1
    %p29 = por %p27, %p28
    %p30 = scmp.ne.s32.totalorder %s22, %s25
    %p31 = scmp.eq.s32.totalorder %s12, 0
    %p32 = por %p30, %p31
    %p33 = scmp.ne.s32.totalorder %s22, %s25
    %p34 = scmp.eq.s32.totalorder %s17, 1
    %p35 = por %p33, %p34
    %p36 = scmp.ne.s32.totalorder %s25, %s26
    %p37 = scmp.eq.s32.totalorder %s17, 0
    %p38 = por %p36, %p37
    %p39 = scmp.ne.s32.totalorder %s25, %s26
    %p40 = scmp.eq.s32.totalorder %s18, 1
    %p41 = por %p39, %p40
    %p43 = scmp.ne.s32.totalorder %s26, %s42
    %p44 = scmp.eq.s32.totalorder %s18, 0
    %p45 = por %p43, %p44
    %s47 = sadd.s32 %s46, 1
    %p50 = scmp.eq.s32.totalorder %s12, 1
    %p51 = scmp.ne.s32.totalorder %s46, %s48
    %p52 = scmp.eq.s32.totalorder %s12, 0
    %p53 = por %p51, %p52
    %p54 = scmp.ne.s32.totalorder %s46, %s48
    %p55 = scmp.eq.s32.totalorder %s17, 1
    %p56 = por %p54, %p55
    %p57 = scmp.ne.s32.totalorder %s48, %s49
    %p58 = scmp.eq.s32.totalorder %s17, 0
    %p59 = por %p57, %p58
    %p60 = scmp.ne.s32.totalorder %s48, %s49
    %p61 = scmp.eq.s32.totalorder %s18, 1
    %p62 = por %p60, %p61
    %p64 = scmp.ne.s32.totalorder %s49, %s63
    %p65 = scmp.eq.s32.totalorder %s18, 0
    %p66 = por %p64, %p65
    %s68 = sadd.s32 %s67, 1
    %p71 = scmp.eq.s32.totalorder %s12, 1
    %p72 = scmp.ne.s32.totalorder %s67, %s69
    %p73 = scmp.eq.s32.totalorder %s12, 0
    %p74 = por %p72, %p73
    %p75 = scmp.ne.s32.totalorder %s67, %s69
    %p76 = scmp.eq.s32.totalorder %s17, 1
    %p77 = por %p75, %p76
    %p78 = scmp.ne.s32.totalorder %s69, %s70
    %p79 = scmp.eq.s32.totalorder %s17, 0
    %p80 = por %p78, %p79
    %p81 = scmp.ne.s32.totalorder %s69, %s70
    %p82 = scmp.eq.s32.totalorder %s18, 1
    %p83 = por %p81, %p82
    %p85 = scmp.ne.s32.totalorder %s70, %s84
    %p86 = scmp.eq.s32.totalorder %s18, 0
    %p87 = por %p85, %p86
    %s88 = ssub.s32 %s12, %s19
    %p89 = scmp.eq.s32.totalorder %s88, 0
    %s91 = sadd.s32 %s90, 1
    %s92 = scalar_select %p89, %s90, %s91
    %p95 = pneg %p89
    %p96 = scmp.eq.s32.totalorder %s12, 1
    %p97 = por %p95, %p96
    %p98 = scmp.ne.s32.totalorder %s90, %s93
    %p99 = scmp.eq.s32.totalorder %s12, 0
    %p100 = por %p98, %p99
    %p101 = scmp.ne.s32.totalorder %s90, %s93
    %p102 = scmp.eq.s32.totalorder %s17, 1
    %p103 = por %p101, %p102
    %p104 = scmp.ne.s32.totalorder %s93, %s94
    %p105 = scmp.eq.s32.totalorder %s17, 0
    %p106 = por %p104, %p105
    %p107 = scmp.ne.s32.totalorder %s93, %s94
    %p108 = scmp.eq.s32.totalorder %s18, 1
    %p109 = por %p107, %p108
    %p111 = scmp.ne.s32.totalorder %s94, %s110
    %p112 = scmp.eq.s32.totalorder %s18, 0
    %p113 = por %p111, %p112
    %s114 = ssub.s32 %s12, %s19
    %p115 = scmp.eq.s32.totalorder %s114, 0
    %s117 = sadd.s32 %s116, 1
    %s118 = scalar_select %p115, %s116, %s117
    %p121 = pneg %p115
    %p122 = scmp.eq.s32.totalorder %s12, 1
    %p123 = por %p121, %p122
    %p124 = scmp.ne.s32.totalorder %s116, %s119
    %p125 = scmp.eq.s32.totalorder %s12, 0
    %p126 = por %p124, %p125
    %p127 = scmp.ne.s32.totalorder %s116, %s119
    %p128 = scmp.eq.s32.totalorder %s17, 1
    %p129 = por %p127, %p128
    %p130 = scmp.ne.s32.totalorder %s119, %s120
    %p131 = scmp.eq.s32.totalorder %s17, 0
    %p132 = por %p130, %p131
    %p133 = scmp.ne.s32.totalorder %s119, %s120
    %p134 = scmp.eq.s32.totalorder %s18, 1
    %p135 = por %p133, %p134
    %p137 = scmp.ne.s32.totalorder %s120, %s136
    %p138 = scmp.eq.s32.totalorder %s18, 0
    %p139 = por %p137, %p138
    %s140 = ssub.s32 %s12, %s19
    %p141 = scmp.eq.s32.totalorder %s140, 0
    %s143 = sadd.s32 %s142, 1
    %s144 = scalar_select %p141, %s142, %s143
    %p147 = pneg %p141
    %p148 = scmp.eq.s32.totalorder %s12, 1
    %p149 = por %p147, %p148
    %p150 = scmp.ne.s32.totalorder %s142, %s145
    %p151 = scmp.eq.s32.totalorder %s12, 0
    %p152 = por %p150, %p151
    %p153 = scmp.ne.s32.totalorder %s142, %s145
    %p154 = scmp.eq.s32.totalorder %s17, 1
    %p155 = por %p153, %p154
    %p156 = scmp.ne.s32.totalorder %s145, %s146
    %p157 = scmp.eq.s32.totalorder %s17, 0
    %p158 = por %p156, %p157
    %p159 = scmp.ne.s32.totalorder %s145, %s146
    %p160 = scmp.eq.s32.totalorder %s18, 1
    %p161 = por %p159, %p160
    %p163 = scmp.ne.s32.totalorder %s146, %s162
    %p164 = scmp.eq.s32.totalorder %s18, 0
    %p165 = por %p163, %p164
    %p166 = scmp.le.s32.totalorder 1, %s12
    %p167 = scmp.lt.s32.totalorder %s12, 3
    %p168 = pnand %p166, %p167
    %p169 = pneg %p168
    // Predicated region
    $region9: #{double_conv.2} parent=5 // pred_check
      _
    $region10: #{double_conv.2} parent=5 // pred_check_branch
      %171 = sbr.rel (%p168) target = $region12
    $region11: #{double_conv.2} parent=5 // pred_region
      %s172 = ssub.s32 %s12, 1
      // Predicated region
      $region13: #{double_conv.2} parent=11 // pred_check
        %p173 = pneg %p59
      $region14: #{double_conv.2} parent=11 // pred_check_branch
        %175 = sbr.rel (%p173) target = $region16
      $region15: #{double_conv.2} parent=11 // pred_region
        _
      $region16: #{double_conv.2} parent=11 // pred_fallthru
        _
      // Predicated region
      $region17: #{double_conv.2} parent=11 // pred_check
        %p176 = pneg %p80
      $region18: #{double_conv.2} parent=11 // pred_check_branch
        %178 = sbr.rel (%p176) target = $region20
      $region19: #{double_conv.2} parent=11 // pred_region
        _
      $region20: #{double_conv.2} parent=11 // pred_fallthru
        _
    $region12: #{double_conv.2} parent=5 // pred_fallthru
      _
    %p179 = scmp.lt.s32.totalorder %s12, 2
    // Predicated region
    $region21: #{double_conv.2} parent=5 // pred_check
      %p180 = pneg %p179
    $region22: #{double_conv.2} parent=5 // pred_check_branch
      %182 = sbr.rel (%p180) target = $region24
    $region23: #{double_conv.2} parent=5 // pred_region
      // Predicated region
      $region25: #{double_conv.2} parent=23 // pred_check
        %p183 = pneg %p32
      $region26: #{double_conv.2} parent=23 // pred_check_branch
        %185 = sbr.rel (%p183) target = $region28
      $region27: #{double_conv.2} parent=23 // pred_region
        %p186 = scmp.lt.s32.totalorder %s12, 1
        %s187 = scalar_select %p186, %s12, 1
        %s188 = smul.addr %s187, 12
        %s189 = smul.addr %s188, 8
        %s190 = scalar_lea.vmem %s0, %s189
      $region28: #{double_conv.2} parent=23 // pred_fallthru
        _
    $region24: #{double_conv.2} parent=5 // pred_fallthru
      _
    %p191 = scmp.le.s32.totalorder 1, %s12
    %p192 = scmp.lt.s32.totalorder %s12, 3
    %p193 = pnand %p191, %p192
    %p194 = pneg %p193
    // Predicated region
    $region29: #{double_conv.2} parent=5 // pred_check
      _
    $region30: #{double_conv.2} parent=5 // pred_check_branch
      %196 = sbr.rel (%p193) target = $region32
    $region31: #{double_conv.2} parent=5 // pred_region
      %s197 = ssub.s32 %s12, 1
      %p198 = scmp.lt.s32.totalorder %s17, 1
      %s199 = scalar_select %p198, %s17, 1
      %s200 = smul.addr %s199, 12
      %s201 = smul.addr %s200, 8
      %s202 = scalar_lea.vmem %s0, %s201
      %p203 = pneg %p38
      %p204 = pneg %p35
      %p205 = pneg %p59
      %p206 = pneg %p56
      %p207 = pneg %p80
      %p208 = pneg %p77
      %p209 = pneg %p106
      %p210 = pneg %p103
      %p211 = scmp.lt.s32.totalorder %s17, 1
      %s212 = scalar_select %p211, %s17, 1
      %s213 = smul.addr %s212, 2
      %s214 = smul.addr %s213, 8
      %s215 = scalar_lea.vmem %s3, %s214
      %p216 = pneg %p132
      %p217 = pneg %p129
      %p218 = scmp.lt.s32.totalorder %s17, 1
      %s219 = scalar_select %p218, %s17, 1
      %s220 = smul.addr %s219, 8
      %s221 = scalar_lea.vmem %s4, %s220
      %p222 = pneg %p158
      %p223 = pneg %p155
      %p224 = scmp.lt.s32.totalorder %s17, 1
      %s225 = scalar_select %p224, %s17, 1
      %s226 = smul.addr %s225, 8
      %s227 = scalar_lea.vmem %s5, %s226
      %p228 = scmp.lt.s32.totalorder %s17, 1
      %s229 = scalar_select %p228, %s17, 1
      %s230 = smul.addr %s229, 12
      %s231 = smul.addr %s230, 8
      %s232 = scalar_lea.vmem %s0, %s231
      %p233 = scmp.lt.s32.totalorder %s17, 1
      %s234 = scalar_select %p233, %s17, 1
      %s235 = smul.addr %s234, 2
      %s236 = smul.addr %s235, 8
      %s237 = scalar_lea.vmem %s3, %s236
      %p238 = scmp.lt.s32.totalorder %s17, 1
      %s239 = scalar_select %p238, %s17, 1
      %s240 = smul.addr %s239, 8
      %s241 = scalar_lea.vmem %s4, %s240
      %p242 = scmp.lt.s32.totalorder %s17, 1
      %s243 = scalar_select %p242, %s17, 1
      %s244 = smul.addr %s243, 8
      %s245 = scalar_lea.vmem %s5, %s244
      %v246 = vld [vmem:[%s232] sm:$0xff]
      %v247 = vld [vmem:[%s232 + $0x8] sm:$0xff]
      %v248 = vld [vmem:[%s232 + $0x10] sm:$0x3]
      %v249 = vld [vmem:[%s232 + $0x18] sm:$0xff]
      %v250 = vld [vmem:[%s232 + $0x20] sm:$0xff]
      %v251 = vld [vmem:[%s232 + $0x28] sm:$0x3]
      %v252 = vld [vmem:[%s232 + $0x30] sm:$0xff]
      %v253 = vld [vmem:[%s232 + $0x38] sm:$0xff]
      %v254 = vld [vmem:[%s232 + $0x40] sm:$0x3]
      %v255 = vld [vmem:[%s232 + $0x48] sm:$0xff]
      %v256 = vld [vmem:[%s232 + $0x50] sm:$0xff]
      %v257 = vld [vmem:[%s232 + $0x58] sm:$0x3]
      %v258 = vcombine.low %v246, %v252
      %v259 = vcombine.high %v246, %v252
      %v261 = vunpack.c.l.s4 1983009808
      %v262 = vunpack.c.0.s8 %v261
      %v263 = vlaneseq
      %v264 = vshrl.u32 %v263, 7
      %v265 = vsub.s32 %v262, %v264
      %v266 = vrot.slane %v258, %v265
      %v268 = vunpack.c.l.s4 1983009808
      %v269 = vunpack.c.0.s8 %v268
      %v270 = vlaneseq
      %v271 = vshrl.u32 %v270, 7
      %v272 = vsub.s32 %v269, %v271
      %v273 = vrot.slane %v259, %v272
      %v274 = vcombine.low %v249, %v255
      %v275 = vcombine.high %v249, %v255
      %v277 = vunpack.c.l.s4 1983009808
      %v278 = vunpack.c.0.s8 %v277
      %v279 = vlaneseq
      %v280 = vshrl.u32 %v279, 7
      %v281 = vsub.s32 %v278, %v280
      %v282 = vrot.slane %v274, %v281
      %v284 = vunpack.c.l.s4 1983009808
      %v285 = vunpack.c.0.s8 %v284
      %v286 = vlaneseq
      %v287 = vshrl.u32 %v286, 7
      %v288 = vsub.s32 %v285, %v287
      %v289 = vrot.slane %v275, %v288
      %v290 = vcombine.low %v266, %v282
      %v291 = vcombine.high %v266, %v282
      %v293 = vunpack.c.l.s4 1934713408
      %v294 = vunpack.c.0.s8 %v293
      %v295 = vlaneseq
      %v296 = vshrl.u32 %v295, 7
      %v297 = vsub.s32 %v294, %v296
      %v298 = vrot.slane %v290, %v297
      %v300 = vunpack.c.l.s4 1934713408
      %v301 = vunpack.c.0.s8 %v300
      %v302 = vlaneseq
      %v303 = vshrl.u32 %v302, 7
      %v304 = vsub.s32 %v301, %v303
      %v305 = vrot.slane %v291, %v304
      %v306 = vcombine.low %v273, %v289
      %v307 = vcombine.high %v273, %v289
      %v309 = vunpack.c.l.s4 1934713408
      %v310 = vunpack.c.0.s8 %v309
      %v311 = vlaneseq
      %v312 = vshrl.u32 %v311, 7
      %v313 = vsub.s32 %v310, %v312
      %v314 = vrot.slane %v306, %v313
      %v316 = vunpack.c.l.s4 1934713408
      %v317 = vunpack.c.0.s8 %v316
      %v318 = vlaneseq
      %v319 = vshrl.u32 %v318, 7
      %v320 = vsub.s32 %v317, %v319
      %v321 = vrot.slane %v307, %v320
      %v322 = vcombine.high %v298, 0.0
      %v323 = vcombine.high %v305, 0.0
      %v324 = vcombine.high %v314, 0.0
      %v325 = vcombine.high %v321, 0.0
      %v326 = vcombine.low %v247, %v253
      %v327 = vcombine.high %v247, %v253
      %v329 = vunpack.c.l.s4 1983009808
      %v330 = vunpack.c.0.s8 %v329
      %v331 = vlaneseq
      %v332 = vshrl.u32 %v331, 7
      %v333 = vsub.s32 %v330, %v332
      %v334 = vrot.slane %v326, %v333
      %v336 = vunpack.c.l.s4 1983009808
      %v337 = vunpack.c.0.s8 %v336
      %v338 = vlaneseq
      %v339 = vshrl.u32 %v338, 7
      %v340 = vsub.s32 %v337, %v339
      %v341 = vrot.slane %v327, %v340
      %v342 = vcombine.low %v250, %v256
      %v343 = vcombine.high %v250, %v256
      %v345 = vunpack.c.l.s4 1983009808
      %v346 = vunpack.c.0.s8 %v345
      %v347 = vlaneseq
      %v348 = vshrl.u32 %v347, 7
      %v349 = vsub.s32 %v346, %v348
      %v350 = vrot.slane %v342, %v349
      %v352 = vunpack.c.l.s4 1983009808
      %v353 = vunpack.c.0.s8 %v352
      %v354 = vlaneseq
      %v355 = vshrl.u32 %v354, 7
      %v356 = vsub.s32 %v353, %v355
      %v357 = vrot.slane %v343, %v356
      %v358 = vcombine.low %v334, %v350
      %v359 = vcombine.high %v334, %v350
      %v361 = vunpack.c.l.s4 1934713408
      %v362 = vunpack.c.0.s8 %v361
      %v363 = vlaneseq
      %v364 = vshrl.u32 %v363, 7
      %v365 = vsub.s32 %v362, %v364
      %v366 = vrot.slane %v358, %v365
      %v368 = vunpack.c.l.s4 1934713408
      %v369 = vunpack.c.0.s8 %v368
      %v370 = vlaneseq
      %v371 = vshrl.u32 %v370, 7
      %v372 = vsub.s32 %v369, %v371
      %v373 = vrot.slane %v359, %v372
      %v374 = vcombine.low %v341, %v357
      %v375 = vcombine.high %v341, %v357
      %v377 = vunpack.c.l.s4 1934713408
      %v378 = vunpack.c.0.s8 %v377
      %v379 = vlaneseq
      %v380 = vshrl.u32 %v379, 7
      %v381 = vsub.s32 %v378, %v380
      %v382 = vrot.slane %v374, %v381
      %v384 = vunpack.c.l.s4 1934713408
      %v385 = vunpack.c.0.s8 %v384
      %v386 = vlaneseq
      %v387 = vshrl.u32 %v386, 7
      %v388 = vsub.s32 %v385, %v387
      %v389 = vrot.slane %v375, %v388
      %v390 = vcombine.high %v366, 0.0
      %v391 = vcombine.high %v373, 0.0
      %v392 = vcombine.high %v382, 0.0
      %v393 = vcombine.high %v389, 0.0
      %395 = vrot.lane.b32.xlu0 %v322, 16
      %v396 = vpop.permute.xlu0 %395
      %399 = vrot.lane.b32.xlu0 %v305, 32
      %v400 = vpop.permute.xlu0 %399
      %403 = vrot.lane.b32.xlu0 %v323, 48
      %v404 = vpop.permute.xlu0 %403
      %407 = vrot.lane.b32.xlu0 %v314, 64
      %v408 = vpop.permute.xlu0 %407
      %411 = vrot.lane.b32.xlu0 %v324, 80
      %v412 = vpop.permute.xlu0 %411
      %415 = vrot.lane.b32.xlu0 %v321, 96
      %v416 = vpop.permute.xlu0 %415
      %419 = vrot.lane.b32.xlu0 %v325, 112
      %v420 = vpop.permute.xlu0 %419
      %423 = vrot.lane.b32.xlu0 %v390, 16
      %v424 = vpop.permute.xlu0 %423
      %427 = vrot.lane.b32.xlu0 %v373, 32
      %v428 = vpop.permute.xlu0 %427
      %431 = vrot.lane.b32.xlu0 %v391, 48
      %v432 = vpop.permute.xlu0 %431
      %435 = vrot.lane.b32.xlu0 %v382, 64
      %v436 = vpop.permute.xlu0 %435
      %439 = vrot.lane.b32.xlu0 %v392, 80
      %v440 = vpop.permute.xlu0 %439
      %443 = vrot.lane.b32.xlu0 %v389, 96
      %v444 = vpop.permute.xlu0 %443
      %447 = vrot.lane.b32.xlu0 %v393, 112
      %v448 = vpop.permute.xlu0 %447
      %vm450 = vcmask 130048
      %v451 = vsel %vm450, %v298, %v396
      %vm452 = vcmask 261120
      %v453 = vsel %vm452, %v451, %v400
      %vm454 = vcmask 392192
      %v455 = vsel %vm454, %v453, %v404
      %vm456 = vcmask 523264
      %v457 = vsel %vm456, %v455, %v408
      %vm458 = vcmask 654336
      %v459 = vsel %vm458, %v457, %v412
      %vm460 = vcmask 785408
      %v461 = vsel %vm460, %v459, %v416
      %vm462 = vcmask 916480
      %v463 = vsel %vm462, %v461, %v420
      %v464 = vsel %vm450, %v366, %v424
      %v465 = vsel %vm452, %v464, %v428
      %v466 = vsel %vm454, %v465, %v432
      %v467 = vsel %vm456, %v466, %v436
      %v468 = vsel %vm458, %v467, %v440
      %v469 = vsel %vm460, %v468, %v444
      %v470 = vsel %vm462, %v469, %v448
      %471 = vst [vmem:[#allocation2] sm:$0xf] %v463
      %472 = vst [vmem:[#allocation2 + $0x8] sm:$0xf] %v470
      %481 = vrot.lane.b32.xlu0 %v246, 127
      %v482 = vpop.permute.xlu0 %481
      %483 = vrot.lane.b32.xlu0 %v247, 127
      %v484 = vpop.permute.xlu0 %483
      %485 = vrot.lane.b32.xlu0 %v249, 127
      %v486 = vpop.permute.xlu0 %485
      %487 = vrot.lane.b32.xlu0 %v250, 127
      %v488 = vpop.permute.xlu0 %487
      %489 = vrot.lane.b32.xlu0 %v252, 127
      %v490 = vpop.permute.xlu0 %489
      %491 = vrot.lane.b32.xlu0 %v253, 127
      %v492 = vpop.permute.xlu0 %491
      %493 = vrot.lane.b32.xlu0 %v255, 127
      %v494 = vpop.permute.xlu0 %493
      %495 = vrot.lane.b32.xlu0 %v256, 127
      %v496 = vpop.permute.xlu0 %495
      %v505 = vcombine.low %v482, %v490
      %v506 = vcombine.high %v482, %v490
      %v508 = vunpack.c.l.s4 1983009808
      %v509 = vunpack.c.0.s8 %v508
      %v510 = vlaneseq
      %v511 = vshrl.u32 %v510, 7
      %v512 = vsub.s32 %v509, %v511
      %v513 = vrot.slane %v505, %v512
      %v515 = vunpack.c.l.s4 1983009808
      %v516 = vunpack.c.0.s8 %v515
      %v517 = vlaneseq
      %v518 = vshrl.u32 %v517, 7
      %v519 = vsub.s32 %v516, %v518
      %v520 = vrot.slane %v506, %v519
      %v521 = vcombine.low %v486, %v494
      %v522 = vcombine.high %v486, %v494
      %v524 = vunpack.c.l.s4 1983009808
      %v525 = vunpack.c.0.s8 %v524
      %v526 = vlaneseq
      %v527 = vshrl.u32 %v526, 7
      %v528 = vsub.s32 %v525, %v527
      %v529 = vrot.slane %v521, %v528
      %v531 = vunpack.c.l.s4 1983009808
      %v532 = vunpack.c.0.s8 %v531
      %v533 = vlaneseq
      %v534 = vshrl.u32 %v533, 7
      %v535 = vsub.s32 %v532, %v534
      %v536 = vrot.slane %v522, %v535
      %v537 = vcombine.low %v513, %v529
      %v538 = vcombine.high %v513, %v529
      %v540 = vunpack.c.l.s4 1934713408
      %v541 = vunpack.c.0.s8 %v540
      %v542 = vlaneseq
      %v543 = vshrl.u32 %v542, 7
      %v544 = vsub.s32 %v541, %v543
      %v545 = vrot.slane %v537, %v544
      %v547 = vunpack.c.l.s4 1934713408
      %v548 = vunpack.c.0.s8 %v547
      %v549 = vlaneseq
      %v550 = vshrl.u32 %v549, 7
      %v551 = vsub.s32 %v548, %v550
      %v552 = vrot.slane %v538, %v551
      %v553 = vcombine.low %v520, %v536
      %v554 = vcombine.high %v520, %v536
      %v556 = vunpack.c.l.s4 1934713408
      %v557 = vunpack.c.0.s8 %v556
      %v558 = vlaneseq
      %v559 = vshrl.u32 %v558, 7
      %v560 = vsub.s32 %v557, %v559
      %v561 = vrot.slane %v553, %v560
      %v563 = vunpack.c.l.s4 1934713408
      %v564 = vunpack.c.0.s8 %v563
      %v565 = vlaneseq
      %v566 = vshrl.u32 %v565, 7
      %v567 = vsub.s32 %v564, %v566
      %v568 = vrot.slane %v554, %v567
      %v569 = vcombine.high %v545, 0.0
      %v570 = vcombine.high %v552, 0.0
      %v571 = vcombine.high %v561, 0.0
      %v572 = vcombine.high %v568, 0.0
      %v573 = vcombine.low %v484, %v492
      %v574 = vcombine.high %v484, %v492
      %v576 = vunpack.c.l.s4 1983009808
      %v577 = vunpack.c.0.s8 %v576
      %v578 = vlaneseq
      %v579 = vshrl.u32 %v578, 7
      %v580 = vsub.s32 %v577, %v579
      %v581 = vrot.slane %v573, %v580
      %v583 = vunpack.c.l.s4 1983009808
      %v584 = vunpack.c.0.s8 %v583
      %v585 = vlaneseq
      %v586 = vshrl.u32 %v585, 7
      %v587 = vsub.s32 %v584, %v586
      %v588 = vrot.slane %v574, %v587
      %v589 = vcombine.low %v488, %v496
      %v590 = vcombine.high %v488, %v496
      %v592 = vunpack.c.l.s4 1983009808
      %v593 = vunpack.c.0.s8 %v592
      %v594 = vlaneseq
      %v595 = vshrl.u32 %v594, 7
      %v596 = vsub.s32 %v593, %v595
      %v597 = vrot.slane %v589, %v596
      %v599 = vunpack.c.l.s4 1983009808
      %v600 = vunpack.c.0.s8 %v599
      %v601 = vlaneseq
      %v602 = vshrl.u32 %v601, 7
      %v603 = vsub.s32 %v600, %v602
      %v604 = vrot.slane %v590, %v603
      %v605 = vcombine.low %v581, %v597
      %v606 = vcombine.high %v581, %v597
      %v608 = vunpack.c.l.s4 1934713408
      %v609 = vunpack.c.0.s8 %v608
      %v610 = vlaneseq
      %v611 = vshrl.u32 %v610, 7
      %v612 = vsub.s32 %v609, %v611
      %v613 = vrot.slane %v605, %v612
      %v615 = vunpack.c.l.s4 1934713408
      %v616 = vunpack.c.0.s8 %v615
      %v617 = vlaneseq
      %v618 = vshrl.u32 %v617, 7
      %v619 = vsub.s32 %v616, %v618
      %v620 = vrot.slane %v606, %v619
      %v621 = vcombine.low %v588, %v604
      %v622 = vcombine.high %v588, %v604
      %v624 = vunpack.c.l.s4 1934713408
      %v625 = vunpack.c.0.s8 %v624
      %v626 = vlaneseq
      %v627 = vshrl.u32 %v626, 7
      %v628 = vsub.s32 %v625, %v627
      %v629 = vrot.slane %v621, %v628
      %v631 = vunpack.c.l.s4 1934713408
      %v632 = vunpack.c.0.s8 %v631
      %v633 = vlaneseq
      %v634 = vshrl.u32 %v633, 7
      %v635 = vsub.s32 %v632, %v634
      %v636 = vrot.slane %v622, %v635
      %v637 = vcombine.high %v613, 0.0
      %v638 = vcombine.high %v620, 0.0
      %v639 = vcombine.high %v629, 0.0
      %v640 = vcombine.high %v636, 0.0
      %642 = vrot.lane.b32.xlu0 %v569, 16
      %v643 = vpop.permute.xlu0 %642
      %646 = vrot.lane.b32.xlu0 %v552, 32
      %v647 = vpop.permute.xlu0 %646
      %650 = vrot.lane.b32.xlu0 %v570, 48
      %v651 = vpop.permute.xlu0 %650
      %654 = vrot.lane.b32.xlu0 %v561, 64
      %v655 = vpop.permute.xlu0 %654
      %658 = vrot.lane.b32.xlu0 %v571, 80
      %v659 = vpop.permute.xlu0 %658
      %662 = vrot.lane.b32.xlu0 %v568, 96
      %v663 = vpop.permute.xlu0 %662
      %666 = vrot.lane.b32.xlu0 %v572, 112
      %v667 = vpop.permute.xlu0 %666
      %670 = vrot.lane.b32.xlu0 %v637, 16
      %v671 = vpop.permute.xlu0 %670
      %674 = vrot.lane.b32.xlu0 %v620, 32
      %v675 = vpop.permute.xlu0 %674
      %678 = vrot.lane.b32.xlu0 %v638, 48
      %v679 = vpop.permute.xlu0 %678
      %682 = vrot.lane.b32.xlu0 %v629, 64
      %v683 = vpop.permute.xlu0 %682
      %686 = vrot.lane.b32.xlu0 %v639, 80
      %v687 = vpop.permute.xlu0 %686
      %690 = vrot.lane.b32.xlu0 %v636, 96
      %v691 = vpop.permute.xlu0 %690
      %694 = vrot.lane.b32.xlu0 %v640, 112
      %v695 = vpop.permute.xlu0 %694
      %v697 = vsel %vm450, %v545, %v643
      %v698 = vsel %vm452, %v697, %v647
      %v699 = vsel %vm454, %v698, %v651
      %v700 = vsel %vm456, %v699, %v655
      %v701 = vsel %vm458, %v700, %v659
      %v702 = vsel %vm460, %v701, %v663
      %v703 = vsel %vm462, %v702, %v667
      %v704 = vsel %vm450, %v613, %v671
      %v705 = vsel %vm452, %v704, %v675
      %v706 = vsel %vm454, %v705, %v679
      %v707 = vsel %vm456, %v706, %v683
      %v708 = vsel %vm458, %v707, %v687
      %v709 = vsel %vm460, %v708, %v691
      %v710 = vsel %vm462, %v709, %v695
      %v713 = vrot.slane %v703, 4
      %v714 = vrot.slane %v710, 4
      %717 = vst [vmem:[#allocation2] sm:$0xf0] %v713
      %718 = vst [vmem:[#allocation2 + $0x8] sm:$0xf0] %v714
      %719 = vrot.lane.b32.xlu0 %v246, 126
      %v720 = vpop.permute.xlu0 %719
      %721 = vrot.lane.b32.xlu0 %v247, 126
      %v722 = vpop.permute.xlu0 %721
      %723 = vrot.lane.b32.xlu0 %v249, 126
      %v724 = vpop.permute.xlu0 %723
      %725 = vrot.lane.b32.xlu0 %v250, 126
      %v726 = vpop.permute.xlu0 %725
      %727 = vrot.lane.b32.xlu0 %v252, 126
      %v728 = vpop.permute.xlu0 %727
      %729 = vrot.lane.b32.xlu0 %v253, 126
      %v730 = vpop.permute.xlu0 %729
      %731 = vrot.lane.b32.xlu0 %v255, 126
      %v732 = vpop.permute.xlu0 %731
      %733 = vrot.lane.b32.xlu0 %v256, 126
      %v734 = vpop.permute.xlu0 %733
      %v743 = vcombine.low %v720, %v728
      %v744 = vcombine.high %v720, %v728
      %v746 = vunpack.c.l.s4 1983009808
      %v747 = vunpack.c.0.s8 %v746
      %v748 = vlaneseq
      %v749 = vshrl.u32 %v748, 7
      %v750 = vsub.s32 %v747, %v749
      %v751 = vrot.slane %v743, %v750
      %v753 = vunpack.c.l.s4 1983009808
      %v754 = vunpack.c.0.s8 %v753
      %v755 = vlaneseq
      %v756 = vshrl.u32 %v755, 7
      %v757 = vsub.s32 %v754, %v756
      %v758 = vrot.slane %v744, %v757
      %v759 = vcombine.low %v724, %v732
      %v760 = vcombine.high %v724, %v732
      %v762 = vunpack.c.l.s4 1983009808
      %v763 = vunpack.c.0.s8 %v762
      %v764 = vlaneseq
      %v765 = vshrl.u32 %v764, 7
      %v766 = vsub.s32 %v763, %v765
      %v767 = vrot.slane %v759, %v766
      %v769 = vunpack.c.l.s4 1983009808
      %v770 = vunpack.c.0.s8 %v769
      %v771 = vlaneseq
      %v772 = vshrl.u32 %v771, 7
      %v773 = vsub.s32 %v770, %v772
      %v774 = vrot.slane %v760, %v773
      %v775 = vcombine.low %v751, %v767
      %v776 = vcombine.high %v751, %v767
      %v778 = vunpack.c.l.s4 1934713408
      %v779 = vunpack.c.0.s8 %v778
      %v780 = vlaneseq
      %v781 = vshrl.u32 %v780, 7
      %v782 = vsub.s32 %v779, %v781
      %v783 = vrot.slane %v775, %v782
      %v785 = vunpack.c.l.s4 1934713408
      %v786 = vunpack.c.0.s8 %v785
      %v787 = vlaneseq
      %v788 = vshrl.u32 %v787, 7
      %v789 = vsub.s32 %v786, %v788
      %v790 = vrot.slane %v776, %v789
      %v791 = vcombine.low %v758, %v774
      %v792 = vcombine.high %v758, %v774
      %v794 = vunpack.c.l.s4 1934713408
      %v795 = vunpack.c.0.s8 %v794
      %v796 = vlaneseq
      %v797 = vshrl.u32 %v796, 7
      %v798 = vsub.s32 %v795, %v797
      %v799 = vrot.slane %v791, %v798
      %v801 = vunpack.c.l.s4 1934713408
      %v802 = vunpack.c.0.s8 %v801
      %v803 = vlaneseq
      %v804 = vshrl.u32 %v803, 7
      %v805 = vsub.s32 %v802, %v804
      %v806 = vrot.slane %v792, %v805
      %v807 = vcombine.high %v783, 0.0
      %v808 = vcombine.high %v790, 0.0
      %v809 = vcombine.high %v799, 0.0
      %v810 = vcombine.high %v806, 0.0
      %v811 = vcombine.low %v722, %v730
      %v812 = vcombine.high %v722, %v730
      %v814 = vunpack.c.l.s4 1983009808
      %v815 = vunpack.c.0.s8 %v814
      %v816 = vlaneseq
      %v817 = vshrl.u32 %v816, 7
      %v818 = vsub.s32 %v815, %v817
      %v819 = vrot.slane %v811, %v818
      %v821 = vunpack.c.l.s4 1983009808
      %v822 = vunpack.c.0.s8 %v821
      %v823 = vlaneseq
      %v824 = vshrl.u32 %v823, 7
      %v825 = vsub.s32 %v822, %v824
      %v826 = vrot.slane %v812, %v825
      %v827 = vcombine.low %v726, %v734
      %v828 = vcombine.high %v726, %v734
      %v830 = vunpack.c.l.s4 1983009808
      %v831 = vunpack.c.0.s8 %v830
      %v832 = vlaneseq
      %v833 = vshrl.u32 %v832, 7
      %v834 = vsub.s32 %v831, %v833
      %v835 = vrot.slane %v827, %v834
      %v837 = vunpack.c.l.s4 1983009808
      %v838 = vunpack.c.0.s8 %v837
      %v839 = vlaneseq
      %v840 = vshrl.u32 %v839, 7
      %v841 = vsub.s32 %v838, %v840
      %v842 = vrot.slane %v828, %v841
      %v843 = vcombine.low %v819, %v835
      %v844 = vcombine.high %v819, %v835
      %v846 = vunpack.c.l.s4 1934713408
      %v847 = vunpack.c.0.s8 %v846
      %v848 = vlaneseq
      %v849 = vshrl.u32 %v848, 7
      %v850 = vsub.s32 %v847, %v849
      %v851 = vrot.slane %v843, %v850
      %v853 = vunpack.c.l.s4 1934713408
      %v854 = vunpack.c.0.s8 %v853
      %v855 = vlaneseq
      %v856 = vshrl.u32 %v855, 7
      %v857 = vsub.s32 %v854, %v856
      %v858 = vrot.slane %v844, %v857
      %v859 = vcombine.low %v826, %v842
      %v860 = vcombine.high %v826, %v842
      %v862 = vunpack.c.l.s4 1934713408
      %v863 = vunpack.c.0.s8 %v862
      %v864 = vlaneseq
      %v865 = vshrl.u32 %v864, 7
      %v866 = vsub.s32 %v863, %v865
      %v867 = vrot.slane %v859, %v866
      %v869 = vunpack.c.l.s4 1934713408
      %v870 = vunpack.c.0.s8 %v869
      %v871 = vlaneseq
      %v872 = vshrl.u32 %v871, 7
      %v873 = vsub.s32 %v870, %v872
      %v874 = vrot.slane %v860, %v873
      %v875 = vcombine.high %v851, 0.0
      %v876 = vcombine.high %v858, 0.0
      %v877 = vcombine.high %v867, 0.0
      %v878 = vcombine.high %v874, 0.0
      %880 = vrot.lane.b32.xlu0 %v807, 16
      %v881 = vpop.permute.xlu0 %880
      %884 = vrot.lane.b32.xlu0 %v790, 32
      %v885 = vpop.permute.xlu0 %884
      %888 = vrot.lane.b32.xlu0 %v808, 48
      %v889 = vpop.permute.xlu0 %888
      %892 = vrot.lane.b32.xlu0 %v799, 64
      %v893 = vpop.permute.xlu0 %892
      %896 = vrot.lane.b32.xlu0 %v809, 80
      %v897 = vpop.permute.xlu0 %896
      %900 = vrot.lane.b32.xlu0 %v806, 96
      %v901 = vpop.permute.xlu0 %900
      %904 = vrot.lane.b32.xlu0 %v810, 112
      %v905 = vpop.permute.xlu0 %904
      %908 = vrot.lane.b32.xlu0 %v875, 16
      %v909 = vpop.permute.xlu0 %908
      %912 = vrot.lane.b32.xlu0 %v858, 32
      %v913 = vpop.permute.xlu0 %912
      %916 = vrot.lane.b32.xlu0 %v876, 48
      %v917 = vpop.permute.xlu0 %916
      %920 = vrot.lane.b32.xlu0 %v867, 64
      %v921 = vpop.permute.xlu0 %920
      %924 = vrot.lane.b32.xlu0 %v877, 80
      %v925 = vpop.permute.xlu0 %924
      %928 = vrot.lane.b32.xlu0 %v874, 96
      %v929 = vpop.permute.xlu0 %928
      %932 = vrot.lane.b32.xlu0 %v878, 112
      %v933 = vpop.permute.xlu0 %932
      %v935 = vsel %vm450, %v783, %v881
      %v936 = vsel %vm452, %v935, %v885
      %v937 = vsel %vm454, %v936, %v889
      %v938 = vsel %vm456, %v937, %v893
      %v939 = vsel %vm458, %v938, %v897
      %v940 = vsel %vm460, %v939, %v901
      %v941 = vsel %vm462, %v940, %v905
      %v942 = vsel %vm450, %v851, %v909
      %v943 = vsel %vm452, %v942, %v913
      %v944 = vsel %vm454, %v943, %v917
      %v945 = vsel %vm456, %v944, %v921
      %v946 = vsel %vm458, %v945, %v925
      %v947 = vsel %vm460, %v946, %v929
      %v948 = vsel %vm462, %v947, %v933
      %949 = vst [vmem:[#allocation2 + $0x10] sm:$0xf] %v941
      %950 = vst [vmem:[#allocation2 + $0x18] sm:$0xf] %v948
      %vm955 = vcmask 1046528
      %v956 = vrot.slane %v246, 1
      %v957 = vrot.slane %v247, 1
      %v958 = vsel %vm955, %v956, %v957
      %v959 = vrot.slane %v248, 1
      %v960 = vsel %vm955, %v957, %v959
      %v961 = vrot.slane %v249, 1
      %v962 = vrot.slane %v250, 1
      %v963 = vsel %vm955, %v961, %v962
      %v964 = vrot.slane %v251, 1
      %v965 = vsel %vm955, %v962, %v964
      %v966 = vrot.slane %v252, 1
      %v967 = vrot.slane %v253, 1
      %v968 = vsel %vm955, %v966, %v967
      %v969 = vrot.slane %v254, 1
      %v970 = vsel %vm955, %v967, %v969
      %v971 = vrot.slane %v255, 1
      %v972 = vrot.slane %v256, 1
      %v973 = vsel %vm955, %v971, %v972
      %v974 = vrot.slane %v257, 1
      %v975 = vsel %vm955, %v972, %v974
      %v984 = vcombine.low %v958, %v968
      %v985 = vcombine.high %v958, %v968
      %v987 = vunpack.c.l.s4 1983009808
      %v988 = vunpack.c.0.s8 %v987
      %v989 = vlaneseq
      %v990 = vshrl.u32 %v989, 7
      %v991 = vsub.s32 %v988, %v990
      %v992 = vrot.slane %v984, %v991
      %v994 = vunpack.c.l.s4 1983009808
      %v995 = vunpack.c.0.s8 %v994
      %v996 = vlaneseq
      %v997 = vshrl.u32 %v996, 7
      %v998 = vsub.s32 %v995, %v997
      %v999 = vrot.slane %v985, %v998
      %v1000 = vcombine.low %v963, %v973
      %v1001 = vcombine.high %v963, %v973
      %v1003 = vunpack.c.l.s4 1983009808
      %v1004 = vunpack.c.0.s8 %v1003
      %v1005 = vlaneseq
      %v1006 = vshrl.u32 %v1005, 7
      %v1007 = vsub.s32 %v1004, %v1006
      %v1008 = vrot.slane %v1000, %v1007
      %v1010 = vunpack.c.l.s4 1983009808
      %v1011 = vunpack.c.0.s8 %v1010
      %v1012 = vlaneseq
      %v1013 = vshrl.u32 %v1012, 7
      %v1014 = vsub.s32 %v1011, %v1013
      %v1015 = vrot.slane %v1001, %v1014
      %v1016 = vcombine.low %v992, %v1008
      %v1017 = vcombine.high %v992, %v1008
      %v1019 = vunpack.c.l.s4 1934713408
      %v1020 = vunpack.c.0.s8 %v1019
      %v1021 = vlaneseq
      %v1022 = vshrl.u32 %v1021, 7
      %v1023 = vsub.s32 %v1020, %v1022
      %v1024 = vrot.slane %v1016, %v1023
      %v1026 = vunpack.c.l.s4 1934713408
      %v1027 = vunpack.c.0.s8 %v1026
      %v1028 = vlaneseq
      %v1029 = vshrl.u32 %v1028, 7
      %v1030 = vsub.s32 %v1027, %v1029
      %v1031 = vrot.slane %v1017, %v1030
      %v1032 = vcombine.low %v999, %v1015
      %v1033 = vcombine.high %v999, %v1015
      %v1035 = vunpack.c.l.s4 1934713408
      %v1036 = vunpack.c.0.s8 %v1035
      %v1037 = vlaneseq
      %v1038 = vshrl.u32 %v1037, 7
      %v1039 = vsub.s32 %v1036, %v1038
      %v1040 = vrot.slane %v1032, %v1039
      %v1042 = vunpack.c.l.s4 1934713408
      %v1043 = vunpack.c.0.s8 %v1042
      %v1044 = vlaneseq
      %v1045 = vshrl.u32 %v1044, 7
      %v1046 = vsub.s32 %v1043, %v1045
      %v1047 = vrot.slane %v1033, %v1046
      %v1048 = vcombine.high %v1024, 0.0
      %v1049 = vcombine.high %v1031, 0.0
      %v1050 = vcombine.high %v1040, 0.0
      %v1051 = vcombine.high %v1047, 0.0
      %v1052 = vcombine.low %v960, %v970
      %v1053 = vcombine.high %v960, %v970
      %v1055 = vunpack.c.l.s4 1983009808
      %v1056 = vunpack.c.0.s8 %v1055
      %v1057 = vlaneseq
      %v1058 = vshrl.u32 %v1057, 7
      %v1059 = vsub.s32 %v1056, %v1058
      %v1060 = vrot.slane %v1052, %v1059
      %v1062 = vunpack.c.l.s4 1983009808
      %v1063 = vunpack.c.0.s8 %v1062
      %v1064 = vlaneseq
      %v1065 = vshrl.u32 %v1064, 7
      %v1066 = vsub.s32 %v1063, %v1065
      %v1067 = vrot.slane %v1053, %v1066
      %v1068 = vcombine.low %v965, %v975
      %v1069 = vcombine.high %v965, %v975
      %v1071 = vunpack.c.l.s4 1983009808
      %v1072 = vunpack.c.0.s8 %v1071
      %v1073 = vlaneseq
      %v1074 = vshrl.u32 %v1073, 7
      %v1075 = vsub.s32 %v1072, %v1074
      %v1076 = vrot.slane %v1068, %v1075
      %v1078 = vunpack.c.l.s4 1983009808
      %v1079 = vunpack.c.0.s8 %v1078
      %v1080 = vlaneseq
      %v1081 = vshrl.u32 %v1080, 7
      %v1082 = vsub.s32 %v1079, %v1081
      %v1083 = vrot.slane %v1069, %v1082
      %v1084 = vcombine.low %v1060, %v1076
      %v1085 = vcombine.high %v1060, %v1076
      %v1087 = vunpack.c.l.s4 1934713408
      %v1088 = vunpack.c.0.s8 %v1087
      %v1089 = vlaneseq
      %v1090 = vshrl.u32 %v1089, 7
      %v1091 = vsub.s32 %v1088, %v1090
      %v1092 = vrot.slane %v1084, %v1091
      %v1094 = vunpack.c.l.s4 1934713408
      %v1095 = vunpack.c.0.s8 %v1094
      %v1096 = vlaneseq
      %v1097 = vshrl.u32 %v1096, 7
      %v1098 = vsub.s32 %v1095, %v1097
      %v1099 = vrot.slane %v1085, %v1098
      %v1100 = vcombine.low %v1067, %v1083
      %v1101 = vcombine.high %v1067, %v1083
      %v1103 = vunpack.c.l.s4 1934713408
      %v1104 = vunpack.c.0.s8 %v1103
      %v1105 = vlaneseq
      %v1106 = vshrl.u32 %v1105, 7
      %v1107 = vsub.s32 %v1104, %v1106
      %v1108 = vrot.slane %v1100, %v1107
      %v1110 = vunpack.c.l.s4 1934713408
      %v1111 = vunpack.c.0.s8 %v1110
      %v1112 = vlaneseq
      %v1113 = vshrl.u32 %v1112, 7
      %v1114 = vsub.s32 %v1111, %v1113
      %v1115 = vrot.slane %v1101, %v1114
      %v1116 = vcombine.high %v1092, 0.0
      %v1117 = vcombine.high %v1099, 0.0
      %v1118 = vcombine.high %v1108, 0.0
      %v1119 = vcombine.high %v1115, 0.0
      %1121 = vrot.lane.b32.xlu0 %v1048, 16
      %v1122 = vpop.permute.xlu0 %1121
      %1125 = vrot.lane.b32.xlu0 %v1031, 32
      %v1126 = vpop.permute.xlu0 %1125
      %1129 = vrot.lane.b32.xlu0 %v1049, 48
      %v1130 = vpop.permute.xlu0 %1129
      %1133 = vrot.lane.b32.xlu0 %v1040, 64
      %v1134 = vpop.permute.xlu0 %1133
      %1137 = vrot.lane.b32.xlu0 %v1050, 80
      %v1138 = vpop.permute.xlu0 %1137
      %1141 = vrot.lane.b32.xlu0 %v1047, 96
      %v1142 = vpop.permute.xlu0 %1141
      %1145 = vrot.lane.b32.xlu0 %v1051, 112
      %v1146 = vpop.permute.xlu0 %1145
      %1149 = vrot.lane.b32.xlu0 %v1116, 16
      %v1150 = vpop.permute.xlu0 %1149
      %1153 = vrot.lane.b32.xlu0 %v1099, 32
      %v1154 = vpop.permute.xlu0 %1153
      %1157 = vrot.lane.b32.xlu0 %v1117, 48
      %v1158 = vpop.permute.xlu0 %1157
      %1161 = vrot.lane.b32.xlu0 %v1108, 64
      %v1162 = vpop.permute.xlu0 %1161
      %1165 = vrot.lane.b32.xlu0 %v1118, 80
      %v1166 = vpop.permute.xlu0 %1165
      %1169 = vrot.lane.b32.xlu0 %v1115, 96
      %v1170 = vpop.permute.xlu0 %1169
      %1173 = vrot.lane.b32.xlu0 %v1119, 112
      %v1174 = vpop.permute.xlu0 %1173
      %v1176 = vsel %vm450, %v1024, %v1122
      %v1177 = vsel %vm452, %v1176, %v1126
      %v1178 = vsel %vm454, %v1177, %v1130
      %v1179 = vsel %vm456, %v1178, %v1134
      %v1180 = vsel %vm458, %v1179, %v1138
      %v1181 = vsel %vm460, %v1180, %v1142
      %v1182 = vsel %vm462, %v1181, %v1146
      %v1183 = vsel %vm450, %v1092, %v1150
      %v1184 = vsel %vm452, %v1183, %v1154
      %v1185 = vsel %vm454, %v1184, %v1158
      %v1186 = vsel %vm456, %v1185, %v1162
      %v1187 = vsel %vm458, %v1186, %v1166
      %v1188 = vsel %vm460, %v1187, %v1170
      %v1189 = vsel %vm462, %v1188, %v1174
      %v1192 = vrot.slane %v1182, 4
      %v1193 = vrot.slane %v1189, 4
      %1196 = vst [vmem:[#allocation2 + $0x10] sm:$0xf0] %v1192
      %1197 = vst [vmem:[#allocation2 + $0x18] sm:$0xf0] %v1193
      %1198 = vrot.lane.b32.xlu0 %v958, 127
      %v1199 = vpop.permute.xlu0 %1198
      %1200 = vrot.lane.b32.xlu0 %v960, 127
      %v1201 = vpop.permute.xlu0 %1200
      %1202 = vrot.lane.b32.xlu0 %v963, 127
      %v1203 = vpop.permute.xlu0 %1202
      %1204 = vrot.lane.b32.xlu0 %v965, 127
      %v1205 = vpop.permute.xlu0 %1204
      %1206 = vrot.lane.b32.xlu0 %v968, 127
      %v1207 = vpop.permute.xlu0 %1206
      %1208 = vrot.lane.b32.xlu0 %v970, 127
      %v1209 = vpop.permute.xlu0 %1208
      %1210 = vrot.lane.b32.xlu0 %v973, 127
      %v1211 = vpop.permute.xlu0 %1210
      %1212 = vrot.lane.b32.xlu0 %v975, 127
      %v1213 = vpop.permute.xlu0 %1212
      %v1222 = vcombine.low %v1199, %v1207
      %v1223 = vcombine.high %v1199, %v1207
      %v1225 = vunpack.c.l.s4 1983009808
      %v1226 = vunpack.c.0.s8 %v1225
      %v1227 = vlaneseq
      %v1228 = vshrl.u32 %v1227, 7
      %v1229 = vsub.s32 %v1226, %v1228
      %v1230 = vrot.slane %v1222, %v1229
      %v1232 = vunpack.c.l.s4 1983009808
      %v1233 = vunpack.c.0.s8 %v1232
      %v1234 = vlaneseq
      %v1235 = vshrl.u32 %v1234, 7
      %v1236 = vsub.s32 %v1233, %v1235
      %v1237 = vrot.slane %v1223, %v1236
      %v1238 = vcombine.low %v1203, %v1211
      %v1239 = vcombine.high %v1203, %v1211
      %v1241 = vunpack.c.l.s4 1983009808
      %v1242 = vunpack.c.0.s8 %v1241
      %v1243 = vlaneseq
      %v1244 = vshrl.u32 %v1243, 7
      %v1245 = vsub.s32 %v1242, %v1244
      %v1246 = vrot.slane %v1238, %v1245
      %v1248 = vunpack.c.l.s4 1983009808
      %v1249 = vunpack.c.0.s8 %v1248
      %v1250 = vlaneseq
      %v1251 = vshrl.u32 %v1250, 7
      %v1252 = vsub.s32 %v1249, %v1251
      %v1253 = vrot.slane %v1239, %v1252
      %v1254 = vcombine.low %v1230, %v1246
      %v1255 = vcombine.high %v1230, %v1246
      %v1257 = vunpack.c.l.s4 1934713408
      %v1258 = vunpack.c.0.s8 %v1257
      %v1259 = vlaneseq
      %v1260 = vshrl.u32 %v1259, 7
      %v1261 = vsub.s32 %v1258, %v1260
      %v1262 = vrot.slane %v1254, %v1261
      %v1264 = vunpack.c.l.s4 1934713408
      %v1265 = vunpack.c.0.s8 %v1264
      %v1266 = vlaneseq
      %v1267 = vshrl.u32 %v1266, 7
      %v1268 = vsub.s32 %v1265, %v1267
      %v1269 = vrot.slane %v1255, %v1268
      %v1270 = vcombine.low %v1237, %v1253
      %v1271 = vcombine.high %v1237, %v1253
      %v1273 = vunpack.c.l.s4 1934713408
      %v1274 = vunpack.c.0.s8 %v1273
      %v1275 = vlaneseq
      %v1276 = vshrl.u32 %v1275, 7
      %v1277 = vsub.s32 %v1274, %v1276
      %v1278 = vrot.slane %v1270, %v1277
      %v1280 = vunpack.c.l.s4 1934713408
      %v1281 = vunpack.c.0.s8 %v1280
      %v1282 = vlaneseq
      %v1283 = vshrl.u32 %v1282, 7
      %v1284 = vsub.s32 %v1281, %v1283
      %v1285 = vrot.slane %v1271, %v1284
      %v1286 = vcombine.high %v1262, 0.0
      %v1287 = vcombine.high %v1269, 0.0
      %v1288 = vcombine.high %v1278, 0.0
      %v1289 = vcombine.high %v1285, 0.0
      %v1290 = vcombine.low %v1201, %v1209
      %v1291 = vcombine.high %v1201, %v1209
      %v1293 = vunpack.c.l.s4 1983009808
      %v1294 = vunpack.c.0.s8 %v1293
      %v1295 = vlaneseq
      %v1296 = vshrl.u32 %v1295, 7
      %v1297 = vsub.s32 %v1294, %v1296
      %v1298 = vrot.slane %v1290, %v1297
      %v1300 = vunpack.c.l.s4 1983009808
      %v1301 = vunpack.c.0.s8 %v1300
      %v1302 = vlaneseq
      %v1303 = vshrl.u32 %v1302, 7
      %v1304 = vsub.s32 %v1301, %v1303
      %v1305 = vrot.slane %v1291, %v1304
      %v1306 = vcombine.low %v1205, %v1213
      %v1307 = vcombine.high %v1205, %v1213
      %v1309 = vunpack.c.l.s4 1983009808
      %v1310 = vunpack.c.0.s8 %v1309
      %v1311 = vlaneseq
      %v1312 = vshrl.u32 %v1311, 7
      %v1313 = vsub.s32 %v1310, %v1312
      %v1314 = vrot.slane %v1306, %v1313
      %v1316 = vunpack.c.l.s4 1983009808
      %v1317 = vunpack.c.0.s8 %v1316
      %v1318 = vlaneseq
      %v1319 = vshrl.u32 %v1318, 7
      %v1320 = vsub.s32 %v1317, %v1319
      %v1321 = vrot.slane %v1307, %v1320
      %v1322 = vcombine.low %v1298, %v1314
      %v1323 = vcombine.high %v1298, %v1314
      %v1325 = vunpack.c.l.s4 1934713408
      %v1326 = vunpack.c.0.s8 %v1325
      %v1327 = vlaneseq
      %v1328 = vshrl.u32 %v1327, 7
      %v1329 = vsub.s32 %v1326, %v1328
      %v1330 = vrot.slane %v1322, %v1329
      %v1332 = vunpack.c.l.s4 1934713408
      %v1333 = vunpack.c.0.s8 %v1332
      %v1334 = vlaneseq
      %v1335 = vshrl.u32 %v1334, 7
      %v1336 = vsub.s32 %v1333, %v1335
      %v1337 = vrot.slane %v1323, %v1336
      %v1338 = vcombine.low %v1305, %v1321
      %v1339 = vcombine.high %v1305, %v1321
      %v1341 = vunpack.c.l.s4 1934713408
      %v1342 = vunpack.c.0.s8 %v1341
      %v1343 = vlaneseq
      %v1344 = vshrl.u32 %v1343, 7
      %v1345 = vsub.s32 %v1342, %v1344
      %v1346 = vrot.slane %v1338, %v1345
      %v1348 = vunpack.c.l.s4 1934713408
      %v1349 = vunpack.c.0.s8 %v1348
      %v1350 = vlaneseq
      %v1351 = vshrl.u32 %v1350, 7
      %v1352 = vsub.s32 %v1349, %v1351
      %v1353 = vrot.slane %v1339, %v1352
      %v1354 = vcombine.high %v1330, 0.0
      %v1355 = vcombine.high %v1337, 0.0
      %v1356 = vcombine.high %v1346, 0.0
      %v1357 = vcombine.high %v1353, 0.0
      %1359 = vrot.lane.b32.xlu0 %v1286, 16
      %v1360 = vpop.permute.xlu0 %1359
      %1363 = vrot.lane.b32.xlu0 %v1269, 32
      %v1364 = vpop.permute.xlu0 %1363
      %1367 = vrot.lane.b32.xlu0 %v1287, 48
      %v1368 = vpop.permute.xlu0 %1367
      %1371 = vrot.lane.b32.xlu0 %v1278, 64
      %v1372 = vpop.permute.xlu0 %1371
      %1375 = vrot.lane.b32.xlu0 %v1288, 80
      %v1376 = vpop.permute.xlu0 %1375
      %1379 = vrot.lane.b32.xlu0 %v1285, 96
      %v1380 = vpop.permute.xlu0 %1379
      %1383 = vrot.lane.b32.xlu0 %v1289, 112
      %v1384 = vpop.permute.xlu0 %1383
      %1387 = vrot.lane.b32.xlu0 %v1354, 16
      %v1388 = vpop.permute.xlu0 %1387
      %1391 = vrot.lane.b32.xlu0 %v1337, 32
      %v1392 = vpop.permute.xlu0 %1391
      %1395 = vrot.lane.b32.xlu0 %v1355, 48
      %v1396 = vpop.permute.xlu0 %1395
      %1399 = vrot.lane.b32.xlu0 %v1346, 64
      %v1400 = vpop.permute.xlu0 %1399
      %1403 = vrot.lane.b32.xlu0 %v1356, 80
      %v1404 = vpop.permute.xlu0 %1403
      %1407 = vrot.lane.b32.xlu0 %v1353, 96
      %v1408 = vpop.permute.xlu0 %1407
      %1411 = vrot.lane.b32.xlu0 %v1357, 112
      %v1412 = vpop.permute.xlu0 %1411
      %v1414 = vsel %vm450, %v1262, %v1360
      %v1415 = vsel %vm452, %v1414, %v1364
      %v1416 = vsel %vm454, %v1415, %v1368
      %v1417 = vsel %vm456, %v1416, %v1372
      %v1418 = vsel %vm458, %v1417, %v1376
      %v1419 = vsel %vm460, %v1418, %v1380
      %v1420 = vsel %vm462, %v1419, %v1384
      %v1421 = vsel %vm450, %v1330, %v1388
      %v1422 = vsel %vm452, %v1421, %v1392
      %v1423 = vsel %vm454, %v1422, %v1396
      %v1424 = vsel %vm456, %v1423, %v1400
      %v1425 = vsel %vm458, %v1424, %v1404
      %v1426 = vsel %vm460, %v1425, %v1408
      %v1427 = vsel %vm462, %v1426, %v1412
      %1428 = vst [vmem:[#allocation2 + $0x20] sm:$0xf] %v1420
      %1429 = vst [vmem:[#allocation2 + $0x28] sm:$0xf] %v1427
      %1430 = vrot.lane.b32.xlu0 %v958, 126
      %v1431 = vpop.permute.xlu0 %1430
      %1432 = vrot.lane.b32.xlu0 %v960, 126
      %v1433 = vpop.permute.xlu0 %1432
      %1434 = vrot.lane.b32.xlu0 %v963, 126
      %v1435 = vpop.permute.xlu0 %1434
      %1436 = vrot.lane.b32.xlu0 %v965, 126
      %v1437 = vpop.permute.xlu0 %1436
      %1438 = vrot.lane.b32.xlu0 %v968, 126
      %v1439 = vpop.permute.xlu0 %1438
      %1440 = vrot.lane.b32.xlu0 %v970, 126
      %v1441 = vpop.permute.xlu0 %1440
      %1442 = vrot.lane.b32.xlu0 %v973, 126
      %v1443 = vpop.permute.xlu0 %1442
      %1444 = vrot.lane.b32.xlu0 %v975, 126
      %v1445 = vpop.permute.xlu0 %1444
      %v1454 = vcombine.low %v1431, %v1439
      %v1455 = vcombine.high %v1431, %v1439
      %v1457 = vunpack.c.l.s4 1983009808
      %v1458 = vunpack.c.0.s8 %v1457
      %v1459 = vlaneseq
      %v1460 = vshrl.u32 %v1459, 7
      %v1461 = vsub.s32 %v1458, %v1460
      %v1462 = vrot.slane %v1454, %v1461
      %v1464 = vunpack.c.l.s4 1983009808
      %v1465 = vunpack.c.0.s8 %v1464
      %v1466 = vlaneseq
      %v1467 = vshrl.u32 %v1466, 7
      %v1468 = vsub.s32 %v1465, %v1467
      %v1469 = vrot.slane %v1455, %v1468
      %v1470 = vcombine.low %v1435, %v1443
      %v1471 = vcombine.high %v1435, %v1443
      %v1473 = vunpack.c.l.s4 1983009808
      %v1474 = vunpack.c.0.s8 %v1473
      %v1475 = vlaneseq
      %v1476 = vshrl.u32 %v1475, 7
      %v1477 = vsub.s32 %v1474, %v1476
      %v1478 = vrot.slane %v1470, %v1477
      %v1480 = vunpack.c.l.s4 1983009808
      %v1481 = vunpack.c.0.s8 %v1480
      %v1482 = vlaneseq
      %v1483 = vshrl.u32 %v1482, 7
      %v1484 = vsub.s32 %v1481, %v1483
      %v1485 = vrot.slane %v1471, %v1484
      %v1486 = vcombine.low %v1462, %v1478
      %v1487 = vcombine.high %v1462, %v1478
      %v1489 = vunpack.c.l.s4 1934713408
      %v1490 = vunpack.c.0.s8 %v1489
      %v1491 = vlaneseq
      %v1492 = vshrl.u32 %v1491, 7
      %v1493 = vsub.s32 %v1490, %v1492
      %v1494 = vrot.slane %v1486, %v1493
      %v1496 = vunpack.c.l.s4 1934713408
      %v1497 = vunpack.c.0.s8 %v1496
      %v1498 = vlaneseq
      %v1499 = vshrl.u32 %v1498, 7
      %v1500 = vsub.s32 %v1497, %v1499
      %v1501 = vrot.slane %v1487, %v1500
      %v1502 = vcombine.low %v1469, %v1485
      %v1503 = vcombine.high %v1469, %v1485
      %v1505 = vunpack.c.l.s4 1934713408
      %v1506 = vunpack.c.0.s8 %v1505
      %v1507 = vlaneseq
      %v1508 = vshrl.u32 %v1507, 7
      %v1509 = vsub.s32 %v1506, %v1508
      %v1510 = vrot.slane %v1502, %v1509
      %v1512 = vunpack.c.l.s4 1934713408
      %v1513 = vunpack.c.0.s8 %v1512
      %v1514 = vlaneseq
      %v1515 = vshrl.u32 %v1514, 7
      %v1516 = vsub.s32 %v1513, %v1515
      %v1517 = vrot.slane %v1503, %v1516
      %v1518 = vcombine.high %v1494, 0.0
      %v1519 = vcombine.high %v1501, 0.0
      %v1520 = vcombine.high %v1510, 0.0
      %v1521 = vcombine.high %v1517, 0.0
      %v1522 = vcombine.low %v1433, %v1441
      %v1523 = vcombine.high %v1433, %v1441
      %v1525 = vunpack.c.l.s4 1983009808
      %v1526 = vunpack.c.0.s8 %v1525
      %v1527 = vlaneseq
      %v1528 = vshrl.u32 %v1527, 7
      %v1529 = vsub.s32 %v1526, %v1528
      %v1530 = vrot.slane %v1522, %v1529
      %v1532 = vunpack.c.l.s4 1983009808
      %v1533 = vunpack.c.0.s8 %v1532
      %v1534 = vlaneseq
      %v1535 = vshrl.u32 %v1534, 7
      %v1536 = vsub.s32 %v1533, %v1535
      %v1537 = vrot.slane %v1523, %v1536
      %v1538 = vcombine.low %v1437, %v1445
      %v1539 = vcombine.high %v1437, %v1445
      %v1541 = vunpack.c.l.s4 1983009808
      %v1542 = vunpack.c.0.s8 %v1541
      %v1543 = vlaneseq
      %v1544 = vshrl.u32 %v1543, 7
      %v1545 = vsub.s32 %v1542, %v1544
      %v1546 = vrot.slane %v1538, %v1545
      %v1548 = vunpack.c.l.s4 1983009808
      %v1549 = vunpack.c.0.s8 %v1548
      %v1550 = vlaneseq
      %v1551 = vshrl.u32 %v1550, 7
      %v1552 = vsub.s32 %v1549, %v1551
      %v1553 = vrot.slane %v1539, %v1552
      %v1554 = vcombine.low %v1530, %v1546
      %v1555 = vcombine.high %v1530, %v1546
      %v1557 = vunpack.c.l.s4 1934713408
      %v1558 = vunpack.c.0.s8 %v1557
      %v1559 = vlaneseq
      %v1560 = vshrl.u32 %v1559, 7
      %v1561 = vsub.s32 %v1558, %v1560
      %v1562 = vrot.slane %v1554, %v1561
      %v1564 = vunpack.c.l.s4 1934713408
      %v1565 = vunpack.c.0.s8 %v1564
      %v1566 = vlaneseq
      %v1567 = vshrl.u32 %v1566, 7
      %v1568 = vsub.s32 %v1565, %v1567
      %v1569 = vrot.slane %v1555, %v1568
      %v1570 = vcombine.low %v1537, %v1553
      %v1571 = vcombine.high %v1537, %v1553
      %v1573 = vunpack.c.l.s4 1934713408
      %v1574 = vunpack.c.0.s8 %v1573
      %v1575 = vlaneseq
      %v1576 = vshrl.u32 %v1575, 7
      %v1577 = vsub.s32 %v1574, %v1576
      %v1578 = vrot.slane %v1570, %v1577
      %v1580 = vunpack.c.l.s4 1934713408
      %v1581 = vunpack.c.0.s8 %v1580
      %v1582 = vlaneseq
      %v1583 = vshrl.u32 %v1582, 7
      %v1584 = vsub.s32 %v1581, %v1583
      %v1585 = vrot.slane %v1571, %v1584
      %v1586 = vcombine.high %v1562, 0.0
      %v1587 = vcombine.high %v1569, 0.0
      %v1588 = vcombine.high %v1578, 0.0
      %v1589 = vcombine.high %v1585, 0.0
      %1591 = vrot.lane.b32.xlu0 %v1518, 16
      %v1592 = vpop.permute.xlu0 %1591
      %1595 = vrot.lane.b32.xlu0 %v1501, 32
      %v1596 = vpop.permute.xlu0 %1595
      %1599 = vrot.lane.b32.xlu0 %v1519, 48
      %v1600 = vpop.permute.xlu0 %1599
      %1603 = vrot.lane.b32.xlu0 %v1510, 64
      %v1604 = vpop.permute.xlu0 %1603
      %1607 = vrot.lane.b32.xlu0 %v1520, 80
      %v1608 = vpop.permute.xlu0 %1607
      %1611 = vrot.lane.b32.xlu0 %v1517, 96
      %v1612 = vpop.permute.xlu0 %1611
      %1615 = vrot.lane.b32.xlu0 %v1521, 112
      %v1616 = vpop.permute.xlu0 %1615
      %1619 = vrot.lane.b32.xlu0 %v1586, 16
      %v1620 = vpop.permute.xlu0 %1619
      %1623 = vrot.lane.b32.xlu0 %v1569, 32
      %v1624 = vpop.permute.xlu0 %1623
      %1627 = vrot.lane.b32.xlu0 %v1587, 48
      %v1628 = vpop.permute.xlu0 %1627
      %1631 = vrot.lane.b32.xlu0 %v1578, 64
      %v1632 = vpop.permute.xlu0 %1631
      %1635 = vrot.lane.b32.xlu0 %v1588, 80
      %v1636 = vpop.permute.xlu0 %1635
      %1639 = vrot.lane.b32.xlu0 %v1585, 96
      %v1640 = vpop.permute.xlu0 %1639
      %1643 = vrot.lane.b32.xlu0 %v1589, 112
      %v1644 = vpop.permute.xlu0 %1643
      %v1646 = vsel %vm450, %v1494, %v1592
      %v1647 = vsel %vm452, %v1646, %v1596
      %v1648 = vsel %vm454, %v1647, %v1600
      %v1649 = vsel %vm456, %v1648, %v1604
      %v1650 = vsel %vm458, %v1649, %v1608
      %v1651 = vsel %vm460, %v1650, %v1612
      %v1652 = vsel %vm462, %v1651, %v1616
      %v1653 = vsel %vm450, %v1562, %v1620
      %v1654 = vsel %vm452, %v1653, %v1624
      %v1655 = vsel %vm454, %v1654, %v1628
      %v1656 = vsel %vm456, %v1655, %v1632
      %v1657 = vsel %vm458, %v1656, %v1636
      %v1658 = vsel %vm460, %v1657, %v1640
      %v1659 = vsel %vm462, %v1658, %v1644
      %v1662 = vrot.slane %v1652, 4
      %v1663 = vrot.slane %v1659, 4
      %1666 = vst [vmem:[#allocation2 + $0x20] sm:$0xf0] %v1662
      %1667 = vst [vmem:[#allocation2 + $0x28] sm:$0xf0] %v1663
      %vm1668 = vcmask 1045504
      %v1669 = vrot.slane %v246, 2
      %v1670 = vrot.slane %v247, 2
      %v1671 = vsel %vm1668, %v1669, %v1670
      %v1672 = vrot.slane %v248, 2
      %v1673 = vsel %vm1668, %v1670, %v1672
      %v1674 = vrot.slane %v249, 2
      %v1675 = vrot.slane %v250, 2
      %v1676 = vsel %vm1668, %v1674, %v1675
      %v1677 = vrot.slane %v251, 2
      %v1678 = vsel %vm1668, %v1675, %v1677
      %v1679 = vrot.slane %v252, 2
      %v1680 = vrot.slane %v253, 2
      %v1681 = vsel %vm1668, %v1679, %v1680
      %v1682 = vrot.slane %v254, 2
      %v1683 = vsel %vm1668, %v1680, %v1682
      %v1684 = vrot.slane %v255, 2
      %v1685 = vrot.slane %v256, 2
      %v1686 = vsel %vm1668, %v1684, %v1685
      %v1687 = vrot.slane %v257, 2
      %v1688 = vsel %vm1668, %v1685, %v1687
      %v1697 = vcombine.low %v1671, %v1681
      %v1698 = vcombine.high %v1671, %v1681
      %v1700 = vunpack.c.l.s4 1983009808
      %v1701 = vunpack.c.0.s8 %v1700
      %v1702 = vlaneseq
      %v1703 = vshrl.u32 %v1702, 7
      %v1704 = vsub.s32 %v1701, %v1703
      %v1705 = vrot.slane %v1697, %v1704
      %v1707 = vunpack.c.l.s4 1983009808
      %v1708 = vunpack.c.0.s8 %v1707
      %v1709 = vlaneseq
      %v1710 = vshrl.u32 %v1709, 7
      %v1711 = vsub.s32 %v1708, %v1710
      %v1712 = vrot.slane %v1698, %v1711
      %v1713 = vcombine.low %v1676, %v1686
      %v1714 = vcombine.high %v1676, %v1686
      %v1716 = vunpack.c.l.s4 1983009808
      %v1717 = vunpack.c.0.s8 %v1716
      %v1718 = vlaneseq
      %v1719 = vshrl.u32 %v1718, 7
      %v1720 = vsub.s32 %v1717, %v1719
      %v1721 = vrot.slane %v1713, %v1720
      %v1723 = vunpack.c.l.s4 1983009808
      %v1724 = vunpack.c.0.s8 %v1723
      %v1725 = vlaneseq
      %v1726 = vshrl.u32 %v1725, 7
      %v1727 = vsub.s32 %v1724, %v1726
      %v1728 = vrot.slane %v1714, %v1727
      %v1729 = vcombine.low %v1705, %v1721
      %v1730 = vcombine.high %v1705, %v1721
      %v1732 = vunpack.c.l.s4 1934713408
      %v1733 = vunpack.c.0.s8 %v1732
      %v1734 = vlaneseq
      %v1735 = vshrl.u32 %v1734, 7
      %v1736 = vsub.s32 %v1733, %v1735
      %v1737 = vrot.slane %v1729, %v1736
      %v1739 = vunpack.c.l.s4 1934713408
      %v1740 = vunpack.c.0.s8 %v1739
      %v1741 = vlaneseq
      %v1742 = vshrl.u32 %v1741, 7
      %v1743 = vsub.s32 %v1740, %v1742
      %v1744 = vrot.slane %v1730, %v1743
      %v1745 = vcombine.low %v1712, %v1728
      %v1746 = vcombine.high %v1712, %v1728
      %v1748 = vunpack.c.l.s4 1934713408
      %v1749 = vunpack.c.0.s8 %v1748
      %v1750 = vlaneseq
      %v1751 = vshrl.u32 %v1750, 7
      %v1752 = vsub.s32 %v1749, %v1751
      %v1753 = vrot.slane %v1745, %v1752
      %v1755 = vunpack.c.l.s4 1934713408
      %v1756 = vunpack.c.0.s8 %v1755
      %v1757 = vlaneseq
      %v1758 = vshrl.u32 %v1757, 7
      %v1759 = vsub.s32 %v1756, %v1758
      %v1760 = vrot.slane %v1746, %v1759
      %v1761 = vcombine.high %v1737, 0.0
      %v1762 = vcombine.high %v1744, 0.0
      %v1763 = vcombine.high %v1753, 0.0
      %v1764 = vcombine.high %v1760, 0.0
      %v1765 = vcombine.low %v1673, %v1683
      %v1766 = vcombine.high %v1673, %v1683
      %v1768 = vunpack.c.l.s4 1983009808
      %v1769 = vunpack.c.0.s8 %v1768
      %v1770 = vlaneseq
      %v1771 = vshrl.u32 %v1770, 7
      %v1772 = vsub.s32 %v1769, %v1771
      %v1773 = vrot.slane %v1765, %v1772
      %v1775 = vunpack.c.l.s4 1983009808
      %v1776 = vunpack.c.0.s8 %v1775
      %v1777 = vlaneseq
      %v1778 = vshrl.u32 %v1777, 7
      %v1779 = vsub.s32 %v1776, %v1778
      %v1780 = vrot.slane %v1766, %v1779
      %v1781 = vcombine.low %v1678, %v1688
      %v1782 = vcombine.high %v1678, %v1688
      %v1784 = vunpack.c.l.s4 1983009808
      %v1785 = vunpack.c.0.s8 %v1784
      %v1786 = vlaneseq
      %v1787 = vshrl.u32 %v1786, 7
      %v1788 = vsub.s32 %v1785, %v1787
      %v1789 = vrot.slane %v1781, %v1788
      %v1791 = vunpack.c.l.s4 1983009808
      %v1792 = vunpack.c.0.s8 %v1791
      %v1793 = vlaneseq
      %v1794 = vshrl.u32 %v1793, 7
      %v1795 = vsub.s32 %v1792, %v1794
      %v1796 = vrot.slane %v1782, %v1795
      %v1797 = vcombine.low %v1773, %v1789
      %v1798 = vcombine.high %v1773, %v1789
      %v1800 = vunpack.c.l.s4 1934713408
      %v1801 = vunpack.c.0.s8 %v1800
      %v1802 = vlaneseq
      %v1803 = vshrl.u32 %v1802, 7
      %v1804 = vsub.s32 %v1801, %v1803
      %v1805 = vrot.slane %v1797, %v1804
      %v1807 = vunpack.c.l.s4 1934713408
      %v1808 = vunpack.c.0.s8 %v1807
      %v1809 = vlaneseq
      %v1810 = vshrl.u32 %v1809, 7
      %v1811 = vsub.s32 %v1808, %v1810
      %v1812 = vrot.slane %v1798, %v1811
      %v1813 = vcombine.low %v1780, %v1796
      %v1814 = vcombine.high %v1780, %v1796
      %v1816 = vunpack.c.l.s4 1934713408
      %v1817 = vunpack.c.0.s8 %v1816
      %v1818 = vlaneseq
      %v1819 = vshrl.u32 %v1818, 7
      %v1820 = vsub.s32 %v1817, %v1819
      %v1821 = vrot.slane %v1813, %v1820
      %v1823 = vunpack.c.l.s4 1934713408
      %v1824 = vunpack.c.0.s8 %v1823
      %v1825 = vlaneseq
      %v1826 = vshrl.u32 %v1825, 7
      %v1827 = vsub.s32 %v1824, %v1826
      %v1828 = vrot.slane %v1814, %v1827
      %v1829 = vcombine.high %v1805, 0.0
      %v1830 = vcombine.high %v1812, 0.0
      %v1831 = vcombine.high %v1821, 0.0
      %v1832 = vcombine.high %v1828, 0.0
      %1834 = vrot.lane.b32.xlu0 %v1761, 16
      %v1835 = vpop.permute.xlu0 %1834
      %1838 = vrot.lane.b32.xlu0 %v1744, 32
      %v1839 = vpop.permute.xlu0 %1838
      %1842 = vrot.lane.b32.xlu0 %v1762, 48
      %v1843 = vpop.permute.xlu0 %1842
      %1846 = vrot.lane.b32.xlu0 %v1753, 64
      %v1847 = vpop.permute.xlu0 %1846
      %1850 = vrot.lane.b32.xlu0 %v1763, 80
      %v1851 = vpop.permute.xlu0 %1850
      %1854 = vrot.lane.b32.xlu0 %v1760, 96
      %v1855 = vpop.permute.xlu0 %1854
      %1858 = vrot.lane.b32.xlu0 %v1764, 112
      %v1859 = vpop.permute.xlu0 %1858
      %1862 = vrot.lane.b32.xlu0 %v1829, 16
      %v1863 = vpop.permute.xlu0 %1862
      %1866 = vrot.lane.b32.xlu0 %v1812, 32
      %v1867 = vpop.permute.xlu0 %1866
      %1870 = vrot.lane.b32.xlu0 %v1830, 48
      %v1871 = vpop.permute.xlu0 %1870
      %1874 = vrot.lane.b32.xlu0 %v1821, 64
      %v1875 = vpop.permute.xlu0 %1874
      %1878 = vrot.lane.b32.xlu0 %v1831, 80
      %v1879 = vpop.permute.xlu0 %1878
      %1882 = vrot.lane.b32.xlu0 %v1828, 96
      %v1883 = vpop.permute.xlu0 %1882
      %1886 = vrot.lane.b32.xlu0 %v1832, 112
      %v1887 = vpop.permute.xlu0 %1886
      %v1889 = vsel %vm450, %v1737, %v1835
      %v1890 = vsel %vm452, %v1889, %v1839
      %v1891 = vsel %vm454, %v1890, %v1843
      %v1892 = vsel %vm456, %v1891, %v1847
      %v1893 = vsel %vm458, %v1892, %v1851
      %v1894 = vsel %vm460, %v1893, %v1855
      %v1895 = vsel %vm462, %v1894, %v1859
      %v1896 = vsel %vm450, %v1805, %v1863
      %v1897 = vsel %vm452, %v1896, %v1867
      %v1898 = vsel %vm454, %v1897, %v1871
      %v1899 = vsel %vm456, %v1898, %v1875
      %v1900 = vsel %vm458, %v1899, %v1879
      %v1901 = vsel %vm460, %v1900, %v1883
      %v1902 = vsel %vm462, %v1901, %v1887
      %1903 = vst [vmem:[#allocation2 + $0x30] sm:$0xf] %v1895
      %1904 = vst [vmem:[#allocation2 + $0x38] sm:$0xf] %v1902
      %1905 = vrot.lane.b32.xlu0 %v1671, 127
      %v1906 = vpop.permute.xlu0 %1905
      %1907 = vrot.lane.b32.xlu0 %v1673, 127
      %v1908 = vpop.permute.xlu0 %1907
      %1909 = vrot.lane.b32.xlu0 %v1676, 127
      %v1910 = vpop.permute.xlu0 %1909
      %1911 = vrot.lane.b32.xlu0 %v1678, 127
      %v1912 = vpop.permute.xlu0 %1911
      %1913 = vrot.lane.b32.xlu0 %v1681, 127
      %v1914 = vpop.permute.xlu0 %1913
      %1915 = vrot.lane.b32.xlu0 %v1683, 127
      %v1916 = vpop.permute.xlu0 %1915
      %1917 = vrot.lane.b32.xlu0 %v1686, 127
      %v1918 = vpop.permute.xlu0 %1917
      %1919 = vrot.lane.b32.xlu0 %v1688, 127
      %v1920 = vpop.permute.xlu0 %1919
      %v1929 = vcombine.low %v1906, %v1914
      %v1930 = vcombine.high %v1906, %v1914
      %v1932 = vunpack.c.l.s4 1983009808
      %v1933 = vunpack.c.0.s8 %v1932
      %v1934 = vlaneseq
      %v1935 = vshrl.u32 %v1934, 7
      %v1936 = vsub.s32 %v1933, %v1935
      %v1937 = vrot.slane %v1929, %v1936
      %v1939 = vunpack.c.l.s4 1983009808
      %v1940 = vunpack.c.0.s8 %v1939
      %v1941 = vlaneseq
      %v1942 = vshrl.u32 %v1941, 7
      %v1943 = vsub.s32 %v1940, %v1942
      %v1944 = vrot.slane %v1930, %v1943
      %v1945 = vcombine.low %v1910, %v1918
      %v1946 = vcombine.high %v1910, %v1918
      %v1948 = vunpack.c.l.s4 1983009808
      %v1949 = vunpack.c.0.s8 %v1948
      %v1950 = vlaneseq
      %v1951 = vshrl.u32 %v1950, 7
      %v1952 = vsub.s32 %v1949, %v1951
      %v1953 = vrot.slane %v1945, %v1952
      %v1955 = vunpack.c.l.s4 1983009808
      %v1956 = vunpack.c.0.s8 %v1955
      %v1957 = vlaneseq
      %v1958 = vshrl.u32 %v1957, 7
      %v1959 = vsub.s32 %v1956, %v1958
      %v1960 = vrot.slane %v1946, %v1959
      %v1961 = vcombine.low %v1937, %v1953
      %v1962 = vcombine.high %v1937, %v1953
      %v1964 = vunpack.c.l.s4 1934713408
      %v1965 = vunpack.c.0.s8 %v1964
      %v1966 = vlaneseq
      %v1967 = vshrl.u32 %v1966, 7
      %v1968 = vsub.s32 %v1965, %v1967
      %v1969 = vrot.slane %v1961, %v1968
      %v1971 = vunpack.c.l.s4 1934713408
      %v1972 = vunpack.c.0.s8 %v1971
      %v1973 = vlaneseq
      %v1974 = vshrl.u32 %v1973, 7
      %v1975 = vsub.s32 %v1972, %v1974
      %v1976 = vrot.slane %v1962, %v1975
      %v1977 = vcombine.low %v1944, %v1960
      %v1978 = vcombine.high %v1944, %v1960
      %v1980 = vunpack.c.l.s4 1934713408
      %v1981 = vunpack.c.0.s8 %v1980
      %v1982 = vlaneseq
      %v1983 = vshrl.u32 %v1982, 7
      %v1984 = vsub.s32 %v1981, %v1983
      %v1985 = vrot.slane %v1977, %v1984
      %v1987 = vunpack.c.l.s4 1934713408
      %v1988 = vunpack.c.0.s8 %v1987
      %v1989 = vlaneseq
      %v1990 = vshrl.u32 %v1989, 7
      %v1991 = vsub.s32 %v1988, %v1990
      %v1992 = vrot.slane %v1978, %v1991
      %v1993 = vcombine.high %v1969, 0.0
      %v1994 = vcombine.high %v1976, 0.0
      %v1995 = vcombine.high %v1985, 0.0
      %v1996 = vcombine.high %v1992, 0.0
      %v1997 = vcombine.low %v1908, %v1916
      %v1998 = vcombine.high %v1908, %v1916
      %v2000 = vunpack.c.l.s4 1983009808
      %v2001 = vunpack.c.0.s8 %v2000
      %v2002 = vlaneseq
      %v2003 = vshrl.u32 %v2002, 7
      %v2004 = vsub.s32 %v2001, %v2003
      %v2005 = vrot.slane %v1997, %v2004
      %v2007 = vunpack.c.l.s4 1983009808
      %v2008 = vunpack.c.0.s8 %v2007
      %v2009 = vlaneseq
      %v2010 = vshrl.u32 %v2009, 7
      %v2011 = vsub.s32 %v2008, %v2010
      %v2012 = vrot.slane %v1998, %v2011
      %v2013 = vcombine.low %v1912, %v1920
      %v2014 = vcombine.high %v1912, %v1920
      %v2016 = vunpack.c.l.s4 1983009808
      %v2017 = vunpack.c.0.s8 %v2016
      %v2018 = vlaneseq
      %v2019 = vshrl.u32 %v2018, 7
      %v2020 = vsub.s32 %v2017, %v2019
      %v2021 = vrot.slane %v2013, %v2020
      %v2023 = vunpack.c.l.s4 1983009808
      %v2024 = vunpack.c.0.s8 %v2023
      %v2025 = vlaneseq
      %v2026 = vshrl.u32 %v2025, 7
      %v2027 = vsub.s32 %v2024, %v2026
      %v2028 = vrot.slane %v2014, %v2027
      %v2029 = vcombine.low %v2005, %v2021
      %v2030 = vcombine.high %v2005, %v2021
      %v2032 = vunpack.c.l.s4 1934713408
      %v2033 = vunpack.c.0.s8 %v2032
      %v2034 = vlaneseq
      %v2035 = vshrl.u32 %v2034, 7
      %v2036 = vsub.s32 %v2033, %v2035
      %v2037 = vrot.slane %v2029, %v2036
      %v2039 = vunpack.c.l.s4 1934713408
      %v2040 = vunpack.c.0.s8 %v2039
      %v2041 = vlaneseq
      %v2042 = vshrl.u32 %v2041, 7
      %v2043 = vsub.s32 %v2040, %v2042
      %v2044 = vrot.slane %v2030, %v2043
      %v2045 = vcombine.low %v2012, %v2028
      %v2046 = vcombine.high %v2012, %v2028
      %v2048 = vunpack.c.l.s4 1934713408
      %v2049 = vunpack.c.0.s8 %v2048
      %v2050 = vlaneseq
      %v2051 = vshrl.u32 %v2050, 7
      %v2052 = vsub.s32 %v2049, %v2051
      %v2053 = vrot.slane %v2045, %v2052
      %v2055 = vunpack.c.l.s4 1934713408
      %v2056 = vunpack.c.0.s8 %v2055
      %v2057 = vlaneseq
      %v2058 = vshrl.u32 %v2057, 7
      %v2059 = vsub.s32 %v2056, %v2058
      %v2060 = vrot.slane %v2046, %v2059
      %v2061 = vcombine.high %v2037, 0.0
      %v2062 = vcombine.high %v2044, 0.0
      %v2063 = vcombine.high %v2053, 0.0
      %v2064 = vcombine.high %v2060, 0.0
      %2066 = vrot.lane.b32.xlu0 %v1993, 16
      %v2067 = vpop.permute.xlu0 %2066
      %2070 = vrot.lane.b32.xlu0 %v1976, 32
      %v2071 = vpop.permute.xlu0 %2070
      %2074 = vrot.lane.b32.xlu0 %v1994, 48
      %v2075 = vpop.permute.xlu0 %2074
      %2078 = vrot.lane.b32.xlu0 %v1985, 64
      %v2079 = vpop.permute.xlu0 %2078
      %2082 = vrot.lane.b32.xlu0 %v1995, 80
      %v2083 = vpop.permute.xlu0 %2082
      %2086 = vrot.lane.b32.xlu0 %v1992, 96
      %v2087 = vpop.permute.xlu0 %2086
      %2090 = vrot.lane.b32.xlu0 %v1996, 112
      %v2091 = vpop.permute.xlu0 %2090
      %2094 = vrot.lane.b32.xlu0 %v2061, 16
      %v2095 = vpop.permute.xlu0 %2094
      %2098 = vrot.lane.b32.xlu0 %v2044, 32
      %v2099 = vpop.permute.xlu0 %2098
      %2102 = vrot.lane.b32.xlu0 %v2062, 48
      %v2103 = vpop.permute.xlu0 %2102
      %2106 = vrot.lane.b32.xlu0 %v2053, 64
      %v2107 = vpop.permute.xlu0 %2106
      %2110 = vrot.lane.b32.xlu0 %v2063, 80
      %v2111 = vpop.permute.xlu0 %2110
      %2114 = vrot.lane.b32.xlu0 %v2060, 96
      %v2115 = vpop.permute.xlu0 %2114
      %2118 = vrot.lane.b32.xlu0 %v2064, 112
      %v2119 = vpop.permute.xlu0 %2118
      %v2121 = vsel %vm450, %v1969, %v2067
      %v2122 = vsel %vm452, %v2121, %v2071
      %v2123 = vsel %vm454, %v2122, %v2075
      %v2124 = vsel %vm456, %v2123, %v2079
      %v2125 = vsel %vm458, %v2124, %v2083
      %v2126 = vsel %vm460, %v2125, %v2087
      %v2127 = vsel %vm462, %v2126, %v2091
      %v2128 = vsel %vm450, %v2037, %v2095
      %v2129 = vsel %vm452, %v2128, %v2099
      %v2130 = vsel %vm454, %v2129, %v2103
      %v2131 = vsel %vm456, %v2130, %v2107
      %v2132 = vsel %vm458, %v2131, %v2111
      %v2133 = vsel %vm460, %v2132, %v2115
      %v2134 = vsel %vm462, %v2133, %v2119
      %v2137 = vrot.slane %v2127, 4
      %v2138 = vrot.slane %v2134, 4
      %2141 = vst [vmem:[#allocation2 + $0x30] sm:$0xf0] %v2137
      %2142 = vst [vmem:[#allocation2 + $0x38] sm:$0xf0] %v2138
      %2143 = vrot.lane.b32.xlu0 %v1671, 126
      %v2144 = vpop.permute.xlu0 %2143
      %2145 = vrot.lane.b32.xlu0 %v1673, 126
      %v2146 = vpop.permute.xlu0 %2145
      %2147 = vrot.lane.b32.xlu0 %v1676, 126
      %v2148 = vpop.permute.xlu0 %2147
      %2149 = vrot.lane.b32.xlu0 %v1678, 126
      %v2150 = vpop.permute.xlu0 %2149
      %2151 = vrot.lane.b32.xlu0 %v1681, 126
      %v2152 = vpop.permute.xlu0 %2151
      %2153 = vrot.lane.b32.xlu0 %v1683, 126
      %v2154 = vpop.permute.xlu0 %2153
      %2155 = vrot.lane.b32.xlu0 %v1686, 126
      %v2156 = vpop.permute.xlu0 %2155
      %2157 = vrot.lane.b32.xlu0 %v1688, 126
      %v2158 = vpop.permute.xlu0 %2157
      %v2167 = vcombine.low %v2144, %v2152
      %v2168 = vcombine.high %v2144, %v2152
      %v2170 = vunpack.c.l.s4 1983009808
      %v2171 = vunpack.c.0.s8 %v2170
      %v2172 = vlaneseq
      %v2173 = vshrl.u32 %v2172, 7
      %v2174 = vsub.s32 %v2171, %v2173
      %v2175 = vrot.slane %v2167, %v2174
      %v2177 = vunpack.c.l.s4 1983009808
      %v2178 = vunpack.c.0.s8 %v2177
      %v2179 = vlaneseq
      %v2180 = vshrl.u32 %v2179, 7
      %v2181 = vsub.s32 %v2178, %v2180
      %v2182 = vrot.slane %v2168, %v2181
      %v2183 = vcombine.low %v2148, %v2156
      %v2184 = vcombine.high %v2148, %v2156
      %v2186 = vunpack.c.l.s4 1983009808
      %v2187 = vunpack.c.0.s8 %v2186
      %v2188 = vlaneseq
      %v2189 = vshrl.u32 %v2188, 7
      %v2190 = vsub.s32 %v2187, %v2189
      %v2191 = vrot.slane %v2183, %v2190
      %v2193 = vunpack.c.l.s4 1983009808
      %v2194 = vunpack.c.0.s8 %v2193
      %v2195 = vlaneseq
      %v2196 = vshrl.u32 %v2195, 7
      %v2197 = vsub.s32 %v2194, %v2196
      %v2198 = vrot.slane %v2184, %v2197
      %v2199 = vcombine.low %v2175, %v2191
      %v2200 = vcombine.high %v2175, %v2191
      %v2202 = vunpack.c.l.s4 1934713408
      %v2203 = vunpack.c.0.s8 %v2202
      %v2204 = vlaneseq
      %v2205 = vshrl.u32 %v2204, 7
      %v2206 = vsub.s32 %v2203, %v2205
      %v2207 = vrot.slane %v2199, %v2206
      %v2209 = vunpack.c.l.s4 1934713408
      %v2210 = vunpack.c.0.s8 %v2209
      %v2211 = vlaneseq
      %v2212 = vshrl.u32 %v2211, 7
      %v2213 = vsub.s32 %v2210, %v2212
      %v2214 = vrot.slane %v2200, %v2213
      %v2215 = vcombine.low %v2182, %v2198
      %v2216 = vcombine.high %v2182, %v2198
      %v2218 = vunpack.c.l.s4 1934713408
      %v2219 = vunpack.c.0.s8 %v2218
      %v2220 = vlaneseq
      %v2221 = vshrl.u32 %v2220, 7
      %v2222 = vsub.s32 %v2219, %v2221
      %v2223 = vrot.slane %v2215, %v2222
      %v2225 = vunpack.c.l.s4 1934713408
      %v2226 = vunpack.c.0.s8 %v2225
      %v2227 = vlaneseq
      %v2228 = vshrl.u32 %v2227, 7
      %v2229 = vsub.s32 %v2226, %v2228
      %v2230 = vrot.slane %v2216, %v2229
      %v2231 = vcombine.high %v2207, 0.0
      %v2232 = vcombine.high %v2214, 0.0
      %v2233 = vcombine.high %v2223, 0.0
      %v2234 = vcombine.high %v2230, 0.0
      %v2235 = vcombine.low %v2146, %v2154
      %v2236 = vcombine.high %v2146, %v2154
      %v2238 = vunpack.c.l.s4 1983009808
      %v2239 = vunpack.c.0.s8 %v2238
      %v2240 = vlaneseq
      %v2241 = vshrl.u32 %v2240, 7
      %v2242 = vsub.s32 %v2239, %v2241
      %v2243 = vrot.slane %v2235, %v2242
      %v2245 = vunpack.c.l.s4 1983009808
      %v2246 = vunpack.c.0.s8 %v2245
      %v2247 = vlaneseq
      %v2248 = vshrl.u32 %v2247, 7
      %v2249 = vsub.s32 %v2246, %v2248
      %v2250 = vrot.slane %v2236, %v2249
      %v2251 = vcombine.low %v2150, %v2158
      %v2252 = vcombine.high %v2150, %v2158
      %v2254 = vunpack.c.l.s4 1983009808
      %v2255 = vunpack.c.0.s8 %v2254
      %v2256 = vlaneseq
      %v2257 = vshrl.u32 %v2256, 7
      %v2258 = vsub.s32 %v2255, %v2257
      %v2259 = vrot.slane %v2251, %v2258
      %v2261 = vunpack.c.l.s4 1983009808
      %v2262 = vunpack.c.0.s8 %v2261
      %v2263 = vlaneseq
      %v2264 = vshrl.u32 %v2263, 7
      %v2265 = vsub.s32 %v2262, %v2264
      %v2266 = vrot.slane %v2252, %v2265
      %v2267 = vcombine.low %v2243, %v2259
      %v2268 = vcombine.high %v2243, %v2259
      %v2270 = vunpack.c.l.s4 1934713408
      %v2271 = vunpack.c.0.s8 %v2270
      %v2272 = vlaneseq
      %v2273 = vshrl.u32 %v2272, 7
      %v2274 = vsub.s32 %v2271, %v2273
      %v2275 = vrot.slane %v2267, %v2274
      %v2277 = vunpack.c.l.s4 1934713408
      %v2278 = vunpack.c.0.s8 %v2277
      %v2279 = vlaneseq
      %v2280 = vshrl.u32 %v2279, 7
      %v2281 = vsub.s32 %v2278, %v2280
      %v2282 = vrot.slane %v2268, %v2281
      %v2283 = vcombine.low %v2250, %v2266
      %v2284 = vcombine.high %v2250, %v2266
      %v2286 = vunpack.c.l.s4 1934713408
      %v2287 = vunpack.c.0.s8 %v2286
      %v2288 = vlaneseq
      %v2289 = vshrl.u32 %v2288, 7
      %v2290 = vsub.s32 %v2287, %v2289
      %v2291 = vrot.slane %v2283, %v2290
      %v2293 = vunpack.c.l.s4 1934713408
      %v2294 = vunpack.c.0.s8 %v2293
      %v2295 = vlaneseq
      %v2296 = vshrl.u32 %v2295, 7
      %v2297 = vsub.s32 %v2294, %v2296
      %v2298 = vrot.slane %v2284, %v2297
      %v2299 = vcombine.high %v2275, 0.0
      %v2300 = vcombine.high %v2282, 0.0
      %v2301 = vcombine.high %v2291, 0.0
      %v2302 = vcombine.high %v2298, 0.0
      %2304 = vrot.lane.b32.xlu0 %v2231, 16
      %v2305 = vpop.permute.xlu0 %2304
      %2308 = vrot.lane.b32.xlu0 %v2214, 32
      %v2309 = vpop.permute.xlu0 %2308
      %2312 = vrot.lane.b32.xlu0 %v2232, 48
      %v2313 = vpop.permute.xlu0 %2312
      %2316 = vrot.lane.b32.xlu0 %v2223, 64
      %v2317 = vpop.permute.xlu0 %2316
      %2320 = vrot.lane.b32.xlu0 %v2233, 80
      %v2321 = vpop.permute.xlu0 %2320
      %2324 = vrot.lane.b32.xlu0 %v2230, 96
      %v2325 = vpop.permute.xlu0 %2324
      %2328 = vrot.lane.b32.xlu0 %v2234, 112
      %v2329 = vpop.permute.xlu0 %2328
      %2332 = vrot.lane.b32.xlu0 %v2299, 16
      %v2333 = vpop.permute.xlu0 %2332
      %2336 = vrot.lane.b32.xlu0 %v2282, 32
      %v2337 = vpop.permute.xlu0 %2336
      %2340 = vrot.lane.b32.xlu0 %v2300, 48
      %v2341 = vpop.permute.xlu0 %2340
      %2344 = vrot.lane.b32.xlu0 %v2291, 64
      %v2345 = vpop.permute.xlu0 %2344
      %2348 = vrot.lane.b32.xlu0 %v2301, 80
      %v2349 = vpop.permute.xlu0 %2348
      %2352 = vrot.lane.b32.xlu0 %v2298, 96
      %v2353 = vpop.permute.xlu0 %2352
      %2356 = vrot.lane.b32.xlu0 %v2302, 112
      %v2357 = vpop.permute.xlu0 %2356
      %v2359 = vsel %vm450, %v2207, %v2305
      %v2360 = vsel %vm452, %v2359, %v2309
      %v2361 = vsel %vm454, %v2360, %v2313
      %v2362 = vsel %vm456, %v2361, %v2317
      %v2363 = vsel %vm458, %v2362, %v2321
      %v2364 = vsel %vm460, %v2363, %v2325
      %v2365 = vsel %vm462, %v2364, %v2329
      %v2366 = vsel %vm450, %v2275, %v2333
      %v2367 = vsel %vm452, %v2366, %v2337
      %v2368 = vsel %vm454, %v2367, %v2341
      %v2369 = vsel %vm456, %v2368, %v2345
      %v2370 = vsel %vm458, %v2369, %v2349
      %v2371 = vsel %vm460, %v2370, %v2353
      %v2372 = vsel %vm462, %v2371, %v2357
      %2373 = vst [vmem:[#allocation2 + $0x40] sm:$0xf] %v2365
      %2374 = vst [vmem:[#allocation2 + $0x48] sm:$0xf] %v2372
      %v2375 = vld [vmem:[%s1] sm:$0xff]
      %v2376 = vld [vmem:[#allocation2] sm:$0xff]
      %v2377 = vld [vmem:[#allocation2 + $0x8] sm:$0xff]
      %v2378 = vld [vmem:[#allocation2 + $0x10] sm:$0xff]
      %v2379 = vld [vmem:[#allocation2 + $0x18] sm:$0xff]
      %v2380 = vld [vmem:[#allocation2 + $0x20] sm:$0xff]
      %v2381 = vld [vmem:[#allocation2 + $0x28] sm:$0xff]
      %v2382 = vld [vmem:[#allocation2 + $0x30] sm:$0xff]
      %v2383 = vld [vmem:[#allocation2 + $0x38] sm:$0xff]
      %v2384 = vld [vmem:[#allocation2 + $0x40] sm:$0xf]
      %v2385 = vld [vmem:[#allocation2 + $0x48] sm:$0xf]
      %v2386 = vld [vmem:[%s2] sm:$0xff]
      %2388 = vset.pattern.permute.xlu0 0
      %2389 = vperm.xlu0 %2388, %v2386
      %v2390 = vpop.permute.xlu0 %2389
      %vm2392 = vcmask 293888
      %v2394 = vsel %vm2392, %v2375, 0
      %vm2396 = vcmask 1043456
      %v2398 = vsel %vm2396, %v2384, 0
      %v2401 = vsel %vm2396, %v2385, 0
      %2403 = vmatprep.subr.mxu0 %v2377
      %2404 = vmatpush1.msra.mxu0 %v2376
      %2405 = vmatprep.subr.mxu0 %v2379
      %2406 = vmatpush1.msra.mxu0 %v2378
      %2407 = vmatprep.subr.mxu0 %v2381
      %2408 = vmatpush1.msra.mxu0 %v2380
      %2409 = vmatprep.subr.mxu0 %v2383
      %2410 = vmatpush1.msra.mxu0 %v2382
      %2411 = vmatprep.subr.mxu0 %v2401
      %2412 = vmatpush1.msra.mxu0 %v2398
      %2413 = vmatprep.subr.mxu0 0.0
      %2414 = vmatpush1.msra.mxu0 0.0
      %2415 = vmatprep.subr.mxu0 0.0
      %2416 = vmatpush1.msra.mxu0 0.0
      %2417 = vmatprep.subr.mxu0 0.0
      %2418 = vmatpush1.msra.mxu0 0.0
      %2419 = vmatprep.subr.mxu0 0.0
      %2420 = vmatpush1.msra.mxu0 0.0
      %2421 = vmatprep.subr.mxu0 0.0
      %2422 = vmatpush1.msra.mxu0 0.0
      %2423 = vmatprep.subr.mxu0 0.0
      %2424 = vmatpush1.msra.mxu0 0.0
      %2425 = vmatprep.subr.mxu0 0.0
      %2426 = vmatpush1.msra.mxu0 0.0
      %2427 = vmatprep.subr.mxu0 0.0
      %2428 = vmatpush1.msra.mxu0 0.0
      %2429 = vmatprep.subr.mxu0 0.0
      %2430 = vmatpush1.msra.mxu0 0.0
      %2431 = vmatprep.subr.mxu0 0.0
      %2432 = vmatpush1.msra.mxu0 0.0
      %2433 = vmatprep.subr.mxu0 0.0
      %2434 = vmatpush1.msra.mxu0 0.0
      %2435 = vmatprep.subr.mxu0 0.0
      %2436 = vmatpush1.msra.mxu0 0.0
      %2437 = vmatprep.subr.mxu0 0.0
      %2438 = vmatpush1.msra.mxu0 0.0
      %2439 = vmatprep.subr.mxu0 0.0
      %2440 = vmatpush1.msra.mxu0 0.0
      %2441 = vmatprep.subr.mxu0 0.0
      %2442 = vmatpush1.msra.mxu0 0.0
      %2443 = vmatprep.subr.mxu0 0.0
      %2444 = vmatpush1.msra.mxu0 0.0
      %2445 = vmatprep.subr.mxu0 0.0
      %2446 = vmatpush1.msra.mxu0 0.0
      %2447 = vmatprep.subr.mxu0 0.0
      %2448 = vmatpush1.msra.mxu0 0.0
      %2449 = vmatprep.subr.mxu0 0.0
      %2450 = vmatpush1.msra.mxu0 0.0
      %2451 = vmatprep.subr.mxu0 0.0
      %2452 = vmatpush1.msra.mxu0 0.0
      %2453 = vmatprep.subr.mxu0 0.0
      %2454 = vmatpush1.msra.mxu0 0.0
      %2455 = vmatprep.subr.mxu0 0.0
      %2456 = vmatpush1.msra.mxu0 0.0
      %2457 = vmatprep.subr.mxu0 0.0
      %2458 = vmatpush1.msra.mxu0 0.0
      %2459 = vmatprep.subr.mxu0 0.0
      %2460 = vmatpush1.msra.mxu0 0.0
      %2461 = vmatprep.subr.mxu0 0.0
      %2462 = vmatpush1.msra.mxu0 0.0
      %2463 = vmatprep.subr.mxu0 0.0
      %2464 = vmatpush1.msra.mxu0 0.0
      %2465 = vmatprep.subr.mxu0 0.0
      %2466 = vmatpush1.msra.mxu0 0.0
      %2467 = vmatprep.mubr.f32.mxu0 0.0
      %2468 = vmatmul.mubr.f32.gmra.mrb[0].mxu0 %v2394
      %v2469 = vpop.f32.mrb[0].mxu0
      %v2470 = vadd.f32 %v2390, %v2469
      %v2471 = vpop.f32.mrb[0].mxu0
      %v2472 = vadd.f32 %v2390, %v2471
      %2473 = vdwg.mxu0
      %2474 = vst [vmem:[%s237] sm:$0xff] %v2470
      %2475 = vst [vmem:[%s237 + $0x8] sm:$0xff] %v2472
      %v2476 = vadd.f32 %v2470, %v2472
      %2477 = vadd.xlane.f32.xlu0 %v2476
      %v2478 = vpop.xlane.xlu0 %2477
      %vm2479 = vcmask 7168
      %2480 = vst.msk [vmem:[%s241] sm:$0xff] %vm2479, %v2478
      %v2481 = vmul.f32 %v2470, %v2470
      %v2482 = vmul.f32 %v2472, %v2472
      %v2483 = vadd.f32 %v2481, %v2482
      %2484 = vadd.xlane.f32.xlu0 %v2483
      %v2485 = vpop.xlane.xlu0 %2484
      %2486 = vst.msk [vmem:[%s245] sm:$0xff] %vm2479, %v2485
      %p2487 = scmp.lt.s32.totalorder %s17, 1
      %s2488 = scalar_select %p2487, %s17, 1
      %s2489 = smul.addr %s2488, 2
      %s2490 = smul.addr %s2489, 8
      %s2491 = scalar_lea.vmem %s3, %s2490
      %p2492 = scmp.lt.s32.totalorder %s17, 1
      %s2493 = scalar_select %p2492, %s17, 1
      %s2494 = smul.addr %s2493, 8
      %s2495 = scalar_lea.vmem %s4, %s2494
      %p2496 = scmp.lt.s32.totalorder %s17, 1
      %s2497 = scalar_select %p2496, %s17, 1
      %s2498 = smul.addr %s2497, 8
      %s2499 = scalar_lea.vmem %s5, %s2498
      // Predicated region
      $region33: #{double_conv.2} parent=31 // pred_check
        %p2500 = pneg %p103
      $region34: #{double_conv.2} parent=31 // pred_check_branch
        %2502 = sbr.rel (%p2500) target = $region36
      $region35: #{double_conv.2} parent=31 // pred_region
        _
      $region36: #{double_conv.2} parent=31 // pred_fallthru
        _
      // Predicated region
      $region37: #{double_conv.2} parent=31 // pred_check
        %p2503 = pneg %p129
      $region38: #{double_conv.2} parent=31 // pred_check_branch
        %2505 = sbr.rel (%p2503) target = $region40
      $region39: #{double_conv.2} parent=31 // pred_region
        _
      $region40: #{double_conv.2} parent=31 // pred_fallthru
        _
      // Predicated region
      $region41: #{double_conv.2} parent=31 // pred_check
        %p2506 = pneg %p155
      $region42: #{double_conv.2} parent=31 // pred_check_branch
        %2508 = sbr.rel (%p2506) target = $region44
      $region43: #{double_conv.2} parent=31 // pred_region
        _
      $region44: #{double_conv.2} parent=31 // pred_fallthru
        _
    $region32: #{double_conv.2} parent=5 // pred_fallthru
      _
    %p2509 = scmp.le.s32.totalorder 2, %s12
    // Predicated region
    $region45: #{double_conv.2} parent=5 // pred_check
      %p2510 = pneg %p2509
    $region46: #{double_conv.2} parent=5 // pred_check_branch
      %2512 = sbr.rel (%p2510) target = $region48
    $region47: #{double_conv.2} parent=5 // pred_region
      %s2513 = ssub.s32 %s12, 2
      // Predicated region
      $region49: #{double_conv.2} parent=47 // pred_check
        %p2514 = pneg %p109
      $region50: #{double_conv.2} parent=47 // pred_check_branch
        %2516 = sbr.rel (%p2514) target = $region52
      $region51: #{double_conv.2} parent=47 // pred_region
        %p2517 = scmp.lt.s32.totalorder %s18, 1
        %s2518 = scalar_select %p2517, %s18, 1
        %s2519 = smul.addr %s2518, 2
        %s2520 = smul.addr %s2519, 8
        %s2521 = scalar_lea.vmem %s3, %s2520
      $region52: #{double_conv.2} parent=47 // pred_fallthru
        _
      // Predicated region
      $region53: #{double_conv.2} parent=47 // pred_check
        %p2522 = pneg %p135
      $region54: #{double_conv.2} parent=47 // pred_check_branch
        %2524 = sbr.rel (%p2522) target = $region56
      $region55: #{double_conv.2} parent=47 // pred_region
        %p2525 = scmp.lt.s32.totalorder %s18, 1
        %s2526 = scalar_select %p2525, %s18, 1
        %s2527 = smul.addr %s2526, 8
        %s2528 = scalar_lea.vmem %s4, %s2527
      $region56: #{double_conv.2} parent=47 // pred_fallthru
        _
      // Predicated region
      $region57: #{double_conv.2} parent=47 // pred_check
        %p2529 = pneg %p161
      $region58: #{double_conv.2} parent=47 // pred_check_branch
        %2531 = sbr.rel (%p2529) target = $region60
      $region59: #{double_conv.2} parent=47 // pred_region
        %p2532 = scmp.lt.s32.totalorder %s18, 1
        %s2533 = scalar_select %p2532, %s18, 1
        %s2534 = smul.addr %s2533, 8
        %s2535 = scalar_lea.vmem %s5, %s2534
      $region60: #{double_conv.2} parent=47 // pred_fallthru
        _
    $region48: #{double_conv.2} parent=5 // pred_fallthru
      _
  $region6: #{double_conv.2} parent=0 // loop_footer
    %s16 = sadd.s32 1, %s12
  $region7: #{double_conv.2} parent=0 // loop_footer_branch
    %11 = sbr.rel target = $region3
  $region8: #{double_conv.2} parent=0 // loop_exit
    _

</llo_original>
